<compile_context>
chip_gen: v7x
topology: tpu7x:2x2x1
jax: 0.10.0
libtpu: 0.0.40
codegen_flags: <defaults>
</compile_context>

<pallas_src>
import functools

import jax
import jax.numpy as jnp
from jax.experimental import pallas as pl
from jax.experimental.pallas import tpu as pltpu


_SQRT_2_OVER_PI = 0.7978845608028654
_LN_EPS = 1e-5


# ----------------------------------------------------------------------------
# small helpers (shared by kernels and by the pure-JAX reference)
# ----------------------------------------------------------------------------
def _gelu_tanh(x):
    return 0.5 * x * (1.0 + jnp.tanh(_SQRT_2_OVER_PI * (x + 0.044715 * x * x * x)))


def _sigmoid(x):
    # Inputs here are O(1); the plain formulation is numerically fine here and
    # is a guaranteed Mosaic lowering.
    return 1.0 / (1.0 + jnp.exp(-x))


def _layernorm(x, g, b, eps=_LN_EPS):
    mu = jnp.mean(x, axis=-1, keepdims=True)
    xc = x - mu
    var = jnp.mean(xc * xc, axis=-1, keepdims=True)
    return xc * jax.lax.rsqrt(var + eps) * g + b


def _tile_lane(n, pref):
    """Lane (last-dim) tile: multiple of 128 dividing n, else full extent."""
    for t in (pref, 1024, 512, 256, 128):
        if t <= n and n % t == 0 and t % 128 == 0:
            return t
    return n


def _tile_sub(n, pref):
    """Sublane (2nd-to-last) tile: multiple of 8 dividing n, else full extent."""
    for t in (pref, 512, 256, 128, 64, 32, 16, 8):
        if t <= n and n % t == 0 and t % 8 == 0:
            return t
    return n


def _tile_sub_parallel(n, pref):
    """Sublane tile, but keep >= 2 steps on the parallel grid axis when possible
    (v7x has two TensorCores sharded along parallel axes)."""
    t = _tile_sub(n, pref)
    if n // t < 2 and t % 2 == 0 and (t // 2) % 8 == 0:
        t //= 2
    return t


# ============================================================================
# PRIMARY PATH: one fused pallas_call per AoA block (weights resident in VMEM)
# ============================================================================
def _fused_aoa_block_kernel(
        x_ref, w_kvq_ref, b_kvq_ref, w_inq_ref, b_inq_ref, w_out_ref, b_out_ref,
        w_ga_ref, w_gq_ref, b_g_ref, ln_g_ref, ln_b_ref,
        w_ff1_ref, b_ff1_ref, w_ff2_ref, b_ff2_ref,
        o_ref, att_ref, ctx_ref, *, B, S, D, heads):
    hd = D // heads
    f32 = jnp.float32

    x = x_ref[...]                                     # (M, D) f32
    x_bf = x.astype(jnp.bfloat16)

    # k2 | v2 | q1 in one lane-dense bf16 MXU matmul.  The MHA k/v
    # in-projections are pre-composed into the weights host-side; the
    # 1/sqrt(hd) scale is pre-folded into (w_inq, b_inq).
    kvq = jnp.dot(x_bf, w_kvq_ref[...], preferred_element_type=f32) + b_kvq_ref[...]
    q1 = kvq[:, 2 * D:]
    q1_bf = q1.astype(jnp.bfloat16)
    q2 = jnp.dot(q1_bf, w_inq_ref[...], preferred_element_type=f32) + b_inq_ref[...]

    # Stage attention operands in VMEM scratch so the per-(head, batch-row)
    # slices below are plain strided VMEM loads.
    att_ref[:, :2 * D] = kvq[:, :2 * D]                # k2 | v2
    att_ref[:, 2 * D:] = q2

    # nn.MultiheadAttention(batch_first=False) quirk: (B, S, D) is (L=B, N=S, E).
    # Attention mixes rows across the batch axis; the sequence axis is the
    # attention batch.  L = B is tiny, so scores / weighted sums run on the VPU
    # with static loops: no transposes, reshapes or lane concatenations.
    # (depth_aoa loop is idempotent in eval -> executed once.)
    for h in range(heads):
        lo = h * hd
        for i in range(B):
            qi = att_ref[i * S:(i + 1) * S, 2 * D + lo:2 * D + lo + hd]   # (S, hd)
            scores = []
            for j in range(B):
                kj = att_ref[j * S:(j + 1) * S, lo:lo + hd]
                scores.append(jnp.sum(qi * kj, axis=-1, keepdims=True))    # (S, 1)
            m = scores[0]
            for j in range(1, B):
                m = jnp.maximum(m, scores[j])
            denom = jnp.zeros_like(m)
            acc = jnp.zeros((S, hd), f32)
            for j in range(B):
                e = jnp.exp(scores[j] - m)
                denom = denom + e
                acc = acc + e * att_ref[j * S:(j + 1) * S, D + lo:D + lo + hd]
            ctx_ref[i * S:(i + 1) * S, lo:lo + hd] = (
                acc * pl.reciprocal(denom, approx=True))

    attn_out = (jnp.dot(ctx_ref[...].astype(jnp.bfloat16), w_out_ref[...],
                        preferred_element_type=f32) + b_out_ref[...])

    # Concat-free AoA gate: proj1/proj2 weights are pre-split and N-concatenated
    # host-side, so sigmoid(proj1(cat(a, q))) * proj2(cat(a, q)) is two wide MXU
    # matmuls plus a lane-aligned split.
    gm = (jnp.dot(attn_out.astype(jnp.bfloat16), w_ga_ref[...],
                  preferred_element_type=f32)
          + jnp.dot(q1_bf, w_gq_ref[...], preferred_element_type=f32)
          + b_g_ref[...])
    gated = _sigmoid(gm[:, :D]) * gm[:, D:]

    ln_g = ln_g_ref[...]
    ln_b = ln_b_ref[...]
    qn = _layernorm(gated + x, ln_g, ln_b)             # q = LN(mult_output + x)

    # FeedForward (GELU fused between the two matmuls).
    h1 = _gelu_tanh(jnp.dot(qn.astype(jnp.bfloat16), w_ff1_ref[...],
                            preferred_element_type=f32) + b_ff1_ref[...])
    ffo = (jnp.dot(h1.astype(jnp.bfloat16), w_ff2_ref[...],
                   preferred_element_type=f32) + b_ff2_ref[...])

    # out = LN(ff + q); the Transformer-level residual (+x) is fused in too.
    o_ref[...] = (_layernorm(ffo + qn, ln_g, ln_b) + x).astype(o_ref.dtype)


_FUSED_PARAM_ORDER = ("w_kvq", "b_kvq", "w_inq", "b_inq", "w_out", "b_out",
                      "w_gate_a", "w_gate_q", "b_gate", "ln_g", "ln_b",
                      "w_ff1", "b_ff1", "w_ff2", "b_ff2")


def _aoa_block_fused(x, p, heads):
    B, S, D = x.shape
    M = B * S
    x2 = x.reshape(M, D)
    vmem = pl.BlockSpec(memory_space=pltpu.MemorySpace.VMEM)
    out = pl.pallas_call(
        functools.partial(_fused_aoa_block_kernel, B=B, S=S, D=D, heads=heads),
        out_shape=jax.ShapeDtypeStruct((M, D), x.dtype),
        in_specs=[vmem] * (1 + len(_FUSED_PARAM_ORDER)),
        out_specs=vmem,
        scratch_shapes=[pltpu.VMEM((M, 3 * D), jnp.float32),   # k2 | v2 | q2
                        pltpu.VMEM((M, D), jnp.float32)],      # attention ctx
    )(x2, *[p[k] for k in _FUSED_PARAM_ORDER])
    return out.reshape(B, S, D)


# ============================================================================
# FALLBACK PATH: tiled kernels for shapes too large for full VMEM residency
# ============================================================================
def _matmul_bias_kernel(x_ref, w_ref, b_ref, o_ref, acc_ref, *, activation):
    @pl.when(pl.program_id(2) == 0)
    def _():
        acc_ref[...] = jnp.zeros_like(acc_ref)

    acc_ref[...] += jnp.dot(x_ref[...].astype(jnp.bfloat16), w_ref[...],
                            preferred_element_type=jnp.float32)

    @pl.when(pl.program_id(2) == pl.num_programs(2) - 1)
    def _():
        out = acc_ref[...] + b_ref[...]
        if activation == "gelu":
            out = _gelu_tanh(out)
        o_ref[...] = out.astype(o_ref.dtype)


def linear(x, w, b, activation=None):
    """y = act(x @ w + b); w is bf16, x cast to bf16 in-kernel, f32 accumulate."""
    m, k = x.shape
    _, n = w.shape
    # Larger tiles per the v5e/v6e sweep feedback; still within default scoped
    # VMEM with double buffering.
    tm = _tile_sub_parallel(m, 512)
    tn = _tile_lane(n, 512)
    tk = _tile_lane(k, 1024)
    return pl.pallas_call(
        functools.partial(_matmul_bias_kernel, activation=activation),
        out_shape=jax.ShapeDtypeStruct((m, n), x.dtype),
        grid=(m // tm, n // tn, k // tk),
        in_specs=[
            pl.BlockSpec((tm, tk), lambda i, j, kk: (i, kk)),
            pl.BlockSpec((tk, tn), lambda i, j, kk: (kk, j)),
            pl.BlockSpec((1, tn), lambda i, j, kk: (0, j)),
        ],
        out_specs=pl.BlockSpec((tm, tn), lambda i, j, kk: (i, j)),
        scratch_shapes=[pltpu.VMEM((tm, tn), jnp.float32)],
        compiler_params=pltpu.CompilerParams(
            dimension_semantics=("parallel", "parallel", "arbitrary")),
    )(x, w, b)


def _attention_tiled_kernel(q_ref, k_ref, v_ref, o_ref, *, B, heads, hd):
    # Blocks are (B, tS, D): lane-dense last dim, no wrapper transposes.
    for h in range(heads):
        lo = h * hd
        for i in range(B):
            qi = q_ref[i, :, lo:lo + hd]                         # (tS, hd)
            scores = []
            for j in range(B):
                kj = k_ref[j, :, lo:lo + hd]
                scores.append(jnp.sum(qi * kj, axis=-1, keepdims=True))
            m = scores[0]
            for j in range(1, B):
                m = jnp.maximum(m, scores[j])
            denom = jnp.zeros_like(m)
            acc = jnp.zeros(qi.shape, jnp.float32)
            for j in range(B):
                e = jnp.exp(scores[j] - m)
                denom = denom + e
                acc = acc + e * v_ref[j, :, lo:lo + hd]
            o_ref[i, :, lo:lo + hd] = (
                acc * pl.reciprocal(denom, approx=True)).astype(o_ref.dtype)


def attention(q, k, v, heads):
    # batch_first=False quirk: attention length axis = B, attention batch = S.
    # Scale is already folded into the q in-projection.
    B, S, D = q.shape
    hd = D // heads
    tS = _tile_sub_parallel(S, 512)
    spec = pl.BlockSpec((B, tS, D), lambda s: (0, s, 0))
    return pl.pallas_call(
        functools.partial(_attention_tiled_kernel, B=B, heads=heads, hd=hd),
        out_shape=jax.ShapeDtypeStruct((B, S, D), q.dtype),
        grid=(S // tS,),
        in_specs=[spec, spec, spec],
        out_specs=spec,
        compiler_params=pltpu.CompilerParams(dimension_semantics=("parallel",)),
    )(q, k, v)


def _gate_matmul_kernel(a_ref, q_ref, wa_ref, wq_ref, b_ref, o_ref, acc_ref):
    @pl.when(pl.program_id(2) == 0)
    def _():
        acc_ref[...] = jnp.zeros_like(acc_ref)

    acc_ref[...] += (
        jnp.dot(a_ref[...].astype(jnp.bfloat16), wa_ref[...],
                preferred_element_type=jnp.float32)
        + jnp.dot(q_ref[...].astype(jnp.bfloat16), wq_ref[...],
                  preferred_element_type=jnp.float32))

    @pl.when(pl.program_id(2) == pl.num_programs(2) - 1)
    def _():
        o_ref[...] = (acc_ref[...] + b_ref[...]).astype(o_ref.dtype)


def gate_matmul(a, q, wa, wq, b):
    """gm = a @ [W1a||W2a] + q @ [W1q||W2q] + [b1||b2]  (K-tiled accumulator)."""
    m, k = a.shape
    n = wa.shape[1]
    tm = _tile_sub_parallel(m, 512)
    tn = _tile_lane(n, 512)
    tk = _tile_lane(k, 512)
    return pl.pallas_call(
        _gate_matmul_kernel,
        out_shape=jax.ShapeDtypeStruct((m, n), a.dtype),
        grid=(m // tm, n // tn, k // tk),
        in_specs=[
            pl.BlockSpec((tm, tk), lambda i, j, kk: (i, kk)),
            pl.BlockSpec((tm, tk), lambda i, j, kk: (i, kk)),
            pl.BlockSpec((tk, tn), lambda i, j, kk: (kk, j)),
            pl.BlockSpec((tk, tn), lambda i, j, kk: (kk, j)),
            pl.BlockSpec((1, tn), lambda i, j, kk: (0, j)),
        ],
        out_specs=pl.BlockSpec((tm, tn), lambda i, j, kk: (i, j)),
        scratch_shapes=[pltpu.VMEM((tm, tn), jnp.float32)],
        compiler_params=pltpu.CompilerParams(
            dimension_semantics=("parallel", "parallel", "arbitrary")),
    )(a, q, wa, wq, b)


def _gate_ln_kernel(gm_ref, x_ref, g_ref, b_ref, o_ref, *, D):
    gm = gm_ref[...]
    gated = _sigmoid(gm[:, :D]) * gm[:, D:]
    o_ref[...] = _layernorm(gated + x_ref[...], g_ref[...], b_ref[...]
                            ).astype(o_ref.dtype)


def gate_combine_ln(gm, x, g, b):
    """qn = LayerNorm(sigmoid(gm[:, :D]) * gm[:, D:] + x)."""
    m, d2 = gm.shape
    d = d2 // 2
    tm = _tile_sub_parallel(m, 512)
    return pl.pallas_call(
        functools.partial(_gate_ln_kernel, D=d),
        out_shape=jax.ShapeDtypeStruct((m, d), x.dtype),
        grid=(m // tm,),
        in_specs=[
            pl.BlockSpec((tm, d2), lambda i: (i, 0)),
            pl.BlockSpec((tm, d), lambda i: (i, 0)),
            pl.BlockSpec((1, d), lambda i: (0, 0)),
            pl.BlockSpec((1, d), lambda i: (0, 0)),
        ],
        out_specs=pl.BlockSpec((tm, d), lambda i: (i, 0)),
        compiler_params=pltpu.CompilerParams(dimension_semantics=("parallel",)),
    )(gm, x, g, b)


def _add_ln_res_kernel(a_ref, b_ref, res_ref, g_ref, beta_ref, o_ref):
    y = _layernorm(a_ref[...] + b_ref[...], g_ref[...], beta_ref[...])
    o_ref[...] = (y + res_ref[...]).astype(o_ref.dtype)


def add_layernorm_residual(a, b, g, beta, residual):
    """out = LayerNorm(a + b) + residual  (Transformer residual fused)."""
    m, d = a.shape
    tm = _tile_sub_parallel(m, 512)
    row = pl.BlockSpec((tm, d), lambda i: (i, 0))
    const = pl.BlockSpec((1, d), lambda i: (0, 0))
    return pl.pallas_call(
        _add_ln_res_kernel,
        out_shape=jax.ShapeDtypeStruct((m, d), a.dtype),
        grid=(m // tm,),
        in_specs=[row, row, row, const, const],
        out_specs=row,
        compiler_params=pltpu.CompilerParams(dimension_semantics=("parallel",)),
    )(a, b, residual, g, beta)


def _aoa_block_tiled(x, p, heads):
    B, S, D = x.shape
    M = B * S
    x2 = x.reshape(M, D)
    kvq = linear(x2, p["w_kvq"], p["b_kvq"])                    # k2 | v2 | q1
    k2, v2, q1 = kvq[:, :D], kvq[:, D:2 * D], kvq[:, 2 * D:]
    q2 = linear(q1, p["w_inq"], p["b_inq"])                     # scale pre-folded
    ctx = attention(q2.reshape(B, S, D), k2.reshape(B, S, D),
                    v2.reshape(B, S, D), heads)
    attn_out = linear(ctx.reshape(M, D), p["w_out"], p["b_out"])
    gm = gate_matmul(attn_out, q1, p["w_gate_a"], p["w_gate_q"], p["b_gate"])
    qn = gate_combine_ln(gm, x2, p["ln_g"], p["ln_b"])
    h1 = linear(qn, p["w_ff1"], p["b_ff1"], activation="gelu")
    ffo = linear(h1, p["w_ff2"], p["b_ff2"])
    out = add_layernorm_residual(ffo, qn, p["ln_g"], p["ln_b"], x2)
    return out.reshape(B, S, D)


# ----------------------------------------------------------------------------
# Block dispatch + Transformer forward
# ----------------------------------------------------------------------------
def aoa_block(x, p, heads):
    B, S, D = x.shape
    M = B * S
    weight_bytes = 17 * D * D * 2       # all bf16 weights resident in VMEM
    act_bytes = 80 * M * D              # rough f32 live-intermediate bound
    use_fused = (weight_bytes + act_bytes <= 24 * 2 ** 20) and (heads * B * B <= 1024)
    if use_fused:
        return _aoa_block_fused(x, p, heads)
    return _aoa_block_tiled(x, p, heads)


def transformer_forward(x, layer_params, heads):
    # Transformer.forward: x = block(x) + x; the residual is fused into each
    # block kernel's final store.
    for p in layer_params:
        x = aoa_block(x, p, heads)
    return x


# ----------------------------------------------------------------------------
# Parameter construction and host-side weight algebra
# ----------------------------------------------------------------------------
def init_params(key, dim, heads, ff_mult, depth):
    """Raw parameters, math convention y = x @ W + b (torch stores W transposed)."""
    def dense(k, din, dout):
        return jax.random.normal(k, (din, dout), jnp.float32) / jnp.sqrt(float(din))

    def bias(k, dout):
        return 0.02 * jax.random.normal(k, (dout,), jnp.float32)

    layers = []
    for _ in range(depth):
        key, *ks = jax.random.split(key, 25)
        layers.append({
            "w_k": dense(ks[0], dim, dim),          "b_k": bias(ks[1], dim),
            "w_v": dense(ks[2], dim, dim),          "b_v": bias(ks[3], dim),
            "w_q": dense(ks[4], dim, dim),          "b_q": bias(ks[5], dim),
            "w_in_q": dense(ks[6], dim, dim),       "b_in_q": bias(ks[7], dim),
            "w_in_k": dense(ks[8], dim, dim),       "b_in_k": bias(ks[9], dim),
            "w_in_v": dense(ks[10], dim, dim),      "b_in_v": bias(ks[11], dim),
            "w_attn_out": dense(ks[12], dim, dim),  "b_attn_out": bias(ks[13], dim),
            "w1": dense(ks[14], 2 * dim, dim),      "b1": bias(ks[15], dim),
            "w2": dense(ks[16], 2 * dim, dim),      "b2": bias(ks[17], dim),
            "ln_g": 1.0 + 0.1 * jax.random.normal(ks[18], (dim,), jnp.float32),
            "ln_b": 0.02 * jax.random.normal(ks[19], (dim,), jnp.float32),
            "w_ff1": dense(ks[20], dim, dim * ff_mult),
            "b_ff1": bias(ks[21], dim * ff_mult),
            "w_ff2": dense(ks[22], dim * ff_mult, dim),
            "b_ff2": bias(ks[23], dim),
        })
    return layers


def prepare_params(raw_layers, heads):
    """Host-side weight composition / folding / concatenation + bf16 casts."""
    prepped = []
    for p in raw_layers:
        D = p["w_q"].shape[0]
        hd = D // heads
        scale = 1.0 / (hd ** 0.5)

        # Compose outer k/v projections with the MHA k/v in-projections:
        #   (x @ Wk + bk) @ Wik + bik == x @ (Wk Wik) + (bk Wik + bik)
        w_k_eff = p["w_k"] @ p["w_in_k"]
        b_k_eff = p["b_k"] @ p["w_in_k"] + p["b_in_k"]
        w_v_eff = p["w_v"] @ p["w_in_v"]
        b_v_eff = p["b_v"] @ p["w_in_v"] + p["b_in_v"]
        w_kvq = jnp.concatenate([w_k_eff, w_v_eff, p["w_q"]], axis=1)   # (D, 3D)
        b_kvq = jnp.concatenate([b_k_eff, b_v_eff, p["b_q"]])

        # proj1/proj2 over cat(attn_out, q): split along K, concatenate along N.
        w_gate_a = jnp.concatenate([p["w1"][:D], p["w2"][:D]], axis=1)  # (D, 2D)
        w_gate_q = jnp.concatenate([p["w1"][D:], p["w2"][D:]], axis=1)  # (D, 2D)
        b_gate = jnp.concatenate([p["b1"], p["b2"]])

        bf = lambda w: w.astype(jnp.bfloat16)
        row = lambda v: v.reshape(1, -1).astype(jnp.float32)

        prepped.append({
            "w_kvq": bf(w_kvq), "b_kvq": row(b_kvq),
            # fold 1/sqrt(head_dim) into the q in-projection
            "w_inq": bf(p["w_in_q"] * scale), "b_inq": row(p["b_in_q"] * scale),
            "w_out": bf(p["w_attn_out"]), "b_out": row(p["b_attn_out"]),
            "w_gate_a": bf(w_gate_a), "w_gate_q": bf(w_gate_q),
            "b_gate": row(b_gate),
            "ln_g": row(p["ln_g"]), "ln_b": row(p["ln_b"]),
            "w_ff1": bf(p["w_ff1"]), "b_ff1": row(p["b_ff1"]),
            "w_ff2": bf(p["w_ff2"]), "b_ff2": row(p["b_ff2"]),
        })
    return prepped


# ----------------------------------------------------------------------------
# Pure-JAX f32 reference (torch-faithful math, raw params) for the parity check
# ----------------------------------------------------------------------------
def reference_forward(x, raw_layers, heads):
    for p in raw_layers:
        B, S, D = x.shape
        hd = D // heads
        x2 = x.reshape(B * S, D)
        k1 = x2 @ p["w_k"] + p["b_k"]
        v1 = x2 @ p["w_v"] + p["b_v"]
        q1 = x2 @ p["w_q"] + p["b_q"]
        q2 = q1 @ p["w_in_q"] + p["b_in_q"]
        k2 = k1 @ p["w_in_k"] + p["b_in_k"]
        v2 = v1 @ p["w_in_v"] + p["b_in_v"]

        def split(t):  # (M, D) -> (N=S, H, L=B, hd), batch_first=False view
            return t.reshape(B, S, heads, hd).transpose(1, 2, 0, 3)

        qh, kh, vh = split(q2), split(k2), split(v2)
        s = jnp.einsum("nhqd,nhkd->nhqk", qh, kh) * (hd ** -0.5)
        s = s - jnp.max(s, axis=-1, keepdims=True)
        pw = jnp.exp(s)
        pw = pw / jnp.sum(pw, axis=-1, keepdims=True)
        ctx = jnp.einsum("nhqk,nhkd->nhqd", pw, vh)
        ctx = ctx.transpose(2, 0, 1, 3).reshape(B * S, D)
        attn_out = ctx @ p["w_attn_out"] + p["b_attn_out"]

        cat = jnp.concatenate([attn_out, q1], axis=-1)
        gated = _sigmoid(cat @ p["w1"] + p["b1"]) * (cat @ p["w2"] + p["b2"])

        def ln(t):
            mu = t.mean(-1, keepdims=True)
            var = ((t - mu) ** 2).mean(-1, keepdims=True)
            return (t - mu) / jnp.sqrt(var + _LN_EPS) * p["ln_g"] + p["ln_b"]

        qn = ln(gated + x2)
        h1 = _gelu_tanh(qn @ p["w_ff1"] + p["b_ff1"])
        ffo = h1 @ p["w_ff2"] + p["b_ff2"]
        x = (ln(ffo + qn) + x2).reshape(B, S, D)
    return x


if __name__ == "__main__":
    key = jax.random.PRNGKey(0)
    batch, seq = 2, 8
    dim, heads, ff_mult, depth = 128, 4, 4, 2      # head_dim = 32

    kx, kp = jax.random.split(key)
    x = jax.random.normal(kx, (batch, seq, dim), jnp.float32)
    raw_layers = init_params(kp, dim, heads, ff_mult, depth)
    layers = prepare_params(raw_layers, heads)

    fwd = jax.jit(functools.partial(transformer_forward, heads=heads))
    out = jax.block_until_ready(fwd(x, layers))

    ref = reference_forward(x, raw_layers, heads)
    assert out.shape == (batch, seq, dim)
    rel_err = jnp.linalg.norm(out - ref) / jnp.linalg.norm(ref)
    assert float(rel_err) < 2e-2, f"relative error too large: {float(rel_err)}"
    print("KERNEL_OK")
</pallas_src>

<mosaic_0001>
module attributes {stable_mosaic.version = 11 : i64} {
  func.func @_fused_aoa_block_kernel(%arg0: memref<16x128xf32, #tpu.memory_space<vmem>>, %arg1: memref<128x384xbf16, #tpu.memory_space<vmem>>, %arg2: memref<1x384xf32, #tpu.memory_space<vmem>>, %arg3: memref<128x128xbf16, #tpu.memory_space<vmem>>, %arg4: memref<1x128xf32, #tpu.memory_space<vmem>>, %arg5: memref<128x128xbf16, #tpu.memory_space<vmem>>, %arg6: memref<1x128xf32, #tpu.memory_space<vmem>>, %arg7: memref<128x256xbf16, #tpu.memory_space<vmem>>, %arg8: memref<128x256xbf16, #tpu.memory_space<vmem>>, %arg9: memref<1x256xf32, #tpu.memory_space<vmem>>, %arg10: memref<1x128xf32, #tpu.memory_space<vmem>>, %arg11: memref<1x128xf32, #tpu.memory_space<vmem>>, %arg12: memref<128x512xbf16, #tpu.memory_space<vmem>>, %arg13: memref<1x512xf32, #tpu.memory_space<vmem>>, %arg14: memref<512x128xbf16, #tpu.memory_space<vmem>>, %arg15: memref<1x128xf32, #tpu.memory_space<vmem>>, %arg16: memref<16x128xf32, #tpu.memory_space<vmem>>, %arg17: memref<16x384xf32, #tpu.memory_space<vmem>>, %arg18: memref<16x128xf32, #tpu.memory_space<vmem>>) attributes {dimension_semantics = [], scalar_prefetch = 0 : i64, scratch_operands = 2 : i64, tpu.core_type = #tpu.core_type<tc>} {
    %c0 = arith.constant 0 : index
    %c0_0 = arith.constant 0 : index
    %0 = vector.load %arg0[%c0, %c0_0] : memref<16x128xf32, #tpu.memory_space<vmem>>, vector<16x128xf32>
    %1 = arith.truncf %0 : vector<16x128xf32> to vector<16x128xbf16>
    %c0_1 = arith.constant 0 : index
    %c0_2 = arith.constant 0 : index
    %2 = vector.load %arg1[%c0_1, %c0_2] : memref<128x384xbf16, #tpu.memory_space<vmem>>, vector<128x384xbf16>
    %cst = arith.constant dense<0.000000e+00> : vector<16x384xf32>
    %3 = tpu.matmul %1, %2, %cst {dimension_numbers = #tpu.dot_dimension_numbers<[1], [0], [0], [1], [0, 0, 1, 1], [], []>} : vector<16x128xbf16>, vector<128x384xbf16>, vector<16x384xf32> -> vector<16x384xf32>
    %c0_3 = arith.constant 0 : index
    %c0_4 = arith.constant 0 : index
    %4 = vector.load %arg2[%c0_3, %c0_4] : memref<1x384xf32, #tpu.memory_space<vmem>>, vector<1x384xf32>
    %5 = vector.broadcast %4 : vector<1x384xf32> to vector<16x384xf32>
    %6 = arith.addf %3, %5 : vector<16x384xf32>
    %7 = vector.extract_strided_slice %6 {offsets = [0, 256], sizes = [16, 128], strides = [1, 1]} : vector<16x384xf32> to vector<16x128xf32>
    %8 = arith.truncf %7 : vector<16x128xf32> to vector<16x128xbf16>
    %c0_5 = arith.constant 0 : index
    %c0_6 = arith.constant 0 : index
    %9 = vector.load %arg3[%c0_5, %c0_6] : memref<128x128xbf16, #tpu.memory_space<vmem>>, vector<128x128xbf16>
    %cst_7 = arith.constant dense<0.000000e+00> : vector<16x128xf32>
    %10 = tpu.matmul %8, %9, %cst_7 {dimension_numbers = #tpu.dot_dimension_numbers<[1], [0], [0], [1], [0, 0, 1, 1], [], []>} : vector<16x128xbf16>, vector<128x128xbf16>, vector<16x128xf32> -> vector<16x128xf32>
    %c0_8 = arith.constant 0 : index
    %c0_9 = arith.constant 0 : index
    %11 = vector.load %arg4[%c0_8, %c0_9] : memref<1x128xf32, #tpu.memory_space<vmem>>, vector<1x128xf32>
    %12 = vector.broadcast %11 : vector<1x128xf32> to vector<16x128xf32>
    %13 = arith.addf %10, %12 : vector<16x128xf32>
    %14 = vector.extract_strided_slice %6 {offsets = [0, 0], sizes = [16, 256], strides = [1, 1]} : vector<16x384xf32> to vector<16x256xf32>
    %c0_10 = arith.constant 0 : index
    %c0_11 = arith.constant 0 : index
    %15 = vector.load %arg17[%c0_10, %c0_11] : memref<16x384xf32, #tpu.memory_space<vmem>>, vector<16x256xf32>
    tpu.vector_store %arg17[%c0_10, %c0_11], %14 {strides = array<i32>} : memref<16x384xf32, #tpu.memory_space<vmem>>, vector<16x256xf32>,
    %c0_12 = arith.constant 0 : index
    %c256 = arith.constant 256 : index
    %16 = vector.load %arg17[%c0_12, %c256] : memref<16x384xf32, #tpu.memory_space<vmem>>, vector<16x128xf32>
    tpu.vector_store %arg17[%c0_12, %c256], %13 {strides = array<i32>} : memref<16x384xf32, #tpu.memory_space<vmem>>, vector<16x128xf32>,
    %c0_13 = arith.constant 0 : index
    %c256_14 = arith.constant 256 : index
    %17 = vector.load %arg17[%c0_13, %c256_14] : memref<16x384xf32, #tpu.memory_space<vmem>>, vector<8x32xf32>
    %c0_15 = arith.constant 0 : index
    %c0_16 = arith.constant 0 : index
    %18 = vector.load %arg17[%c0_15, %c0_16] : memref<16x384xf32, #tpu.memory_space<vmem>>, vector<8x32xf32>
    %19 = arith.mulf %17, %18 : vector<8x32xf32>
    %cst_17 = arith.constant dense<0.000000e+00> : vector<8xf32>
    %20 = vector.multi_reduction <add>, %19, %cst_17 [1] : vector<8x32xf32> to vector<8xf32>
    %21 = vector.shape_cast %20 : vector<8xf32> to vector<8x1xf32>
    %c8 = arith.constant 8 : index
    %c0_18 = arith.constant 0 : index
    %22 = vector.load %arg17[%c8, %c0_18] : memref<16x384xf32, #tpu.memory_space<vmem>>, vector<8x32xf32>
    %23 = arith.mulf %17, %22 : vector<8x32xf32>
    %cst_19 = arith.constant dense<0.000000e+00> : vector<8xf32>
    %24 = vector.multi_reduction <add>, %23, %cst_19 [1] : vector<8x32xf32> to vector<8xf32>
    %25 = vector.shape_cast %24 : vector<8xf32> to vector<8x1xf32>
    %26 = arith.maximumf %21, %25 : vector<8x1xf32>
    %cst_20 = arith.constant 0.000000e+00 : f32
    %27 = vector.broadcast %cst_20 : f32 to vector<8x1xf32>
    %cst_21 = arith.constant 0.000000e+00 : f32
    %28 = vector.broadcast %cst_21 : f32 to vector<8x32xf32>
    %29 = arith.subf %21, %26 : vector<8x1xf32>
    %30 = math.exp %29 : vector<8x1xf32>
    %31 = arith.addf %27, %30 : vector<8x1xf32>
    %c0_22 = arith.constant 0 : index
    %c128 = arith.constant 128 : index
    %32 = vector.load %arg17[%c0_22, %c128] : memref<16x384xf32, #tpu.memory_space<vmem>>, vector<8x32xf32>
    %33 = vector.broadcast %30 : vector<8x1xf32> to vector<8x32xf32>
    %34 = arith.mulf %33, %32 : vector<8x32xf32>
    %35 = arith.addf %28, %34 : vector<8x32xf32>
    %36 = arith.subf %25, %26 : vector<8x1xf32>
    %37 = math.exp %36 : vector<8x1xf32>
    %38 = arith.addf %31, %37 : vector<8x1xf32>
    %c8_23 = arith.constant 8 : index
    %c128_24 = arith.constant 128 : index
    %39 = vector.load %arg17[%c8_23, %c128_24] : memref<16x384xf32, #tpu.memory_space<vmem>>, vector<8x32xf32>
    %40 = vector.broadcast %37 : vector<8x1xf32> to vector<8x32xf32>
    %41 = arith.mulf %40, %39 : vector<8x32xf32>
    %42 = arith.addf %35, %41 : vector<8x32xf32>
    %43 = tpu.reciprocal %38 {approx = true} : vector<8x1xf32> -> vector<8x1xf32>
    %44 = vector.broadcast %43 : vector<8x1xf32> to vector<8x32xf32>
    %45 = arith.mulf %42, %44 : vector<8x32xf32>
    %c0_25 = arith.constant 0 : index
    %c0_26 = arith.constant 0 : index
    %46 = vector.load %arg18[%c0_25, %c0_26] : memref<16x128xf32, #tpu.memory_space<vmem>>, vector<8x32xf32>
    tpu.vector_store %arg18[%c0_25, %c0_26], %45 {strides = array<i32>} : memref<16x128xf32, #tpu.memory_space<vmem>>, vector<8x32xf32>,
    %c8_27 = arith.constant 8 : index
    %c256_28 = arith.constant 256 : index
    %47 = vector.load %arg17[%c8_27, %c256_28] : memref<16x384xf32, #tpu.memory_space<vmem>>, vector<8x32xf32>
    %c0_29 = arith.constant 0 : index
    %c0_30 = arith.constant 0 : index
    %48 = vector.load %arg17[%c0_29, %c0_30] : memref<16x384xf32, #tpu.memory_space<vmem>>, vector<8x32xf32>
    %49 = arith.mulf %47, %48 : vector<8x32xf32>
    %cst_31 = arith.constant dense<0.000000e+00> : vector<8xf32>
    %50 = vector.multi_reduction <add>, %49, %cst_31 [1] : vector<8x32xf32> to vector<8xf32>
    %51 = vector.shape_cast %50 : vector<8xf32> to vector<8x1xf32>
    %c8_32 = arith.constant 8 : index
    %c0_33 = arith.constant 0 : index
    %52 = vector.load %arg17[%c8_32, %c0_33] : memref<16x384xf32, #tpu.memory_space<vmem>>, vector<8x32xf32>
    %53 = arith.mulf %47, %52 : vector<8x32xf32>
    %cst_34 = arith.constant dense<0.000000e+00> : vector<8xf32>
    %54 = vector.multi_reduction <add>, %53, %cst_34 [1] : vector<8x32xf32> to vector<8xf32>
    %55 = vector.shape_cast %54 : vector<8xf32> to vector<8x1xf32>
    %56 = arith.maximumf %51, %55 : vector<8x1xf32>
    %cst_35 = arith.constant 0.000000e+00 : f32
    %57 = vector.broadcast %cst_35 : f32 to vector<8x1xf32>
    %cst_36 = arith.constant 0.000000e+00 : f32
    %58 = vector.broadcast %cst_36 : f32 to vector<8x32xf32>
    %59 = arith.subf %51, %56 : vector<8x1xf32>
    %60 = math.exp %59 : vector<8x1xf32>
    %61 = arith.addf %57, %60 : vector<8x1xf32>
    %c0_37 = arith.constant 0 : index
    %c128_38 = arith.constant 128 : index
    %62 = vector.load %arg17[%c0_37, %c128_38] : memref<16x384xf32, #tpu.memory_space<vmem>>, vector<8x32xf32>
    %63 = vector.broadcast %60 : vector<8x1xf32> to vector<8x32xf32>
    %64 = arith.mulf %63, %62 : vector<8x32xf32>
    %65 = arith.addf %58, %64 : vector<8x32xf32>
    %66 = arith.subf %55, %56 : vector<8x1xf32>
    %67 = math.exp %66 : vector<8x1xf32>
    %68 = arith.addf %61, %67 : vector<8x1xf32>
    %c8_39 = arith.constant 8 : index
    %c128_40 = arith.constant 128 : index
    %69 = vector.load %arg17[%c8_39, %c128_40] : memref<16x384xf32, #tpu.memory_space<vmem>>, vector<8x32xf32>
    %70 = vector.broadcast %67 : vector<8x1xf32> to vector<8x32xf32>
    %71 = arith.mulf %70, %69 : vector<8x32xf32>
    %72 = arith.addf %65, %71 : vector<8x32xf32>
    %73 = tpu.reciprocal %68 {approx = true} : vector<8x1xf32> -> vector<8x1xf32>
    %74 = vector.broadcast %73 : vector<8x1xf32> to vector<8x32xf32>
    %75 = arith.mulf %72, %74 : vector<8x32xf32>
    %c8_41 = arith.constant 8 : index
    %c0_42 = arith.constant 0 : index
    %76 = vector.load %arg18[%c8_41, %c0_42] : memref<16x128xf32, #tpu.memory_space<vmem>>, vector<8x32xf32>
    tpu.vector_store %arg18[%c8_41, %c0_42], %75 {strides = array<i32>} : memref<16x128xf32, #tpu.memory_space<vmem>>, vector<8x32xf32>,
    %c0_43 = arith.constant 0 : index
    %c288 = arith.constant 288 : index
    %77 = vector.load %arg17[%c0_43, %c288] : memref<16x384xf32, #tpu.memory_space<vmem>>, vector<8x32xf32>
    %c0_44 = arith.constant 0 : index
    %c32 = arith.constant 32 : index
    %78 = vector.load %arg17[%c0_44, %c32] : memref<16x384xf32, #tpu.memory_space<vmem>>, vector<8x32xf32>
    %79 = arith.mulf %77, %78 : vector<8x32xf32>
    %cst_45 = arith.constant dense<0.000000e+00> : vector<8xf32>
    %80 = vector.multi_reduction <add>, %79, %cst_45 [1] : vector<8x32xf32> to vector<8xf32>
    %81 = vector.shape_cast %80 : vector<8xf32> to vector<8x1xf32>
    %c8_46 = arith.constant 8 : index
    %c32_47 = arith.constant 32 : index
    %82 = vector.load %arg17[%c8_46, %c32_47] : memref<16x384xf32, #tpu.memory_space<vmem>>, vector<8x32xf32>
    %83 = arith.mulf %77, %82 : vector<8x32xf32>
    %cst_48 = arith.constant dense<0.000000e+00> : vector<8xf32>
    %84 = vector.multi_reduction <add>, %83, %cst_48 [1] : vector<8x32xf32> to vector<8xf32>
    %85 = vector.shape_cast %84 : vector<8xf32> to vector<8x1xf32>
    %86 = arith.maximumf %81, %85 : vector<8x1xf32>
    %cst_49 = arith.constant 0.000000e+00 : f32
    %87 = vector.broadcast %cst_49 : f32 to vector<8x1xf32>
    %cst_50 = arith.constant 0.000000e+00 : f32
    %88 = vector.broadcast %cst_50 : f32 to vector<8x32xf32>
    %89 = arith.subf %81, %86 : vector<8x1xf32>
    %90 = math.exp %89 : vector<8x1xf32>
    %91 = arith.addf %87, %90 : vector<8x1xf32>
    %c0_51 = arith.constant 0 : index
    %c160 = arith.constant 160 : index
    %92 = vector.load %arg17[%c0_51, %c160] : memref<16x384xf32, #tpu.memory_space<vmem>>, vector<8x32xf32>
    %93 = vector.broadcast %90 : vector<8x1xf32> to vector<8x32xf32>
    %94 = arith.mulf %93, %92 : vector<8x32xf32>
    %95 = arith.addf %88, %94 : vector<8x32xf32>
    %96 = arith.subf %85, %86 : vector<8x1xf32>
    %97 = math.exp %96 : vector<8x1xf32>
    %98 = arith.addf %91, %97 : vector<8x1xf32>
    %c8_52 = arith.constant 8 : index
    %c160_53 = arith.constant 160 : index
    %99 = vector.load %arg17[%c8_52, %c160_53] : memref<16x384xf32, #tpu.memory_space<vmem>>, vector<8x32xf32>
    %100 = vector.broadcast %97 : vector<8x1xf32> to vector<8x32xf32>
    %101 = arith.mulf %100, %99 : vector<8x32xf32>
    %102 = arith.addf %95, %101 : vector<8x32xf32>
    %103 = tpu.reciprocal %98 {approx = true} : vector<8x1xf32> -> vector<8x1xf32>
    %104 = vector.broadcast %103 : vector<8x1xf32> to vector<8x32xf32>
    %105 = arith.mulf %102, %104 : vector<8x32xf32>
    %c0_54 = arith.constant 0 : index
    %c32_55 = arith.constant 32 : index
    %106 = vector.load %arg18[%c0_54, %c32_55] : memref<16x128xf32, #tpu.memory_space<vmem>>, vector<8x32xf32>
    tpu.vector_store %arg18[%c0_54, %c32_55], %105 {strides = array<i32>} : memref<16x128xf32, #tpu.memory_space<vmem>>, vector<8x32xf32>,
    %c8_56 = arith.constant 8 : index
    %c288_57 = arith.constant 288 : index
    %107 = vector.load %arg17[%c8_56, %c288_57] : memref<16x384xf32, #tpu.memory_space<vmem>>, vector<8x32xf32>
    %c0_58 = arith.constant 0 : index
    %c32_59 = arith.constant 32 : index
    %108 = vector.load %arg17[%c0_58, %c32_59] : memref<16x384xf32, #tpu.memory_space<vmem>>, vector<8x32xf32>
    %109 = arith.mulf %107, %108 : vector<8x32xf32>
    %cst_60 = arith.constant dense<0.000000e+00> : vector<8xf32>
    %110 = vector.multi_reduction <add>, %109, %cst_60 [1] : vector<8x32xf32> to vector<8xf32>
    %111 = vector.shape_cast %110 : vector<8xf32> to vector<8x1xf32>
    %c8_61 = arith.constant 8 : index
    %c32_62 = arith.constant 32 : index
    %112 = vector.load %arg17[%c8_61, %c32_62] : memref<16x384xf32, #tpu.memory_space<vmem>>, vector<8x32xf32>
    %113 = arith.mulf %107, %112 : vector<8x32xf32>
    %cst_63 = arith.constant dense<0.000000e+00> : vector<8xf32>
    %114 = vector.multi_reduction <add>, %113, %cst_63 [1] : vector<8x32xf32> to vector<8xf32>
    %115 = vector.shape_cast %114 : vector<8xf32> to vector<8x1xf32>
    %116 = arith.maximumf %111, %115 : vector<8x1xf32>
    %cst_64 = arith.constant 0.000000e+00 : f32
    %117 = vector.broadcast %cst_64 : f32 to vector<8x1xf32>
    %cst_65 = arith.constant 0.000000e+00 : f32
    %118 = vector.broadcast %cst_65 : f32 to vector<8x32xf32>
    %119 = arith.subf %111, %116 : vector<8x1xf32>
    %120 = math.exp %119 : vector<8x1xf32>
    %121 = arith.addf %117, %120 : vector<8x1xf32>
    %c0_66 = arith.constant 0 : index
    %c160_67 = arith.constant 160 : index
    %122 = vector.load %arg17[%c0_66, %c160_67] : memref<16x384xf32, #tpu.memory_space<vmem>>, vector<8x32xf32>
    %123 = vector.broadcast %120 : vector<8x1xf32> to vector<8x32xf32>
    %124 = arith.mulf %123, %122 : vector<8x32xf32>
    %125 = arith.addf %118, %124 : vector<8x32xf32>
    %126 = arith.subf %115, %116 : vector<8x1xf32>
    %127 = math.exp %126 : vector<8x1xf32>
    %128 = arith.addf %121, %127 : vector<8x1xf32>
    %c8_68 = arith.constant 8 : index
    %c160_69 = arith.constant 160 : index
    %129 = vector.load %arg17[%c8_68, %c160_69] : memref<16x384xf32, #tpu.memory_space<vmem>>, vector<8x32xf32>
    %130 = vector.broadcast %127 : vector<8x1xf32> to vector<8x32xf32>
    %131 = arith.mulf %130, %129 : vector<8x32xf32>
    %132 = arith.addf %125, %131 : vector<8x32xf32>
    %133 = tpu.reciprocal %128 {approx = true} : vector<8x1xf32> -> vector<8x1xf32>
    %134 = vector.broadcast %133 : vector<8x1xf32> to vector<8x32xf32>
    %135 = arith.mulf %132, %134 : vector<8x32xf32>
    %c8_70 = arith.constant 8 : index
    %c32_71 = arith.constant 32 : index
    %136 = vector.load %arg18[%c8_70, %c32_71] : memref<16x128xf32, #tpu.memory_space<vmem>>, vector<8x32xf32>
    tpu.vector_store %arg18[%c8_70, %c32_71], %135 {strides = array<i32>} : memref<16x128xf32, #tpu.memory_space<vmem>>, vector<8x32xf32>,
    %c0_72 = arith.constant 0 : index
    %c320 = arith.constant 320 : index
    %137 = vector.load %arg17[%c0_72, %c320] : memref<16x384xf32, #tpu.memory_space<vmem>>, vector<8x32xf32>
    %c0_73 = arith.constant 0 : index
    %c64 = arith.constant 64 : index
    %138 = vector.load %arg17[%c0_73, %c64] : memref<16x384xf32, #tpu.memory_space<vmem>>, vector<8x32xf32>
    %139 = arith.mulf %137, %138 : vector<8x32xf32>
    %cst_74 = arith.constant dense<0.000000e+00> : vector<8xf32>
    %140 = vector.multi_reduction <add>, %139, %cst_74 [1] : vector<8x32xf32> to vector<8xf32>
    %141 = vector.shape_cast %140 : vector<8xf32> to vector<8x1xf32>
    %c8_75 = arith.constant 8 : index
    %c64_76 = arith.constant 64 : index
    %142 = vector.load %arg17[%c8_75, %c64_76] : memref<16x384xf32, #tpu.memory_space<vmem>>, vector<8x32xf32>
    %143 = arith.mulf %137, %142 : vector<8x32xf32>
    %cst_77 = arith.constant dense<0.000000e+00> : vector<8xf32>
    %144 = vector.multi_reduction <add>, %143, %cst_77 [1] : vector<8x32xf32> to vector<8xf32>
    %145 = vector.shape_cast %144 : vector<8xf32> to vector<8x1xf32>
    %146 = arith.maximumf %141, %145 : vector<8x1xf32>
    %cst_78 = arith.constant 0.000000e+00 : f32
    %147 = vector.broadcast %cst_78 : f32 to vector<8x1xf32>
    %cst_79 = arith.constant 0.000000e+00 : f32
    %148 = vector.broadcast %cst_79 : f32 to vector<8x32xf32>
    %149 = arith.subf %141, %146 : vector<8x1xf32>
    %150 = math.exp %149 : vector<8x1xf32>
    %151 = arith.addf %147, %150 : vector<8x1xf32>
    %c0_80 = arith.constant 0 : index
    %c192 = arith.constant 192 : index
    %152 = vector.load %arg17[%c0_80, %c192] : memref<16x384xf32, #tpu.memory_space<vmem>>, vector<8x32xf32>
    %153 = vector.broadcast %150 : vector<8x1xf32> to vector<8x32xf32>
    %154 = arith.mulf %153, %152 : vector<8x32xf32>
    %155 = arith.addf %148, %154 : vector<8x32xf32>
    %156 = arith.subf %145, %146 : vector<8x1xf32>
    %157 = math.exp %156 : vector<8x1xf32>
    %158 = arith.addf %151, %157 : vector<8x1xf32>
    %c8_81 = arith.constant 8 : index
    %c192_82 = arith.constant 192 : index
    %159 = vector.load %arg17[%c8_81, %c192_82] : memref<16x384xf32, #tpu.memory_space<vmem>>, vector<8x32xf32>
    %160 = vector.broadcast %157 : vector<8x1xf32> to vector<8x32xf32>
    %161 = arith.mulf %160, %159 : vector<8x32xf32>
    %162 = arith.addf %155, %161 : vector<8x32xf32>
    %163 = tpu.reciprocal %158 {approx = true} : vector<8x1xf32> -> vector<8x1xf32>
    %164 = vector.broadcast %163 : vector<8x1xf32> to vector<8x32xf32>
    %165 = arith.mulf %162, %164 : vector<8x32xf32>
    %c0_83 = arith.constant 0 : index
    %c64_84 = arith.constant 64 : index
    %166 = vector.load %arg18[%c0_83, %c64_84] : memref<16x128xf32, #tpu.memory_space<vmem>>, vector<8x32xf32>
    tpu.vector_store %arg18[%c0_83, %c64_84], %165 {strides = array<i32>} : memref<16x128xf32, #tpu.memory_space<vmem>>, vector<8x32xf32>,
    %c8_85 = arith.constant 8 : index
    %c320_86 = arith.constant 320 : index
    %167 = vector.load %arg17[%c8_85, %c320_86] : memref<16x384xf32, #tpu.memory_space<vmem>>, vector<8x32xf32>
    %c0_87 = arith.constant 0 : index
    %c64_88 = arith.constant 64 : index
    %168 = vector.load %arg17[%c0_87, %c64_88] : memref<16x384xf32, #tpu.memory_space<vmem>>, vector<8x32xf32>
    %169 = arith.mulf %167, %168 : vector<8x32xf32>
    %cst_89 = arith.constant dense<0.000000e+00> : vector<8xf32>
    %170 = vector.multi_reduction <add>, %169, %cst_89 [1] : vector<8x32xf32> to vector<8xf32>
    %171 = vector.shape_cast %170 : vector<8xf32> to vector<8x1xf32>
    %c8_90 = arith.constant 8 : index
    %c64_91 = arith.constant 64 : index
    %172 = vector.load %arg17[%c8_90, %c64_91] : memref<16x384xf32, #tpu.memory_space<vmem>>, vector<8x32xf32>
    %173 = arith.mulf %167, %172 : vector<8x32xf32>
    %cst_92 = arith.constant dense<0.000000e+00> : vector<8xf32>
    %174 = vector.multi_reduction <add>, %173, %cst_92 [1] : vector<8x32xf32> to vector<8xf32>
    %175 = vector.shape_cast %174 : vector<8xf32> to vector<8x1xf32>
    %176 = arith.maximumf %171, %175 : vector<8x1xf32>
    %cst_93 = arith.constant 0.000000e+00 : f32
    %177 = vector.broadcast %cst_93 : f32 to vector<8x1xf32>
    %cst_94 = arith.constant 0.000000e+00 : f32
    %178 = vector.broadcast %cst_94 : f32 to vector<8x32xf32>
    %179 = arith.subf %171, %176 : vector<8x1xf32>
    %180 = math.exp %179 : vector<8x1xf32>
    %181 = arith.addf %177, %180 : vector<8x1xf32>
    %c0_95 = arith.constant 0 : index
    %c192_96 = arith.constant 192 : index
    %182 = vector.load %arg17[%c0_95, %c192_96] : memref<16x384xf32, #tpu.memory_space<vmem>>, vector<8x32xf32>
    %183 = vector.broadcast %180 : vector<8x1xf32> to vector<8x32xf32>
    %184 = arith.mulf %183, %182 : vector<8x32xf32>
    %185 = arith.addf %178, %184 : vector<8x32xf32>
    %186 = arith.subf %175, %176 : vector<8x1xf32>
    %187 = math.exp %186 : vector<8x1xf32>
    %188 = arith.addf %181, %187 : vector<8x1xf32>
    %c8_97 = arith.constant 8 : index
    %c192_98 = arith.constant 192 : index
    %189 = vector.load %arg17[%c8_97, %c192_98] : memref<16x384xf32, #tpu.memory_space<vmem>>, vector<8x32xf32>
    %190 = vector.broadcast %187 : vector<8x1xf32> to vector<8x32xf32>
    %191 = arith.mulf %190, %189 : vector<8x32xf32>
    %192 = arith.addf %185, %191 : vector<8x32xf32>
    %193 = tpu.reciprocal %188 {approx = true} : vector<8x1xf32> -> vector<8x1xf32>
    %194 = vector.broadcast %193 : vector<8x1xf32> to vector<8x32xf32>
    %195 = arith.mulf %192, %194 : vector<8x32xf32>
    %c8_99 = arith.constant 8 : index
    %c64_100 = arith.constant 64 : index
    %196 = vector.load %arg18[%c8_99, %c64_100] : memref<16x128xf32, #tpu.memory_space<vmem>>, vector<8x32xf32>
    tpu.vector_store %arg18[%c8_99, %c64_100], %195 {strides = array<i32>} : memref<16x128xf32, #tpu.memory_space<vmem>>, vector<8x32xf32>,
    %c0_101 = arith.constant 0 : index
    %c352 = arith.constant 352 : index
    %197 = vector.load %arg17[%c0_101, %c352] : memref<16x384xf32, #tpu.memory_space<vmem>>, vector<8x32xf32>
    %c0_102 = arith.constant 0 : index
    %c96 = arith.constant 96 : index
    %198 = vector.load %arg17[%c0_102, %c96] : memref<16x384xf32, #tpu.memory_space<vmem>>, vector<8x32xf32>
    %199 = arith.mulf %197, %198 : vector<8x32xf32>
    %cst_103 = arith.constant dense<0.000000e+00> : vector<8xf32>
    %200 = vector.multi_reduction <add>, %199, %cst_103 [1] : vector<8x32xf32> to vector<8xf32>
    %201 = vector.shape_cast %200 : vector<8xf32> to vector<8x1xf32>
    %c8_104 = arith.constant 8 : index
    %c96_105 = arith.constant 96 : index
    %202 = vector.load %arg17[%c8_104, %c96_105] : memref<16x384xf32, #tpu.memory_space<vmem>>, vector<8x32xf32>
    %203 = arith.mulf %197, %202 : vector<8x32xf32>
    %cst_106 = arith.constant dense<0.000000e+00> : vector<8xf32>
    %204 = vector.multi_reduction <add>, %203, %cst_106 [1] : vector<8x32xf32> to vector<8xf32>
    %205 = vector.shape_cast %204 : vector<8xf32> to vector<8x1xf32>
    %206 = arith.maximumf %201, %205 : vector<8x1xf32>
    %cst_107 = arith.constant 0.000000e+00 : f32
    %207 = vector.broadcast %cst_107 : f32 to vector<8x1xf32>
    %cst_108 = arith.constant 0.000000e+00 : f32
    %208 = vector.broadcast %cst_108 : f32 to vector<8x32xf32>
    %209 = arith.subf %201, %206 : vector<8x1xf32>
    %210 = math.exp %209 : vector<8x1xf32>
    %211 = arith.addf %207, %210 : vector<8x1xf32>
    %c0_109 = arith.constant 0 : index
    %c224 = arith.constant 224 : index
    %212 = vector.load %arg17[%c0_109, %c224] : memref<16x384xf32, #tpu.memory_space<vmem>>, vector<8x32xf32>
    %213 = vector.broadcast %210 : vector<8x1xf32> to vector<8x32xf32>
    %214 = arith.mulf %213, %212 : vector<8x32xf32>
    %215 = arith.addf %208, %214 : vector<8x32xf32>
    %216 = arith.subf %205, %206 : vector<8x1xf32>
    %217 = math.exp %216 : vector<8x1xf32>
    %218 = arith.addf %211, %217 : vector<8x1xf32>
    %c8_110 = arith.constant 8 : index
    %c224_111 = arith.constant 224 : index
    %219 = vector.load %arg17[%c8_110, %c224_111] : memref<16x384xf32, #tpu.memory_space<vmem>>, vector<8x32xf32>
    %220 = vector.broadcast %217 : vector<8x1xf32> to vector<8x32xf32>
    %221 = arith.mulf %220, %219 : vector<8x32xf32>
    %222 = arith.addf %215, %221 : vector<8x32xf32>
    %223 = tpu.reciprocal %218 {approx = true} : vector<8x1xf32> -> vector<8x1xf32>
    %224 = vector.broadcast %223 : vector<8x1xf32> to vector<8x32xf32>
    %225 = arith.mulf %222, %224 : vector<8x32xf32>
    %c0_112 = arith.constant 0 : index
    %c96_113 = arith.constant 96 : index
    %226 = vector.load %arg18[%c0_112, %c96_113] : memref<16x128xf32, #tpu.memory_space<vmem>>, vector<8x32xf32>
    tpu.vector_store %arg18[%c0_112, %c96_113], %225 {strides = array<i32>} : memref<16x128xf32, #tpu.memory_space<vmem>>, vector<8x32xf32>,
    %c8_114 = arith.constant 8 : index
    %c352_115 = arith.constant 352 : index
    %227 = vector.load %arg17[%c8_114, %c352_115] : memref<16x384xf32, #tpu.memory_space<vmem>>, vector<8x32xf32>
    %c0_116 = arith.constant 0 : index
    %c96_117 = arith.constant 96 : index
    %228 = vector.load %arg17[%c0_116, %c96_117] : memref<16x384xf32, #tpu.memory_space<vmem>>, vector<8x32xf32>
    %229 = arith.mulf %227, %228 : vector<8x32xf32>
    %cst_118 = arith.constant dense<0.000000e+00> : vector<8xf32>
    %230 = vector.multi_reduction <add>, %229, %cst_118 [1] : vector<8x32xf32> to vector<8xf32>
    %231 = vector.shape_cast %230 : vector<8xf32> to vector<8x1xf32>
    %c8_119 = arith.constant 8 : index
    %c96_120 = arith.constant 96 : index
    %232 = vector.load %arg17[%c8_119, %c96_120] : memref<16x384xf32, #tpu.memory_space<vmem>>, vector<8x32xf32>
    %233 = arith.mulf %227, %232 : vector<8x32xf32>
    %cst_121 = arith.constant dense<0.000000e+00> : vector<8xf32>
    %234 = vector.multi_reduction <add>, %233, %cst_121 [1] : vector<8x32xf32> to vector<8xf32>
    %235 = vector.shape_cast %234 : vector<8xf32> to vector<8x1xf32>
    %236 = arith.maximumf %231, %235 : vector<8x1xf32>
    %cst_122 = arith.constant 0.000000e+00 : f32
    %237 = vector.broadcast %cst_122 : f32 to vector<8x1xf32>
    %cst_123 = arith.constant 0.000000e+00 : f32
    %238 = vector.broadcast %cst_123 : f32 to vector<8x32xf32>
    %239 = arith.subf %231, %236 : vector<8x1xf32>
    %240 = math.exp %239 : vector<8x1xf32>
    %241 = arith.addf %237, %240 : vector<8x1xf32>
    %c0_124 = arith.constant 0 : index
    %c224_125 = arith.constant 224 : index
    %242 = vector.load %arg17[%c0_124, %c224_125] : memref<16x384xf32, #tpu.memory_space<vmem>>, vector<8x32xf32>
    %243 = vector.broadcast %240 : vector<8x1xf32> to vector<8x32xf32>
    %244 = arith.mulf %243, %242 : vector<8x32xf32>
    %245 = arith.addf %238, %244 : vector<8x32xf32>
    %246 = arith.subf %235, %236 : vector<8x1xf32>
    %247 = math.exp %246 : vector<8x1xf32>
    %248 = arith.addf %241, %247 : vector<8x1xf32>
    %c8_126 = arith.constant 8 : index
    %c224_127 = arith.constant 224 : index
    %249 = vector.load %arg17[%c8_126, %c224_127] : memref<16x384xf32, #tpu.memory_space<vmem>>, vector<8x32xf32>
    %250 = vector.broadcast %247 : vector<8x1xf32> to vector<8x32xf32>
    %251 = arith.mulf %250, %249 : vector<8x32xf32>
    %252 = arith.addf %245, %251 : vector<8x32xf32>
    %253 = tpu.reciprocal %248 {approx = true} : vector<8x1xf32> -> vector<8x1xf32>
    %254 = vector.broadcast %253 : vector<8x1xf32> to vector<8x32xf32>
    %255 = arith.mulf %252, %254 : vector<8x32xf32>
    %c8_128 = arith.constant 8 : index
    %c96_129 = arith.constant 96 : index
    %256 = vector.load %arg18[%c8_128, %c96_129] : memref<16x128xf32, #tpu.memory_space<vmem>>, vector<8x32xf32>
    tpu.vector_store %arg18[%c8_128, %c96_129], %255 {strides = array<i32>} : memref<16x128xf32, #tpu.memory_space<vmem>>, vector<8x32xf32>,
    %c0_130 = arith.constant 0 : index
    %c0_131 = arith.constant 0 : index
    %257 = vector.load %arg18[%c0_130, %c0_131] : memref<16x128xf32, #tpu.memory_space<vmem>>, vector<16x128xf32>
    %258 = arith.truncf %257 : vector<16x128xf32> to vector<16x128xbf16>
    %c0_132 = arith.constant 0 : index
    %c0_133 = arith.constant 0 : index
    %259 = vector.load %arg5[%c0_132, %c0_133] : memref<128x128xbf16, #tpu.memory_space<vmem>>, vector<128x128xbf16>
    %cst_134 = arith.constant dense<0.000000e+00> : vector<16x128xf32>
    %260 = tpu.matmul %258, %259, %cst_134 {dimension_numbers = #tpu.dot_dimension_numbers<[1], [0], [0], [1], [0, 0, 1, 1], [], []>} : vector<16x128xbf16>, vector<128x128xbf16>, vector<16x128xf32> -> vector<16x128xf32>
    %c0_135 = arith.constant 0 : index
    %c0_136 = arith.constant 0 : index
    %261 = vector.load %arg6[%c0_135, %c0_136] : memref<1x128xf32, #tpu.memory_space<vmem>>, vector<1x128xf32>
    %262 = vector.broadcast %261 : vector<1x128xf32> to vector<16x128xf32>
    %263 = arith.addf %260, %262 : vector<16x128xf32>
    %264 = arith.truncf %263 : vector<16x128xf32> to vector<16x128xbf16>
    %c0_137 = arith.constant 0 : index
    %c0_138 = arith.constant 0 : index
    %265 = vector.load %arg7[%c0_137, %c0_138] : memref<128x256xbf16, #tpu.memory_space<vmem>>, vector<128x256xbf16>
    %cst_139 = arith.constant dense<0.000000e+00> : vector<16x256xf32>
    %266 = tpu.matmul %264, %265, %cst_139 {dimension_numbers = #tpu.dot_dimension_numbers<[1], [0], [0], [1], [0, 0, 1, 1], [], []>} : vector<16x128xbf16>, vector<128x256xbf16>, vector<16x256xf32> -> vector<16x256xf32>
    %c0_140 = arith.constant 0 : index
    %c0_141 = arith.constant 0 : index
    %267 = vector.load %arg8[%c0_140, %c0_141] : memref<128x256xbf16, #tpu.memory_space<vmem>>, vector<128x256xbf16>
    %cst_142 = arith.constant dense<0.000000e+00> : vector<16x256xf32>
    %268 = tpu.matmul %8, %267, %cst_142 {dimension_numbers = #tpu.dot_dimension_numbers<[1], [0], [0], [1], [0, 0, 1, 1], [], []>} : vector<16x128xbf16>, vector<128x256xbf16>, vector<16x256xf32> -> vector<16x256xf32>
    %269 = arith.addf %266, %268 : vector<16x256xf32>
    %c0_143 = arith.constant 0 : index
    %c0_144 = arith.constant 0 : index
    %270 = vector.load %arg9[%c0_143, %c0_144] : memref<1x256xf32, #tpu.memory_space<vmem>>, vector<1x256xf32>
    %271 = vector.broadcast %270 : vector<1x256xf32> to vector<16x256xf32>
    %272 = arith.addf %269, %271 : vector<16x256xf32>
    %273 = vector.extract_strided_slice %272 {offsets = [0, 0], sizes = [16, 128], strides = [1, 1]} : vector<16x256xf32> to vector<16x128xf32>
    %cst_145 = arith.constant 0.000000e+00 : f32
    %274 = vector.broadcast %cst_145 : f32 to vector<16x128xf32>
    %275 = arith.subf %274, %273 : vector<16x128xf32>
    %276 = math.exp %275 : vector<16x128xf32>
    %cst_146 = arith.constant 1.000000e+00 : f32
    %277 = vector.broadcast %cst_146 : f32 to vector<16x128xf32>
    %278 = arith.addf %277, %276 : vector<16x128xf32>
    %cst_147 = arith.constant 1.000000e+00 : f32
    %279 = vector.broadcast %cst_147 : f32 to vector<16x128xf32>
    %280 = arith.divf %279, %278 : vector<16x128xf32>
    %281 = vector.extract_strided_slice %272 {offsets = [0, 128], sizes = [16, 128], strides = [1, 1]} : vector<16x256xf32> to vector<16x128xf32>
    %282 = arith.mulf %280, %281 : vector<16x128xf32>
    %c0_148 = arith.constant 0 : index
    %c0_149 = arith.constant 0 : index
    %283 = vector.load %arg10[%c0_148, %c0_149] : memref<1x128xf32, #tpu.memory_space<vmem>>, vector<1x128xf32>
    %c0_150 = arith.constant 0 : index
    %c0_151 = arith.constant 0 : index
    %284 = vector.load %arg11[%c0_150, %c0_151] : memref<1x128xf32, #tpu.memory_space<vmem>>, vector<1x128xf32>
    %285 = arith.addf %282, %0 : vector<16x128xf32>
    %cst_152 = arith.constant dense<0.000000e+00> : vector<16xf32>
    %286 = vector.multi_reduction <add>, %285, %cst_152 [1] : vector<16x128xf32> to vector<16xf32>
    %287 = vector.shape_cast %286 : vector<16xf32> to vector<16x1xf32>
    %cst_153 = arith.constant 1.280000e+02 : f32
    %288 = vector.broadcast %cst_153 : f32 to vector<16x1xf32>
    %289 = arith.divf %287, %288 : vector<16x1xf32>
    %290 = vector.broadcast %289 : vector<16x1xf32> to vector<16x128xf32>
    %291 = arith.subf %285, %290 : vector<16x128xf32>
    %292 = arith.mulf %291, %291 : vector<16x128xf32>
    %cst_154 = arith.constant dense<0.000000e+00> : vector<16xf32>
    %293 = vector.multi_reduction <add>, %292, %cst_154 [1] : vector<16x128xf32> to vector<16xf32>
    %294 = vector.shape_cast %293 : vector<16xf32> to vector<16x1xf32>
    %cst_155 = arith.constant 1.280000e+02 : f32
    %295 = vector.broadcast %cst_155 : f32 to vector<16x1xf32>
    %296 = arith.divf %294, %295 : vector<16x1xf32>
    %cst_156 = arith.constant 9.99999974E-6 : f32
    %297 = vector.broadcast %cst_156 : f32 to vector<16x1xf32>
    %298 = arith.addf %296, %297 : vector<16x1xf32>
    %299 = math.rsqrt %298 : vector<16x1xf32>
    %300 = vector.broadcast %299 : vector<16x1xf32> to vector<16x128xf32>
    %301 = arith.mulf %291, %300 : vector<16x128xf32>
    %302 = vector.broadcast %283 : vector<1x128xf32> to vector<16x128xf32>
    %303 = arith.mulf %301, %302 : vector<16x128xf32>
    %304 = vector.broadcast %284 : vector<1x128xf32> to vector<16x128xf32>
    %305 = arith.addf %303, %304 : vector<16x128xf32>
    %306 = arith.truncf %305 : vector<16x128xf32> to vector<16x128xbf16>
    %c0_157 = arith.constant 0 : index
    %c0_158 = arith.constant 0 : index
    %307 = vector.load %arg12[%c0_157, %c0_158] : memref<128x512xbf16, #tpu.memory_space<vmem>>, vector<128x512xbf16>
    %cst_159 = arith.constant dense<0.000000e+00> : vector<16x512xf32>
    %308 = tpu.matmul %306, %307, %cst_159 {dimension_numbers = #tpu.dot_dimension_numbers<[1], [0], [0], [1], [0, 0, 1, 1], [], []>} : vector<16x128xbf16>, vector<128x512xbf16>, vector<16x512xf32> -> vector<16x512xf32>
    %c0_160 = arith.constant 0 : index
    %c0_161 = arith.constant 0 : index
    %309 = vector.load %arg13[%c0_160, %c0_161] : memref<1x512xf32, #tpu.memory_space<vmem>>, vector<1x512xf32>
    %310 = vector.broadcast %309 : vector<1x512xf32> to vector<16x512xf32>
    %311 = arith.addf %308, %310 : vector<16x512xf32>
    %cst_162 = arith.constant 5.000000e-01 : f32
    %312 = vector.broadcast %cst_162 : f32 to vector<16x512xf32>
    %313 = arith.mulf %312, %311 : vector<16x512xf32>
    %cst_163 = arith.constant 4.471500e-02 : f32
    %314 = vector.broadcast %cst_163 : f32 to vector<16x512xf32>
    %315 = arith.mulf %314, %311 : vector<16x512xf32>
    %316 = arith.mulf %315, %311 : vector<16x512xf32>
    %317 = arith.mulf %316, %311 : vector<16x512xf32>
    %318 = arith.addf %311, %317 : vector<16x512xf32>
    %cst_164 = arith.constant 0.797884583 : f32
    %319 = vector.broadcast %cst_164 : f32 to vector<16x512xf32>
    %320 = arith.mulf %319, %318 : vector<16x512xf32>
    %321 = math.tanh %320 : vector<16x512xf32>
    %cst_165 = arith.constant 1.000000e+00 : f32
    %322 = vector.broadcast %cst_165 : f32 to vector<16x512xf32>
    %323 = arith.addf %322, %321 : vector<16x512xf32>
    %324 = arith.mulf %313, %323 : vector<16x512xf32>
    %325 = arith.truncf %324 : vector<16x512xf32> to vector<16x512xbf16>
    %c0_166 = arith.constant 0 : index
    %c0_167 = arith.constant 0 : index
    %326 = vector.load %arg14[%c0_166, %c0_167] : memref<512x128xbf16, #tpu.memory_space<vmem>>, vector<512x128xbf16>
    %cst_168 = arith.constant dense<0.000000e+00> : vector<16x128xf32>
    %327 = tpu.matmul %325, %326, %cst_168 {dimension_numbers = #tpu.dot_dimension_numbers<[1], [0], [0], [1], [0, 0, 1, 1], [], []>} : vector<16x512xbf16>, vector<512x128xbf16>, vector<16x128xf32> -> vector<16x128xf32>
    %c0_169 = arith.constant 0 : index
    %c0_170 = arith.constant 0 : index
    %328 = vector.load %arg15[%c0_169, %c0_170] : memref<1x128xf32, #tpu.memory_space<vmem>>, vector<1x128xf32>
    %329 = vector.broadcast %328 : vector<1x128xf32> to vector<16x128xf32>
    %330 = arith.addf %327, %329 : vector<16x128xf32>
    %331 = arith.addf %330, %305 : vector<16x128xf32>
    %cst_171 = arith.constant dense<0.000000e+00> : vector<16xf32>
    %332 = vector.multi_reduction <add>, %331, %cst_171 [1] : vector<16x128xf32> to vector<16xf32>
    %333 = vector.shape_cast %332 : vector<16xf32> to vector<16x1xf32>
    %cst_172 = arith.constant 1.280000e+02 : f32
    %334 = vector.broadcast %cst_172 : f32 to vector<16x1xf32>
    %335 = arith.divf %333, %334 : vector<16x1xf32>
    %336 = vector.broadcast %335 : vector<16x1xf32> to vector<16x128xf32>
    %337 = arith.subf %331, %336 : vector<16x128xf32>
    %338 = arith.mulf %337, %337 : vector<16x128xf32>
    %cst_173 = arith.constant dense<0.000000e+00> : vector<16xf32>
    %339 = vector.multi_reduction <add>, %338, %cst_173 [1] : vector<16x128xf32> to vector<16xf32>
    %340 = vector.shape_cast %339 : vector<16xf32> to vector<16x1xf32>
    %cst_174 = arith.constant 1.280000e+02 : f32
    %341 = vector.broadcast %cst_174 : f32 to vector<16x1xf32>
    %342 = arith.divf %340, %341 : vector<16x1xf32>
    %cst_175 = arith.constant 9.99999974E-6 : f32
    %343 = vector.broadcast %cst_175 : f32 to vector<16x1xf32>
    %344 = arith.addf %342, %343 : vector<16x1xf32>
    %345 = math.rsqrt %344 : vector<16x1xf32>
    %346 = vector.broadcast %345 : vector<16x1xf32> to vector<16x128xf32>
    %347 = arith.mulf %337, %346 : vector<16x128xf32>
    %348 = vector.broadcast %283 : vector<1x128xf32> to vector<16x128xf32>
    %349 = arith.mulf %347, %348 : vector<16x128xf32>
    %350 = vector.broadcast %284 : vector<1x128xf32> to vector<16x128xf32>
    %351 = arith.addf %349, %350 : vector<16x128xf32>
    %352 = arith.addf %351, %0 : vector<16x128xf32>
    %c0_176 = arith.constant 0 : index
    %c0_177 = arith.constant 0 : index
    %353 = vector.load %arg16[%c0_176, %c0_177] : memref<16x128xf32, #tpu.memory_space<vmem>>, vector<16x128xf32>
    tpu.vector_store %arg16[%c0_176, %c0_177], %352 {strides = array<i32>} : memref<16x128xf32, #tpu.memory_space<vmem>>, vector<16x128xf32>,
    return
  }
}

module attributes {stable_mosaic.version = 11 : i64} {
  func.func @_fused_aoa_block_kernel(%arg0: memref<16x128xf32, #tpu.memory_space<vmem>>, %arg1: memref<128x384xbf16, #tpu.memory_space<vmem>>, %arg2: memref<1x384xf32, #tpu.memory_space<vmem>>, %arg3: memref<128x128xbf16, #tpu.memory_space<vmem>>, %arg4: memref<1x128xf32, #tpu.memory_space<vmem>>, %arg5: memref<128x128xbf16, #tpu.memory_space<vmem>>, %arg6: memref<1x128xf32, #tpu.memory_space<vmem>>, %arg7: memref<128x256xbf16, #tpu.memory_space<vmem>>, %arg8: memref<128x256xbf16, #tpu.memory_space<vmem>>, %arg9: memref<1x256xf32, #tpu.memory_space<vmem>>, %arg10: memref<1x128xf32, #tpu.memory_space<vmem>>, %arg11: memref<1x128xf32, #tpu.memory_space<vmem>>, %arg12: memref<128x512xbf16, #tpu.memory_space<vmem>>, %arg13: memref<1x512xf32, #tpu.memory_space<vmem>>, %arg14: memref<512x128xbf16, #tpu.memory_space<vmem>>, %arg15: memref<1x128xf32, #tpu.memory_space<vmem>>, %arg16: memref<16x128xf32, #tpu.memory_space<vmem>>, %arg17: memref<16x384xf32, #tpu.memory_space<vmem>>, %arg18: memref<16x128xf32, #tpu.memory_space<vmem>>) attributes {dimension_semantics = [], scalar_prefetch = 0 : i64, scratch_operands = 2 : i64, tpu.core_type = #tpu.core_type<tc>} {
    %c0 = arith.constant 0 : index
    %c0_0 = arith.constant 0 : index
    %0 = vector.load %arg0[%c0, %c0_0] : memref<16x128xf32, #tpu.memory_space<vmem>>, vector<16x128xf32>
    %1 = arith.truncf %0 : vector<16x128xf32> to vector<16x128xbf16>
    %c0_1 = arith.constant 0 : index
    %c0_2 = arith.constant 0 : index
    %2 = vector.load %arg1[%c0_1, %c0_2] : memref<128x384xbf16, #tpu.memory_space<vmem>>, vector<128x384xbf16>
    %cst = arith.constant dense<0.000000e+00> : vector<16x384xf32>
    %3 = tpu.matmul %1, %2, %cst {dimension_numbers = #tpu.dot_dimension_numbers<[1], [0], [0], [1], [0, 0, 1, 1], [], []>} : vector<16x128xbf16>, vector<128x384xbf16>, vector<16x384xf32> -> vector<16x384xf32>
    %c0_3 = arith.constant 0 : index
    %c0_4 = arith.constant 0 : index
    %4 = vector.load %arg2[%c0_3, %c0_4] : memref<1x384xf32, #tpu.memory_space<vmem>>, vector<1x384xf32>
    %5 = vector.broadcast %4 : vector<1x384xf32> to vector<16x384xf32>
    %6 = arith.addf %3, %5 : vector<16x384xf32>
    %7 = vector.extract_strided_slice %6 {offsets = [0, 256], sizes = [16, 128], strides = [1, 1]} : vector<16x384xf32> to vector<16x128xf32>
    %8 = arith.truncf %7 : vector<16x128xf32> to vector<16x128xbf16>
    %c0_5 = arith.constant 0 : index
    %c0_6 = arith.constant 0 : index
    %9 = vector.load %arg3[%c0_5, %c0_6] : memref<128x128xbf16, #tpu.memory_space<vmem>>, vector<128x128xbf16>
    %cst_7 = arith.constant dense<0.000000e+00> : vector<16x128xf32>
    %10 = tpu.matmul %8, %9, %cst_7 {dimension_numbers = #tpu.dot_dimension_numbers<[1], [0], [0], [1], [0, 0, 1, 1], [], []>} : vector<16x128xbf16>, vector<128x128xbf16>, vector<16x128xf32> -> vector<16x128xf32>
    %c0_8 = arith.constant 0 : index
    %c0_9 = arith.constant 0 : index
    %11 = vector.load %arg4[%c0_8, %c0_9] : memref<1x128xf32, #tpu.memory_space<vmem>>, vector<1x128xf32>
    %12 = vector.broadcast %11 : vector<1x128xf32> to vector<16x128xf32>
    %13 = arith.addf %10, %12 : vector<16x128xf32>
    %14 = vector.extract_strided_slice %6 {offsets = [0, 0], sizes = [16, 256], strides = [1, 1]} : vector<16x384xf32> to vector<16x256xf32>
    %c0_10 = arith.constant 0 : index
    %c0_11 = arith.constant 0 : index
    %15 = vector.load %arg17[%c0_10, %c0_11] : memref<16x384xf32, #tpu.memory_space<vmem>>, vector<16x256xf32>
    tpu.vector_store %arg17[%c0_10, %c0_11], %14 {strides = array<i32>} : memref<16x384xf32, #tpu.memory_space<vmem>>, vector<16x256xf32>,
    %c0_12 = arith.constant 0 : index
    %c256 = arith.constant 256 : index
    %16 = vector.load %arg17[%c0_12, %c256] : memref<16x384xf32, #tpu.memory_space<vmem>>, vector<16x128xf32>
    tpu.vector_store %arg17[%c0_12, %c256], %13 {strides = array<i32>} : memref<16x384xf32, #tpu.memory_space<vmem>>, vector<16x128xf32>,
    %c0_13 = arith.constant 0 : index
    %c256_14 = arith.constant 256 : index
    %17 = vector.load %arg17[%c0_13, %c256_14] : memref<16x384xf32, #tpu.memory_space<vmem>>, vector<8x32xf32>
    %c0_15 = arith.constant 0 : index
    %c0_16 = arith.constant 0 : index
    %18 = vector.load %arg17[%c0_15, %c0_16] : memref<16x384xf32, #tpu.memory_space<vmem>>, vector<8x32xf32>
    %19 = arith.mulf %17, %18 : vector<8x32xf32>
    %cst_17 = arith.constant dense<0.000000e+00> : vector<8xf32>
    %20 = vector.multi_reduction <add>, %19, %cst_17 [1] : vector<8x32xf32> to vector<8xf32>
    %21 = vector.shape_cast %20 : vector<8xf32> to vector<8x1xf32>
    %c8 = arith.constant 8 : index
    %c0_18 = arith.constant 0 : index
    %22 = vector.load %arg17[%c8, %c0_18] : memref<16x384xf32, #tpu.memory_space<vmem>>, vector<8x32xf32>
    %23 = arith.mulf %17, %22 : vector<8x32xf32>
    %cst_19 = arith.constant dense<0.000000e+00> : vector<8xf32>
    %24 = vector.multi_reduction <add>, %23, %cst_19 [1] : vector<8x32xf32> to vector<8xf32>
    %25 = vector.shape_cast %24 : vector<8xf32> to vector<8x1xf32>
    %26 = arith.maximumf %21, %25 : vector<8x1xf32>
    %cst_20 = arith.constant 0.000000e+00 : f32
    %27 = vector.broadcast %cst_20 : f32 to vector<8x1xf32>
    %cst_21 = arith.constant 0.000000e+00 : f32
    %28 = vector.broadcast %cst_21 : f32 to vector<8x32xf32>
    %29 = arith.subf %21, %26 : vector<8x1xf32>
    %30 = math.exp %29 : vector<8x1xf32>
    %31 = arith.addf %27, %30 : vector<8x1xf32>
    %c0_22 = arith.constant 0 : index
    %c128 = arith.constant 128 : index
    %32 = vector.load %arg17[%c0_22, %c128] : memref<16x384xf32, #tpu.memory_space<vmem>>, vector<8x32xf32>
    %33 = vector.broadcast %30 : vector<8x1xf32> to vector<8x32xf32>
    %34 = arith.mulf %33, %32 : vector<8x32xf32>
    %35 = arith.addf %28, %34 : vector<8x32xf32>
    %36 = arith.subf %25, %26 : vector<8x1xf32>
    %37 = math.exp %36 : vector<8x1xf32>
    %38 = arith.addf %31, %37 : vector<8x1xf32>
    %c8_23 = arith.constant 8 : index
    %c128_24 = arith.constant 128 : index
    %39 = vector.load %arg17[%c8_23, %c128_24] : memref<16x384xf32, #tpu.memory_space<vmem>>, vector<8x32xf32>
    %40 = vector.broadcast %37 : vector<8x1xf32> to vector<8x32xf32>
    %41 = arith.mulf %40, %39 : vector<8x32xf32>
    %42 = arith.addf %35, %41 : vector<8x32xf32>
    %43 = tpu.reciprocal %38 {approx = true} : vector<8x1xf32> -> vector<8x1xf32>
    %44 = vector.broadcast %43 : vector<8x1xf32> to vector<8x32xf32>
    %45 = arith.mulf %42, %44 : vector<8x32xf32>
    %c0_25 = arith.constant 0 : index
    %c0_26 = arith.constant 0 : index
    %46 = vector.load %arg18[%c0_25, %c0_26] : memref<16x128xf32, #tpu.memory_space<vmem>>, vector<8x32xf32>
    tpu.vector_store %arg18[%c0_25, %c0_26], %45 {strides = array<i32>} : memref<16x128xf32, #tpu.memory_space<vmem>>, vector<8x32xf32>,
    %c8_27 = arith.constant 8 : index
    %c256_28 = arith.constant 256 : index
    %47 = vector.load %arg17[%c8_27, %c256_28] : memref<16x384xf32, #tpu.memory_space<vmem>>, vector<8x32xf32>
    %c0_29 = arith.constant 0 : index
    %c0_30 = arith.constant 0 : index
    %48 = vector.load %arg17[%c0_29, %c0_30] : memref<16x384xf32, #tpu.memory_space<vmem>>, vector<8x32xf32>
    %49 = arith.mulf %47, %48 : vector<8x32xf32>
    %cst_31 = arith.constant dense<0.000000e+00> : vector<8xf32>
    %50 = vector.multi_reduction <add>, %49, %cst_31 [1] : vector<8x32xf32> to vector<8xf32>
    %51 = vector.shape_cast %50 : vector<8xf32> to vector<8x1xf32>
    %c8_32 = arith.constant 8 : index
    %c0_33 = arith.constant 0 : index
    %52 = vector.load %arg17[%c8_32, %c0_33] : memref<16x384xf32, #tpu.memory_space<vmem>>, vector<8x32xf32>
    %53 = arith.mulf %47, %52 : vector<8x32xf32>
    %cst_34 = arith.constant dense<0.000000e+00> : vector<8xf32>
    %54 = vector.multi_reduction <add>, %53, %cst_34 [1] : vector<8x32xf32> to vector<8xf32>
    %55 = vector.shape_cast %54 : vector<8xf32> to vector<8x1xf32>
    %56 = arith.maximumf %51, %55 : vector<8x1xf32>
    %cst_35 = arith.constant 0.000000e+00 : f32
    %57 = vector.broadcast %cst_35 : f32 to vector<8x1xf32>
    %cst_36 = arith.constant 0.000000e+00 : f32
    %58 = vector.broadcast %cst_36 : f32 to vector<8x32xf32>
    %59 = arith.subf %51, %56 : vector<8x1xf32>
    %60 = math.exp %59 : vector<8x1xf32>
    %61 = arith.addf %57, %60 : vector<8x1xf32>
    %c0_37 = arith.constant 0 : index
    %c128_38 = arith.constant 128 : index
    %62 = vector.load %arg17[%c0_37, %c128_38] : memref<16x384xf32, #tpu.memory_space<vmem>>, vector<8x32xf32>
    %63 = vector.broadcast %60 : vector<8x1xf32> to vector<8x32xf32>
    %64 = arith.mulf %63, %62 : vector<8x32xf32>
    %65 = arith.addf %58, %64 : vector<8x32xf32>
    %66 = arith.subf %55, %56 : vector<8x1xf32>
    %67 = math.exp %66 : vector<8x1xf32>
    %68 = arith.addf %61, %67 : vector<8x1xf32>
    %c8_39 = arith.constant 8 : index
    %c128_40 = arith.constant 128 : index
    %69 = vector.load %arg17[%c8_39, %c128_40] : memref<16x384xf32, #tpu.memory_space<vmem>>, vector<8x32xf32>
    %70 = vector.broadcast %67 : vector<8x1xf32> to vector<8x32xf32>
    %71 = arith.mulf %70, %69 : vector<8x32xf32>
    %72 = arith.addf %65, %71 : vector<8x32xf32>
    %73 = tpu.reciprocal %68 {approx = true} : vector<8x1xf32> -> vector<8x1xf32>
    %74 = vector.broadcast %73 : vector<8x1xf32> to vector<8x32xf32>
    %75 = arith.mulf %72, %74 : vector<8x32xf32>
    %c8_41 = arith.constant 8 : index
    %c0_42 = arith.constant 0 : index
    %76 = vector.load %arg18[%c8_41, %c0_42] : memref<16x128xf32, #tpu.memory_space<vmem>>, vector<8x32xf32>
    tpu.vector_store %arg18[%c8_41, %c0_42], %75 {strides = array<i32>} : memref<16x128xf32, #tpu.memory_space<vmem>>, vector<8x32xf32>,
    %c0_43 = arith.constant 0 : index
    %c288 = arith.constant 288 : index
    %77 = vector.load %arg17[%c0_43, %c288] : memref<16x384xf32, #tpu.memory_space<vmem>>, vector<8x32xf32>
    %c0_44 = arith.constant 0 : index
    %c32 = arith.constant 32 : index
    %78 = vector.load %arg17[%c0_44, %c32] : memref<16x384xf32, #tpu.memory_space<vmem>>, vector<8x32xf32>
    %79 = arith.mulf %77, %78 : vector<8x32xf32>
    %cst_45 = arith.constant dense<0.000000e+00> : vector<8xf32>
    %80 = vector.multi_reduction <add>, %79, %cst_45 [1] : vector<8x32xf32> to vector<8xf32>
    %81 = vector.shape_cast %80 : vector<8xf32> to vector<8x1xf32>
    %c8_46 = arith.constant 8 : index
    %c32_47 = arith.constant 32 : index
    %82 = vector.load %arg17[%c8_46, %c32_47] : memref<16x384xf32, #tpu.memory_space<vmem>>, vector<8x32xf32>
    %83 = arith.mulf %77, %82 : vector<8x32xf32>
    %cst_48 = arith.constant dense<0.000000e+00> : vector<8xf32>
    %84 = vector.multi_reduction <add>, %83, %cst_48 [1] : vector<8x32xf32> to vector<8xf32>
    %85 = vector.shape_cast %84 : vector<8xf32> to vector<8x1xf32>
    %86 = arith.maximumf %81, %85 : vector<8x1xf32>
    %cst_49 = arith.constant 0.000000e+00 : f32
    %87 = vector.broadcast %cst_49 : f32 to vector<8x1xf32>
    %cst_50 = arith.constant 0.000000e+00 : f32
    %88 = vector.broadcast %cst_50 : f32 to vector<8x32xf32>
    %89 = arith.subf %81, %86 : vector<8x1xf32>
    %90 = math.exp %89 : vector<8x1xf32>
    %91 = arith.addf %87, %90 : vector<8x1xf32>
    %c0_51 = arith.constant 0 : index
    %c160 = arith.constant 160 : index
    %92 = vector.load %arg17[%c0_51, %c160] : memref<16x384xf32, #tpu.memory_space<vmem>>, vector<8x32xf32>
    %93 = vector.broadcast %90 : vector<8x1xf32> to vector<8x32xf32>
    %94 = arith.mulf %93, %92 : vector<8x32xf32>
    %95 = arith.addf %88, %94 : vector<8x32xf32>
    %96 = arith.subf %85, %86 : vector<8x1xf32>
    %97 = math.exp %96 : vector<8x1xf32>
    %98 = arith.addf %91, %97 : vector<8x1xf32>
    %c8_52 = arith.constant 8 : index
    %c160_53 = arith.constant 160 : index
    %99 = vector.load %arg17[%c8_52, %c160_53] : memref<16x384xf32, #tpu.memory_space<vmem>>, vector<8x32xf32>
    %100 = vector.broadcast %97 : vector<8x1xf32> to vector<8x32xf32>
    %101 = arith.mulf %100, %99 : vector<8x32xf32>
    %102 = arith.addf %95, %101 : vector<8x32xf32>
    %103 = tpu.reciprocal %98 {approx = true} : vector<8x1xf32> -> vector<8x1xf32>
    %104 = vector.broadcast %103 : vector<8x1xf32> to vector<8x32xf32>
    %105 = arith.mulf %102, %104 : vector<8x32xf32>
    %c0_54 = arith.constant 0 : index
    %c32_55 = arith.constant 32 : index
    %106 = vector.load %arg18[%c0_54, %c32_55] : memref<16x128xf32, #tpu.memory_space<vmem>>, vector<8x32xf32>
    tpu.vector_store %arg18[%c0_54, %c32_55], %105 {strides = array<i32>} : memref<16x128xf32, #tpu.memory_space<vmem>>, vector<8x32xf32>,
    %c8_56 = arith.constant 8 : index
    %c288_57 = arith.constant 288 : index
    %107 = vector.load %arg17[%c8_56, %c288_57] : memref<16x384xf32, #tpu.memory_space<vmem>>, vector<8x32xf32>
    %c0_58 = arith.constant 0 : index
    %c32_59 = arith.constant 32 : index
    %108 = vector.load %arg17[%c0_58, %c32_59] : memref<16x384xf32, #tpu.memory_space<vmem>>, vector<8x32xf32>
    %109 = arith.mulf %107, %108 : vector<8x32xf32>
    %cst_60 = arith.constant dense<0.000000e+00> : vector<8xf32>
    %110 = vector.multi_reduction <add>, %109, %cst_60 [1] : vector<8x32xf32> to vector<8xf32>
    %111 = vector.shape_cast %110 : vector<8xf32> to vector<8x1xf32>
    %c8_61 = arith.constant 8 : index
    %c32_62 = arith.constant 32 : index
    %112 = vector.load %arg17[%c8_61, %c32_62] : memref<16x384xf32, #tpu.memory_space<vmem>>, vector<8x32xf32>
    %113 = arith.mulf %107, %112 : vector<8x32xf32>
    %cst_63 = arith.constant dense<0.000000e+00> : vector<8xf32>
    %114 = vector.multi_reduction <add>, %113, %cst_63 [1] : vector<8x32xf32> to vector<8xf32>
    %115 = vector.shape_cast %114 : vector<8xf32> to vector<8x1xf32>
    %116 = arith.maximumf %111, %115 : vector<8x1xf32>
    %cst_64 = arith.constant 0.000000e+00 : f32
    %117 = vector.broadcast %cst_64 : f32 to vector<8x1xf32>
    %cst_65 = arith.constant 0.000000e+00 : f32
    %118 = vector.broadcast %cst_65 : f32 to vector<8x32xf32>
    %119 = arith.subf %111, %116 : vector<8x1xf32>
    %120 = math.exp %119 : vector<8x1xf32>
    %121 = arith.addf %117, %120 : vector<8x1xf32>
    %c0_66 = arith.constant 0 : index
    %c160_67 = arith.constant 160 : index
    %122 = vector.load %arg17[%c0_66, %c160_67] : memref<16x384xf32, #tpu.memory_space<vmem>>, vector<8x32xf32>
    %123 = vector.broadcast %120 : vector<8x1xf32> to vector<8x32xf32>
    %124 = arith.mulf %123, %122 : vector<8x32xf32>
    %125 = arith.addf %118, %124 : vector<8x32xf32>
    %126 = arith.subf %115, %116 : vector<8x1xf32>
    %127 = math.exp %126 : vector<8x1xf32>
    %128 = arith.addf %121, %127 : vector<8x1xf32>
    %c8_68 = arith.constant 8 : index
    %c160_69 = arith.constant 160 : index
    %129 = vector.load %arg17[%c8_68, %c160_69] : memref<16x384xf32, #tpu.memory_space<vmem>>, vector<8x32xf32>
    %130 = vector.broadcast %127 : vector<8x1xf32> to vector<8x32xf32>
    %131 = arith.mulf %130, %129 : vector<8x32xf32>
    %132 = arith.addf %125, %131 : vector<8x32xf32>
    %133 = tpu.reciprocal %128 {approx = true} : vector<8x1xf32> -> vector<8x1xf32>
    %134 = vector.broadcast %133 : vector<8x1xf32> to vector<8x32xf32>
    %135 = arith.mulf %132, %134 : vector<8x32xf32>
    %c8_70 = arith.constant 8 : index
    %c32_71 = arith.constant 32 : index
    %136 = vector.load %arg18[%c8_70, %c32_71] : memref<16x128xf32, #tpu.memory_space<vmem>>, vector<8x32xf32>
    tpu.vector_store %arg18[%c8_70, %c32_71], %135 {strides = array<i32>} : memref<16x128xf32, #tpu.memory_space<vmem>>, vector<8x32xf32>,
    %c0_72 = arith.constant 0 : index
    %c320 = arith.constant 320 : index
    %137 = vector.load %arg17[%c0_72, %c320] : memref<16x384xf32, #tpu.memory_space<vmem>>, vector<8x32xf32>
    %c0_73 = arith.constant 0 : index
    %c64 = arith.constant 64 : index
    %138 = vector.load %arg17[%c0_73, %c64] : memref<16x384xf32, #tpu.memory_space<vmem>>, vector<8x32xf32>
    %139 = arith.mulf %137, %138 : vector<8x32xf32>
    %cst_74 = arith.constant dense<0.000000e+00> : vector<8xf32>
    %140 = vector.multi_reduction <add>, %139, %cst_74 [1] : vector<8x32xf32> to vector<8xf32>
    %141 = vector.shape_cast %140 : vector<8xf32> to vector<8x1xf32>
    %c8_75 = arith.constant 8 : index
    %c64_76 = arith.constant 64 : index
    %142 = vector.load %arg17[%c8_75, %c64_76] : memref<16x384xf32, #tpu.memory_space<vmem>>, vector<8x32xf32>
    %143 = arith.mulf %137, %142 : vector<8x32xf32>
    %cst_77 = arith.constant dense<0.000000e+00> : vector<8xf32>
    %144 = vector.multi_reduction <add>, %143, %cst_77 [1] : vector<8x32xf32> to vector<8xf32>
    %145 = vector.shape_cast %144 : vector<8xf32> to vector<8x1xf32>
    %146 = arith.maximumf %141, %145 : vector<8x1xf32>
    %cst_78 = arith.constant 0.000000e+00 : f32
    %147 = vector.broadcast %cst_78 : f32 to vector<8x1xf32>
    %cst_79 = arith.constant 0.000000e+00 : f32
    %148 = vector.broadcast %cst_79 : f32 to vector<8x32xf32>
    %149 = arith.subf %141, %146 : vector<8x1xf32>
    %150 = math.exp %149 : vector<8x1xf32>
    %151 = arith.addf %147, %150 : vector<8x1xf32>
    %c0_80 = arith.constant 0 : index
    %c192 = arith.constant 192 : index
    %152 = vector.load %arg17[%c0_80, %c192] : memref<16x384xf32, #tpu.memory_space<vmem>>, vector<8x32xf32>
    %153 = vector.broadcast %150 : vector<8x1xf32> to vector<8x32xf32>
    %154 = arith.mulf %153, %152 : vector<8x32xf32>
    %155 = arith.addf %148, %154 : vector<8x32xf32>
    %156 = arith.subf %145, %146 : vector<8x1xf32>
    %157 = math.exp %156 : vector<8x1xf32>
    %158 = arith.addf %151, %157 : vector<8x1xf32>
    %c8_81 = arith.constant 8 : index
    %c192_82 = arith.constant 192 : index
    %159 = vector.load %arg17[%c8_81, %c192_82] : memref<16x384xf32, #tpu.memory_space<vmem>>, vector<8x32xf32>
    %160 = vector.broadcast %157 : vector<8x1xf32> to vector<8x32xf32>
    %161 = arith.mulf %160, %159 : vector<8x32xf32>
    %162 = arith.addf %155, %161 : vector<8x32xf32>
    %163 = tpu.reciprocal %158 {approx = true} : vector<8x1xf32> -> vector<8x1xf32>
    %164 = vector.broadcast %163 : vector<8x1xf32> to vector<8x32xf32>
    %165 = arith.mulf %162, %164 : vector<8x32xf32>
    %c0_83 = arith.constant 0 : index
    %c64_84 = arith.constant 64 : index
    %166 = vector.load %arg18[%c0_83, %c64_84] : memref<16x128xf32, #tpu.memory_space<vmem>>, vector<8x32xf32>
    tpu.vector_store %arg18[%c0_83, %c64_84], %165 {strides = array<i32>} : memref<16x128xf32, #tpu.memory_space<vmem>>, vector<8x32xf32>,
    %c8_85 = arith.constant 8 : index
    %c320_86 = arith.constant 320 : index
    %167 = vector.load %arg17[%c8_85, %c320_86] : memref<16x384xf32, #tpu.memory_space<vmem>>, vector<8x32xf32>
    %c0_87 = arith.constant 0 : index
    %c64_88 = arith.constant 64 : index
    %168 = vector.load %arg17[%c0_87, %c64_88] : memref<16x384xf32, #tpu.memory_space<vmem>>, vector<8x32xf32>
    %169 = arith.mulf %167, %168 : vector<8x32xf32>
    %cst_89 = arith.constant dense<0.000000e+00> : vector<8xf32>
    %170 = vector.multi_reduction <add>, %169, %cst_89 [1] : vector<8x32xf32> to vector<8xf32>
    %171 = vector.shape_cast %170 : vector<8xf32> to vector<8x1xf32>
    %c8_90 = arith.constant 8 : index
    %c64_91 = arith.constant 64 : index
    %172 = vector.load %arg17[%c8_90, %c64_91] : memref<16x384xf32, #tpu.memory_space<vmem>>, vector<8x32xf32>
    %173 = arith.mulf %167, %172 : vector<8x32xf32>
    %cst_92 = arith.constant dense<0.000000e+00> : vector<8xf32>
    %174 = vector.multi_reduction <add>, %173, %cst_92 [1] : vector<8x32xf32> to vector<8xf32>
    %175 = vector.shape_cast %174 : vector<8xf32> to vector<8x1xf32>
    %176 = arith.maximumf %171, %175 : vector<8x1xf32>
    %cst_93 = arith.constant 0.000000e+00 : f32
    %177 = vector.broadcast %cst_93 : f32 to vector<8x1xf32>
    %cst_94 = arith.constant 0.000000e+00 : f32
    %178 = vector.broadcast %cst_94 : f32 to vector<8x32xf32>
    %179 = arith.subf %171, %176 : vector<8x1xf32>
    %180 = math.exp %179 : vector<8x1xf32>
    %181 = arith.addf %177, %180 : vector<8x1xf32>
    %c0_95 = arith.constant 0 : index
    %c192_96 = arith.constant 192 : index
    %182 = vector.load %arg17[%c0_95, %c192_96] : memref<16x384xf32, #tpu.memory_space<vmem>>, vector<8x32xf32>
    %183 = vector.broadcast %180 : vector<8x1xf32> to vector<8x32xf32>
    %184 = arith.mulf %183, %182 : vector<8x32xf32>
    %185 = arith.addf %178, %184 : vector<8x32xf32>
    %186 = arith.subf %175, %176 : vector<8x1xf32>
    %187 = math.exp %186 : vector<8x1xf32>
    %188 = arith.addf %181, %187 : vector<8x1xf32>
    %c8_97 = arith.constant 8 : index
    %c192_98 = arith.constant 192 : index
    %189 = vector.load %arg17[%c8_97, %c192_98] : memref<16x384xf32, #tpu.memory_space<vmem>>, vector<8x32xf32>
    %190 = vector.broadcast %187 : vector<8x1xf32> to vector<8x32xf32>
    %191 = arith.mulf %190, %189 : vector<8x32xf32>
    %192 = arith.addf %185, %191 : vector<8x32xf32>
    %193 = tpu.reciprocal %188 {approx = true} : vector<8x1xf32> -> vector<8x1xf32>
    %194 = vector.broadcast %193 : vector<8x1xf32> to vector<8x32xf32>
    %195 = arith.mulf %192, %194 : vector<8x32xf32>
    %c8_99 = arith.constant 8 : index
    %c64_100 = arith.constant 64 : index
    %196 = vector.load %arg18[%c8_99, %c64_100] : memref<16x128xf32, #tpu.memory_space<vmem>>, vector<8x32xf32>
    tpu.vector_store %arg18[%c8_99, %c64_100], %195 {strides = array<i32>} : memref<16x128xf32, #tpu.memory_space<vmem>>, vector<8x32xf32>,
    %c0_101 = arith.constant 0 : index
    %c352 = arith.constant 352 : index
    %197 = vector.load %arg17[%c0_101, %c352] : memref<16x384xf32, #tpu.memory_space<vmem>>, vector<8x32xf32>
    %c0_102 = arith.constant 0 : index
    %c96 = arith.constant 96 : index
    %198 = vector.load %arg17[%c0_102, %c96] : memref<16x384xf32, #tpu.memory_space<vmem>>, vector<8x32xf32>
    %199 = arith.mulf %197, %198 : vector<8x32xf32>
    %cst_103 = arith.constant dense<0.000000e+00> : vector<8xf32>
    %200 = vector.multi_reduction <add>, %199, %cst_103 [1] : vector<8x32xf32> to vector<8xf32>
    %201 = vector.shape_cast %200 : vector<8xf32> to vector<8x1xf32>
    %c8_104 = arith.constant 8 : index
    %c96_105 = arith.constant 96 : index
    %202 = vector.load %arg17[%c8_104, %c96_105] : memref<16x384xf32, #tpu.memory_space<vmem>>, vector<8x32xf32>
    %203 = arith.mulf %197, %202 : vector<8x32xf32>
    %cst_106 = arith.constant dense<0.000000e+00> : vector<8xf32>
    %204 = vector.multi_reduction <add>, %203, %cst_106 [1] : vector<8x32xf32> to vector<8xf32>
    %205 = vector.shape_cast %204 : vector<8xf32> to vector<8x1xf32>
    %206 = arith.maximumf %201, %205 : vector<8x1xf32>
    %cst_107 = arith.constant 0.000000e+00 : f32
    %207 = vector.broadcast %cst_107 : f32 to vector<8x1xf32>
    %cst_108 = arith.constant 0.000000e+00 : f32
    %208 = vector.broadcast %cst_108 : f32 to vector<8x32xf32>
    %209 = arith.subf %201, %206 : vector<8x1xf32>
    %210 = math.exp %209 : vector<8x1xf32>
    %211 = arith.addf %207, %210 : vector<8x1xf32>
    %c0_109 = arith.constant 0 : index
    %c224 = arith.constant 224 : index
    %212 = vector.load %arg17[%c0_109, %c224] : memref<16x384xf32, #tpu.memory_space<vmem>>, vector<8x32xf32>
    %213 = vector.broadcast %210 : vector<8x1xf32> to vector<8x32xf32>
    %214 = arith.mulf %213, %212 : vector<8x32xf32>
    %215 = arith.addf %208, %214 : vector<8x32xf32>
    %216 = arith.subf %205, %206 : vector<8x1xf32>
    %217 = math.exp %216 : vector<8x1xf32>
    %218 = arith.addf %211, %217 : vector<8x1xf32>
    %c8_110 = arith.constant 8 : index
    %c224_111 = arith.constant 224 : index
    %219 = vector.load %arg17[%c8_110, %c224_111] : memref<16x384xf32, #tpu.memory_space<vmem>>, vector<8x32xf32>
    %220 = vector.broadcast %217 : vector<8x1xf32> to vector<8x32xf32>
    %221 = arith.mulf %220, %219 : vector<8x32xf32>
    %222 = arith.addf %215, %221 : vector<8x32xf32>
    %223 = tpu.reciprocal %218 {approx = true} : vector<8x1xf32> -> vector<8x1xf32>
    %224 = vector.broadcast %223 : vector<8x1xf32> to vector<8x32xf32>
    %225 = arith.mulf %222, %224 : vector<8x32xf32>
    %c0_112 = arith.constant 0 : index
    %c96_113 = arith.constant 96 : index
    %226 = vector.load %arg18[%c0_112, %c96_113] : memref<16x128xf32, #tpu.memory_space<vmem>>, vector<8x32xf32>
    tpu.vector_store %arg18[%c0_112, %c96_113], %225 {strides = array<i32>} : memref<16x128xf32, #tpu.memory_space<vmem>>, vector<8x32xf32>,
    %c8_114 = arith.constant 8 : index
    %c352_115 = arith.constant 352 : index
    %227 = vector.load %arg17[%c8_114, %c352_115] : memref<16x384xf32, #tpu.memory_space<vmem>>, vector<8x32xf32>
    %c0_116 = arith.constant 0 : index
    %c96_117 = arith.constant 96 : index
    %228 = vector.load %arg17[%c0_116, %c96_117] : memref<16x384xf32, #tpu.memory_space<vmem>>, vector<8x32xf32>
    %229 = arith.mulf %227, %228 : vector<8x32xf32>
    %cst_118 = arith.constant dense<0.000000e+00> : vector<8xf32>
    %230 = vector.multi_reduction <add>, %229, %cst_118 [1] : vector<8x32xf32> to vector<8xf32>
    %231 = vector.shape_cast %230 : vector<8xf32> to vector<8x1xf32>
    %c8_119 = arith.constant 8 : index
    %c96_120 = arith.constant 96 : index
    %232 = vector.load %arg17[%c8_119, %c96_120] : memref<16x384xf32, #tpu.memory_space<vmem>>, vector<8x32xf32>
    %233 = arith.mulf %227, %232 : vector<8x32xf32>
    %cst_121 = arith.constant dense<0.000000e+00> : vector<8xf32>
    %234 = vector.multi_reduction <add>, %233, %cst_121 [1] : vector<8x32xf32> to vector<8xf32>
    %235 = vector.shape_cast %234 : vector<8xf32> to vector<8x1xf32>
    %236 = arith.maximumf %231, %235 : vector<8x1xf32>
    %cst_122 = arith.constant 0.000000e+00 : f32
    %237 = vector.broadcast %cst_122 : f32 to vector<8x1xf32>
    %cst_123 = arith.constant 0.000000e+00 : f32
    %238 = vector.broadcast %cst_123 : f32 to vector<8x32xf32>
    %239 = arith.subf %231, %236 : vector<8x1xf32>
    %240 = math.exp %239 : vector<8x1xf32>
    %241 = arith.addf %237, %240 : vector<8x1xf32>
    %c0_124 = arith.constant 0 : index
    %c224_125 = arith.constant 224 : index
    %242 = vector.load %arg17[%c0_124, %c224_125] : memref<16x384xf32, #tpu.memory_space<vmem>>, vector<8x32xf32>
    %243 = vector.broadcast %240 : vector<8x1xf32> to vector<8x32xf32>
    %244 = arith.mulf %243, %242 : vector<8x32xf32>
    %245 = arith.addf %238, %244 : vector<8x32xf32>
    %246 = arith.subf %235, %236 : vector<8x1xf32>
    %247 = math.exp %246 : vector<8x1xf32>
    %248 = arith.addf %241, %247 : vector<8x1xf32>
    %c8_126 = arith.constant 8 : index
    %c224_127 = arith.constant 224 : index
    %249 = vector.load %arg17[%c8_126, %c224_127] : memref<16x384xf32, #tpu.memory_space<vmem>>, vector<8x32xf32>
    %250 = vector.broadcast %247 : vector<8x1xf32> to vector<8x32xf32>
    %251 = arith.mulf %250, %249 : vector<8x32xf32>
    %252 = arith.addf %245, %251 : vector<8x32xf32>
    %253 = tpu.reciprocal %248 {approx = true} : vector<8x1xf32> -> vector<8x1xf32>
    %254 = vector.broadcast %253 : vector<8x1xf32> to vector<8x32xf32>
    %255 = arith.mulf %252, %254 : vector<8x32xf32>
    %c8_128 = arith.constant 8 : index
    %c96_129 = arith.constant 96 : index
    %256 = vector.load %arg18[%c8_128, %c96_129] : memref<16x128xf32, #tpu.memory_space<vmem>>, vector<8x32xf32>
    tpu.vector_store %arg18[%c8_128, %c96_129], %255 {strides = array<i32>} : memref<16x128xf32, #tpu.memory_space<vmem>>, vector<8x32xf32>,
    %c0_130 = arith.constant 0 : index
    %c0_131 = arith.constant 0 : index
    %257 = vector.load %arg18[%c0_130, %c0_131] : memref<16x128xf32, #tpu.memory_space<vmem>>, vector<16x128xf32>
    %258 = arith.truncf %257 : vector<16x128xf32> to vector<16x128xbf16>
    %c0_132 = arith.constant 0 : index
    %c0_133 = arith.constant 0 : index
    %259 = vector.load %arg5[%c0_132, %c0_133] : memref<128x128xbf16, #tpu.memory_space<vmem>>, vector<128x128xbf16>
    %cst_134 = arith.constant dense<0.000000e+00> : vector<16x128xf32>
    %260 = tpu.matmul %258, %259, %cst_134 {dimension_numbers = #tpu.dot_dimension_numbers<[1], [0], [0], [1], [0, 0, 1, 1], [], []>} : vector<16x128xbf16>, vector<128x128xbf16>, vector<16x128xf32> -> vector<16x128xf32>
    %c0_135 = arith.constant 0 : index
    %c0_136 = arith.constant 0 : index
    %261 = vector.load %arg6[%c0_135, %c0_136] : memref<1x128xf32, #tpu.memory_space<vmem>>, vector<1x128xf32>
    %262 = vector.broadcast %261 : vector<1x128xf32> to vector<16x128xf32>
    %263 = arith.addf %260, %262 : vector<16x128xf32>
    %264 = arith.truncf %263 : vector<16x128xf32> to vector<16x128xbf16>
    %c0_137 = arith.constant 0 : index
    %c0_138 = arith.constant 0 : index
    %265 = vector.load %arg7[%c0_137, %c0_138] : memref<128x256xbf16, #tpu.memory_space<vmem>>, vector<128x256xbf16>
    %cst_139 = arith.constant dense<0.000000e+00> : vector<16x256xf32>
    %266 = tpu.matmul %264, %265, %cst_139 {dimension_numbers = #tpu.dot_dimension_numbers<[1], [0], [0], [1], [0, 0, 1, 1], [], []>} : vector<16x128xbf16>, vector<128x256xbf16>, vector<16x256xf32> -> vector<16x256xf32>
    %c0_140 = arith.constant 0 : index
    %c0_141 = arith.constant 0 : index
    %267 = vector.load %arg8[%c0_140, %c0_141] : memref<128x256xbf16, #tpu.memory_space<vmem>>, vector<128x256xbf16>
    %cst_142 = arith.constant dense<0.000000e+00> : vector<16x256xf32>
    %268 = tpu.matmul %8, %267, %cst_142 {dimension_numbers = #tpu.dot_dimension_numbers<[1], [0], [0], [1], [0, 0, 1, 1], [], []>} : vector<16x128xbf16>, vector<128x256xbf16>, vector<16x256xf32> -> vector<16x256xf32>
    %269 = arith.addf %266, %268 : vector<16x256xf32>
    %c0_143 = arith.constant 0 : index
    %c0_144 = arith.constant 0 : index
    %270 = vector.load %arg9[%c0_143, %c0_144] : memref<1x256xf32, #tpu.memory_space<vmem>>, vector<1x256xf32>
    %271 = vector.broadcast %270 : vector<1x256xf32> to vector<16x256xf32>
    %272 = arith.addf %269, %271 : vector<16x256xf32>
    %273 = vector.extract_strided_slice %272 {offsets = [0, 0], sizes = [16, 128], strides = [1, 1]} : vector<16x256xf32> to vector<16x128xf32>
    %cst_145 = arith.constant 0.000000e+00 : f32
    %274 = vector.broadcast %cst_145 : f32 to vector<16x128xf32>
    %275 = arith.subf %274, %273 : vector<16x128xf32>
    %276 = math.exp %275 : vector<16x128xf32>
    %cst_146 = arith.constant 1.000000e+00 : f32
    %277 = vector.broadcast %cst_146 : f32 to vector<16x128xf32>
    %278 = arith.addf %277, %276 : vector<16x128xf32>
    %cst_147 = arith.constant 1.000000e+00 : f32
    %279 = vector.broadcast %cst_147 : f32 to vector<16x128xf32>
    %280 = arith.divf %279, %278 : vector<16x128xf32>
    %281 = vector.extract_strided_slice %272 {offsets = [0, 128], sizes = [16, 128], strides = [1, 1]} : vector<16x256xf32> to vector<16x128xf32>
    %282 = arith.mulf %280, %281 : vector<16x128xf32>
    %c0_148 = arith.constant 0 : index
    %c0_149 = arith.constant 0 : index
    %283 = vector.load %arg10[%c0_148, %c0_149] : memref<1x128xf32, #tpu.memory_space<vmem>>, vector<1x128xf32>
    %c0_150 = arith.constant 0 : index
    %c0_151 = arith.constant 0 : index
    %284 = vector.load %arg11[%c0_150, %c0_151] : memref<1x128xf32, #tpu.memory_space<vmem>>, vector<1x128xf32>
    %285 = arith.addf %282, %0 : vector<16x128xf32>
    %cst_152 = arith.constant dense<0.000000e+00> : vector<16xf32>
    %286 = vector.multi_reduction <add>, %285, %cst_152 [1] : vector<16x128xf32> to vector<16xf32>
    %287 = vector.shape_cast %286 : vector<16xf32> to vector<16x1xf32>
    %cst_153 = arith.constant 1.280000e+02 : f32
    %288 = vector.broadcast %cst_153 : f32 to vector<16x1xf32>
    %289 = arith.divf %287, %288 : vector<16x1xf32>
    %290 = vector.broadcast %289 : vector<16x1xf32> to vector<16x128xf32>
    %291 = arith.subf %285, %290 : vector<16x128xf32>
    %292 = arith.mulf %291, %291 : vector<16x128xf32>
    %cst_154 = arith.constant dense<0.000000e+00> : vector<16xf32>
    %293 = vector.multi_reduction <add>, %292, %cst_154 [1] : vector<16x128xf32> to vector<16xf32>
    %294 = vector.shape_cast %293 : vector<16xf32> to vector<16x1xf32>
    %cst_155 = arith.constant 1.280000e+02 : f32
    %295 = vector.broadcast %cst_155 : f32 to vector<16x1xf32>
    %296 = arith.divf %294, %295 : vector<16x1xf32>
    %cst_156 = arith.constant 9.99999974E-6 : f32
    %297 = vector.broadcast %cst_156 : f32 to vector<16x1xf32>
    %298 = arith.addf %296, %297 : vector<16x1xf32>
    %299 = math.rsqrt %298 : vector<16x1xf32>
    %300 = vector.broadcast %299 : vector<16x1xf32> to vector<16x128xf32>
    %301 = arith.mulf %291, %300 : vector<16x128xf32>
    %302 = vector.broadcast %283 : vector<1x128xf32> to vector<16x128xf32>
    %303 = arith.mulf %301, %302 : vector<16x128xf32>
    %304 = vector.broadcast %284 : vector<1x128xf32> to vector<16x128xf32>
    %305 = arith.addf %303, %304 : vector<16x128xf32>
    %306 = arith.truncf %305 : vector<16x128xf32> to vector<16x128xbf16>
    %c0_157 = arith.constant 0 : index
    %c0_158 = arith.constant 0 : index
    %307 = vector.load %arg12[%c0_157, %c0_158] : memref<128x512xbf16, #tpu.memory_space<vmem>>, vector<128x512xbf16>
    %cst_159 = arith.constant dense<0.000000e+00> : vector<16x512xf32>
    %308 = tpu.matmul %306, %307, %cst_159 {dimension_numbers = #tpu.dot_dimension_numbers<[1], [0], [0], [1], [0, 0, 1, 1], [], []>} : vector<16x128xbf16>, vector<128x512xbf16>, vector<16x512xf32> -> vector<16x512xf32>
    %c0_160 = arith.constant 0 : index
    %c0_161 = arith.constant 0 : index
    %309 = vector.load %arg13[%c0_160, %c0_161] : memref<1x512xf32, #tpu.memory_space<vmem>>, vector<1x512xf32>
    %310 = vector.broadcast %309 : vector<1x512xf32> to vector<16x512xf32>
    %311 = arith.addf %308, %310 : vector<16x512xf32>
    %cst_162 = arith.constant 5.000000e-01 : f32
    %312 = vector.broadcast %cst_162 : f32 to vector<16x512xf32>
    %313 = arith.mulf %312, %311 : vector<16x512xf32>
    %cst_163 = arith.constant 4.471500e-02 : f32
    %314 = vector.broadcast %cst_163 : f32 to vector<16x512xf32>
    %315 = arith.mulf %314, %311 : vector<16x512xf32>
    %316 = arith.mulf %315, %311 : vector<16x512xf32>
    %317 = arith.mulf %316, %311 : vector<16x512xf32>
    %318 = arith.addf %311, %317 : vector<16x512xf32>
    %cst_164 = arith.constant 0.797884583 : f32
    %319 = vector.broadcast %cst_164 : f32 to vector<16x512xf32>
    %320 = arith.mulf %319, %318 : vector<16x512xf32>
    %321 = math.tanh %320 : vector<16x512xf32>
    %cst_165 = arith.constant 1.000000e+00 : f32
    %322 = vector.broadcast %cst_165 : f32 to vector<16x512xf32>
    %323 = arith.addf %322, %321 : vector<16x512xf32>
    %324 = arith.mulf %313, %323 : vector<16x512xf32>
    %325 = arith.truncf %324 : vector<16x512xf32> to vector<16x512xbf16>
    %c0_166 = arith.constant 0 : index
    %c0_167 = arith.constant 0 : index
    %326 = vector.load %arg14[%c0_166, %c0_167] : memref<512x128xbf16, #tpu.memory_space<vmem>>, vector<512x128xbf16>
    %cst_168 = arith.constant dense<0.000000e+00> : vector<16x128xf32>
    %327 = tpu.matmul %325, %326, %cst_168 {dimension_numbers = #tpu.dot_dimension_numbers<[1], [0], [0], [1], [0, 0, 1, 1], [], []>} : vector<16x512xbf16>, vector<512x128xbf16>, vector<16x128xf32> -> vector<16x128xf32>
    %c0_169 = arith.constant 0 : index
    %c0_170 = arith.constant 0 : index
    %328 = vector.load %arg15[%c0_169, %c0_170] : memref<1x128xf32, #tpu.memory_space<vmem>>, vector<1x128xf32>
    %329 = vector.broadcast %328 : vector<1x128xf32> to vector<16x128xf32>
    %330 = arith.addf %327, %329 : vector<16x128xf32>
    %331 = arith.addf %330, %305 : vector<16x128xf32>
    %cst_171 = arith.constant dense<0.000000e+00> : vector<16xf32>
    %332 = vector.multi_reduction <add>, %331, %cst_171 [1] : vector<16x128xf32> to vector<16xf32>
    %333 = vector.shape_cast %332 : vector<16xf32> to vector<16x1xf32>
    %cst_172 = arith.constant 1.280000e+02 : f32
    %334 = vector.broadcast %cst_172 : f32 to vector<16x1xf32>
    %335 = arith.divf %333, %334 : vector<16x1xf32>
    %336 = vector.broadcast %335 : vector<16x1xf32> to vector<16x128xf32>
    %337 = arith.subf %331, %336 : vector<16x128xf32>
    %338 = arith.mulf %337, %337 : vector<16x128xf32>
    %cst_173 = arith.constant dense<0.000000e+00> : vector<16xf32>
    %339 = vector.multi_reduction <add>, %338, %cst_173 [1] : vector<16x128xf32> to vector<16xf32>
    %340 = vector.shape_cast %339 : vector<16xf32> to vector<16x1xf32>
    %cst_174 = arith.constant 1.280000e+02 : f32
    %341 = vector.broadcast %cst_174 : f32 to vector<16x1xf32>
    %342 = arith.divf %340, %341 : vector<16x1xf32>
    %cst_175 = arith.constant 9.99999974E-6 : f32
    %343 = vector.broadcast %cst_175 : f32 to vector<16x1xf32>
    %344 = arith.addf %342, %343 : vector<16x1xf32>
    %345 = math.rsqrt %344 : vector<16x1xf32>
    %346 = vector.broadcast %345 : vector<16x1xf32> to vector<16x128xf32>
    %347 = arith.mulf %337, %346 : vector<16x128xf32>
    %348 = vector.broadcast %283 : vector<1x128xf32> to vector<16x128xf32>
    %349 = arith.mulf %347, %348 : vector<16x128xf32>
    %350 = vector.broadcast %284 : vector<1x128xf32> to vector<16x128xf32>
    %351 = arith.addf %349, %350 : vector<16x128xf32>
    %352 = arith.addf %351, %0 : vector<16x128xf32>
    %c0_176 = arith.constant 0 : index
    %c0_177 = arith.constant 0 : index
    %353 = vector.load %arg16[%c0_176, %c0_177] : memref<16x128xf32, #tpu.memory_space<vmem>>, vector<16x128xf32>
    tpu.vector_store %arg16[%c0_176, %c0_177], %352 {strides = array<i32>} : memref<16x128xf32, #tpu.memory_space<vmem>>, vector<16x128xf32>,
    return
  }
}

</mosaic_0001>

<llo_original>
// kernel: transformer_forward.2
$region0: #{transformer_forward.2}
  #allocation0 [shape = 'u32[]', space=smem, size = 0x4, offset = 0x4, fixed_abs, tag = 'smem constant byte address 0x4 - core index']
  #allocation1 [shape = 'u32[144,128]{1,0:T(1,128)}', space=vmem, size = 0x12000, scoped, tag = 'internal scratch']
  #allocation2 [shape = 'f32[16,384]{1,0:T(8,128)}', space=vmem, size = 0x6000, scoped, tag = 'scratch operand']
  #allocation3 [shape = 'f32[16,128]{1,0:T(8,128)}', space=vmem, size = 0x2000, scoped, tag = 'scratch operand']
  %s0 = inlined_call_operand.hbm [shape: f32[16,128], index: 0, kind: input, shape index: {}]
  %s1 = inlined_call_operand.hbm [shape: bf16[128,384], index: 1, kind: input, shape index: {}]
  %s2 = inlined_call_operand.vmem [shape: f32[1,384], index: 2, kind: input, shape index: {}]
  %s3 = inlined_call_operand.hbm [shape: bf16[128,128], index: 3, kind: input, shape index: {}]
  %s4 = inlined_call_operand.vmem [shape: f32[1,128], index: 4, kind: input, shape index: {}]
  %s5 = inlined_call_operand.hbm [shape: bf16[128,128], index: 5, kind: input, shape index: {}]
  %s6 = inlined_call_operand.vmem [shape: f32[1,128], index: 6, kind: input, shape index: {}]
  %s7 = inlined_call_operand.hbm [shape: bf16[128,256], index: 7, kind: input, shape index: {}]
  %s8 = inlined_call_operand.hbm [shape: bf16[128,256], index: 8, kind: input, shape index: {}]
  %s9 = inlined_call_operand.vmem [shape: f32[1,256], index: 9, kind: input, shape index: {}]
  %s10 = inlined_call_operand.vmem [shape: f32[1,128], index: 10, kind: input, shape index: {}]
  %s11 = inlined_call_operand.vmem [shape: f32[1,128], index: 11, kind: input, shape index: {}]
  %s12 = inlined_call_operand.hbm [shape: bf16[128,512], index: 12, kind: input, shape index: {}]
  %s13 = inlined_call_operand.vmem [shape: f32[1,512], index: 13, kind: input, shape index: {}]
  %s14 = inlined_call_operand.hbm [shape: bf16[512,128], index: 14, kind: input, shape index: {}]
  %s15 = inlined_call_operand.hbm [shape: f32[1,128], index: 15, kind: input, shape index: {}]
  %s16 = inlined_call_operand.vmem [shape: f32[16,128], index: 16, kind: output, shape index: {}]
  %s17 = sld [smem:[#allocation0]]
  $region110: #{transformer_forward.2} parent=0
    _
  %s19 = ssub.s32 1, %s17
  %s20 = scalar_select 0, %s19, %s17
  $region1: #{transformer_forward.2} parent=0
    #allocation4 [shape = 'u8[8192]{0}', space=vmem, size = 0x2000, scoped, tag = 'input window, operand 0, single buffered']
    #allocation5 [shape = 's32[1]{0}', space=sflag, size = 0x4, scoped, tag = 'scoped memory for transformer_forward.2']
    #allocation6 [shape = 'u8[98304]{0}', space=vmem, size = 0x18000, scoped, tag = 'input window, operand 1, single buffered']
    #allocation7 [shape = 's32[1]{0}', space=sflag, size = 0x4, scoped, tag = 'scoped memory for transformer_forward.2']
    #allocation8 [shape = 'u8[32768]{0}', space=vmem, size = 0x8000, scoped, tag = 'input window, operand 3, single buffered']
    #allocation9 [shape = 'u8[32768]{0}', space=vmem, size = 0x8000, scoped, tag = 'input window, operand 5, single buffered']
    #allocation10 [shape = 's32[1]{0}', space=sflag, size = 0x4, scoped, tag = 'scoped memory for transformer_forward.2']
    #allocation11 [shape = 'u8[65536]{0}', space=vmem, size = 0x10000, scoped, tag = 'input window, operand 7, single buffered']
    #allocation12 [shape = 'u8[65536]{0}', space=vmem, size = 0x10000, scoped, tag = 'input window, operand 8, single buffered']
    #allocation13 [shape = 's32[1]{0}', space=sflag, size = 0x4, scoped, tag = 'scoped memory for transformer_forward.2']
    #allocation14 [shape = 'u8[131072]{0}', space=vmem, size = 0x20000, scoped, tag = 'input window, operand 12, single buffered']
    #allocation15 [shape = 'u8[131072]{0}', space=vmem, size = 0x20000, scoped, tag = 'input window, operand 14, single buffered']
    #allocation16 [shape = 's32[1]{0}', space=sflag, size = 0x4, scoped, tag = 'scoped memory for transformer_forward.2']
    #allocation17 [shape = 'u8[512]{0}', space=vmem, size = 0x400, scoped, tag = 'input window, operand 15, single buffered']
    %21 = vsyncpa [#allocation5], 0
    %22 = vsyncpa [#allocation7], 0
    %23 = vsyncpa [#allocation10], 0
    %24 = vsyncpa [#allocation13], 0
    %25 = vsyncpa [#allocation16], 0
    // Predicated region
    $region2: #{transformer_forward.2} parent=1 // pred_check
      _
    $region3: #{transformer_forward.2} parent=1 // pred_check_branch
      %27 = sbr.rel (0) target = $region5
    $region4: #{transformer_forward.2} parent=1 // pred_region
      %s29 = ssub.s32 256, 256
      %30 = vsyncadd [#allocation5], %s29
      %s31 = sshll.u32 [#allocation4], 4
      %s32 = int_to_ptr.vmem [resolvable:$true] %s31
      %37 = dma.hbm_to_vmem [thread:$0]  %s0, 256, %s32, [#allocation5], 128, 128, 8
    $region5: #{transformer_forward.2} parent=1 // pred_fallthru
      _
    // Predicated region
    $region6: #{transformer_forward.2} parent=1 // pred_check
      _
    $region7: #{transformer_forward.2} parent=1 // pred_check_branch
      %39 = sbr.rel (0) target = $region9
    $region8: #{transformer_forward.2} parent=1 // pred_region
      %s41 = ssub.s32 3072, 3072
      %42 = vsyncadd [#allocation7], %s41
      %s43 = sshll.u32 [#allocation6], 4
      %s44 = int_to_ptr.vmem [resolvable:$true] %s43
      %49 = dma.hbm_to_vmem [thread:$0]  %s1, 3072, %s44, [#allocation7], 192, 192, 12
    $region9: #{transformer_forward.2} parent=1 // pred_fallthru
      _
    // Predicated region
    $region10: #{transformer_forward.2} parent=1 // pred_check
      _
    $region11: #{transformer_forward.2} parent=1 // pred_check_branch
      %51 = sbr.rel (0) target = $region13
    $region12: #{transformer_forward.2} parent=1 // pred_region
      _
    $region13: #{transformer_forward.2} parent=1 // pred_fallthru
      _
    // Predicated region
    $region14: #{transformer_forward.2} parent=1 // pred_check
      _
    $region15: #{transformer_forward.2} parent=1 // pred_check_branch
      %53 = sbr.rel (0) target = $region17
    $region16: #{transformer_forward.2} parent=1 // pred_region
      %s55 = ssub.s32 1024, 1024
      %56 = vsyncadd [#allocation7], %s55
      %s57 = sshll.u32 [#allocation8], 4
      %s58 = int_to_ptr.vmem [resolvable:$true] %s57
      %63 = dma.hbm_to_vmem [thread:$0]  %s3, 1024, %s58, [#allocation7], 64, 64, 4
    $region17: #{transformer_forward.2} parent=1 // pred_fallthru
      _
    // Predicated region
    $region18: #{transformer_forward.2} parent=1 // pred_check
      _
    $region19: #{transformer_forward.2} parent=1 // pred_check_branch
      %65 = sbr.rel (0) target = $region21
    $region20: #{transformer_forward.2} parent=1 // pred_region
      _
    $region21: #{transformer_forward.2} parent=1 // pred_fallthru
      _
    // Predicated region
    $region22: #{transformer_forward.2} parent=1 // pred_check
      _
    $region23: #{transformer_forward.2} parent=1 // pred_check_branch
      %67 = sbr.rel (0) target = $region25
    $region24: #{transformer_forward.2} parent=1 // pred_region
      %s69 = ssub.s32 1024, 1024
      %70 = vsyncadd [#allocation10], %s69
      %s71 = sshll.u32 [#allocation9], 4
      %s72 = int_to_ptr.vmem [resolvable:$true] %s71
      %77 = dma.hbm_to_vmem [thread:$0]  %s5, 1024, %s72, [#allocation10], 64, 64, 4
    $region25: #{transformer_forward.2} parent=1 // pred_fallthru
      _
    // Predicated region
    $region26: #{transformer_forward.2} parent=1 // pred_check
      _
    $region27: #{transformer_forward.2} parent=1 // pred_check_branch
      %79 = sbr.rel (0) target = $region29
    $region28: #{transformer_forward.2} parent=1 // pred_region
      _
    $region29: #{transformer_forward.2} parent=1 // pred_fallthru
      _
    // Predicated region
    $region30: #{transformer_forward.2} parent=1 // pred_check
      _
    $region31: #{transformer_forward.2} parent=1 // pred_check_branch
      %81 = sbr.rel (0) target = $region33
    $region32: #{transformer_forward.2} parent=1 // pred_region
      %s83 = ssub.s32 2048, 2048
      %84 = vsyncadd [#allocation10], %s83
      %s85 = sshll.u32 [#allocation11], 4
      %s86 = int_to_ptr.vmem [resolvable:$true] %s85
      %91 = dma.hbm_to_vmem [thread:$0]  %s7, 2048, %s86, [#allocation10], 128, 128, 8
    $region33: #{transformer_forward.2} parent=1 // pred_fallthru
      _
    // Predicated region
    $region34: #{transformer_forward.2} parent=1 // pred_check
      _
    $region35: #{transformer_forward.2} parent=1 // pred_check_branch
      %93 = sbr.rel (0) target = $region37
    $region36: #{transformer_forward.2} parent=1 // pred_region
      %s95 = ssub.s32 2048, 2048
      %96 = vsyncadd [#allocation13], %s95
      %s97 = sshll.u32 [#allocation12], 4
      %s98 = int_to_ptr.vmem [resolvable:$true] %s97
      %103 = dma.hbm_to_vmem [thread:$0]  %s8, 2048, %s98, [#allocation13], 128, 128, 8
    $region37: #{transformer_forward.2} parent=1 // pred_fallthru
      _
    // Predicated region
    $region38: #{transformer_forward.2} parent=1 // pred_check
      _
    $region39: #{transformer_forward.2} parent=1 // pred_check_branch
      %105 = sbr.rel (0) target = $region41
    $region40: #{transformer_forward.2} parent=1 // pred_region
      _
    $region41: #{transformer_forward.2} parent=1 // pred_fallthru
      _
    // Predicated region
    $region42: #{transformer_forward.2} parent=1 // pred_check
      _
    $region43: #{transformer_forward.2} parent=1 // pred_check_branch
      %107 = sbr.rel (0) target = $region45
    $region44: #{transformer_forward.2} parent=1 // pred_region
      _
    $region45: #{transformer_forward.2} parent=1 // pred_fallthru
      _
    // Predicated region
    $region46: #{transformer_forward.2} parent=1 // pred_check
      _
    $region47: #{transformer_forward.2} parent=1 // pred_check_branch
      %109 = sbr.rel (0) target = $region49
    $region48: #{transformer_forward.2} parent=1 // pred_region
      _
    $region49: #{transformer_forward.2} parent=1 // pred_fallthru
      _
    // Predicated region
    $region50: #{transformer_forward.2} parent=1 // pred_check
      _
    $region51: #{transformer_forward.2} parent=1 // pred_check_branch
      %111 = sbr.rel (0) target = $region53
    $region52: #{transformer_forward.2} parent=1 // pred_region
      %s113 = ssub.s32 4096, 4096
      %114 = vsyncadd [#allocation13], %s113
      %s115 = sshll.u32 [#allocation14], 4
      %s116 = int_to_ptr.vmem [resolvable:$true] %s115
      %121 = dma.hbm_to_vmem [thread:$0]  %s12, 4096, %s116, [#allocation13], 256, 256, 16
    $region53: #{transformer_forward.2} parent=1 // pred_fallthru
      _
    // Predicated region
    $region54: #{transformer_forward.2} parent=1 // pred_check
      _
    $region55: #{transformer_forward.2} parent=1 // pred_check_branch
      %123 = sbr.rel (0) target = $region57
    $region56: #{transformer_forward.2} parent=1 // pred_region
      _
    $region57: #{transformer_forward.2} parent=1 // pred_fallthru
      _
    // Predicated region
    $region58: #{transformer_forward.2} parent=1 // pred_check
      _
    $region59: #{transformer_forward.2} parent=1 // pred_check_branch
      %125 = sbr.rel (0) target = $region61
    $region60: #{transformer_forward.2} parent=1 // pred_region
      %s127 = ssub.s32 4096, 4096
      %128 = vsyncadd [#allocation16], %s127
      %s129 = sshll.u32 [#allocation15], 4
      %s130 = int_to_ptr.vmem [resolvable:$true] %s129
      %135 = dma.hbm_to_vmem [thread:$0]  %s14, 4096, %s130, [#allocation16], 64, 64, 4
    $region61: #{transformer_forward.2} parent=1 // pred_fallthru
      _
    // Predicated region
    $region62: #{transformer_forward.2} parent=1 // pred_check
      _
    $region63: #{transformer_forward.2} parent=1 // pred_check_branch
      %137 = sbr.rel (0) target = $region65
    $region64: #{transformer_forward.2} parent=1 // pred_region
      %s139 = ssub.s32 16, 16
      %140 = vsyncadd [#allocation16], %s139
      %s142 = sshll.u32 [#allocation17], 4
      %s143 = int_to_ptr.vmem [resolvable:$true] %s142
      %145 = dma.hbm_to_vmem [thread:$0]  %s15, 16, %s143, [#allocation16]
    $region65: #{transformer_forward.2} parent=1 // pred_fallthru
      _
    // Predicated region
    $region66: #{transformer_forward.2} parent=1 // pred_check
      _
    $region67: #{transformer_forward.2} parent=1 // pred_check_branch
      %147 = sbr.rel (0) target = $region69
    $region68: #{transformer_forward.2} parent=1 // pred_region
      %148 = dma.done [#allocation5], 256
    $region69: #{transformer_forward.2} parent=1 // pred_fallthru
      _
    // Predicated region
    $region70: #{transformer_forward.2} parent=1 // pred_check
      _
    $region71: #{transformer_forward.2} parent=1 // pred_check_branch
      %150 = sbr.rel (0) target = $region73
    $region72: #{transformer_forward.2} parent=1 // pred_region
      %151 = dma.done [#allocation7], 3072
    $region73: #{transformer_forward.2} parent=1 // pred_fallthru
      _
    // Predicated region
    $region74: #{transformer_forward.2} parent=1 // pred_check
      _
    $region75: #{transformer_forward.2} parent=1 // pred_check_branch
      %153 = sbr.rel (0) target = $region77
    $region76: #{transformer_forward.2} parent=1 // pred_region
      %154 = dma.done [#allocation7], 1024
    $region77: #{transformer_forward.2} parent=1 // pred_fallthru
      _
    // Predicated region
    $region78: #{transformer_forward.2} parent=1 // pred_check
      _
    $region79: #{transformer_forward.2} parent=1 // pred_check_branch
      %156 = sbr.rel (0) target = $region81
    $region80: #{transformer_forward.2} parent=1 // pred_region
      %157 = dma.done [#allocation10], 1024
    $region81: #{transformer_forward.2} parent=1 // pred_fallthru
      _
    // Predicated region
    $region82: #{transformer_forward.2} parent=1 // pred_check
      _
    $region83: #{transformer_forward.2} parent=1 // pred_check_branch
      %159 = sbr.rel (0) target = $region85
    $region84: #{transformer_forward.2} parent=1 // pred_region
      %160 = dma.done [#allocation10], 2048
    $region85: #{transformer_forward.2} parent=1 // pred_fallthru
      _
    // Predicated region
    $region86: #{transformer_forward.2} parent=1 // pred_check
      _
    $region87: #{transformer_forward.2} parent=1 // pred_check_branch
      %162 = sbr.rel (0) target = $region89
    $region88: #{transformer_forward.2} parent=1 // pred_region
      %163 = dma.done [#allocation13], 2048
    $region89: #{transformer_forward.2} parent=1 // pred_fallthru
      _
    // Predicated region
    $region90: #{transformer_forward.2} parent=1 // pred_check
      _
    $region91: #{transformer_forward.2} parent=1 // pred_check_branch
      %165 = sbr.rel (0) target = $region93
    $region92: #{transformer_forward.2} parent=1 // pred_region
      %166 = dma.done [#allocation13], 4096
    $region93: #{transformer_forward.2} parent=1 // pred_fallthru
      _
    // Predicated region
    $region94: #{transformer_forward.2} parent=1 // pred_check
      _
    $region95: #{transformer_forward.2} parent=1 // pred_check_branch
      %168 = sbr.rel (0) target = $region97
    $region96: #{transformer_forward.2} parent=1 // pred_region
      %169 = dma.done [#allocation16], 4096
    $region97: #{transformer_forward.2} parent=1 // pred_fallthru
      _
    // Predicated region
    $region98: #{transformer_forward.2} parent=1 // pred_check
      _
    $region99: #{transformer_forward.2} parent=1 // pred_check_branch
      %171 = sbr.rel (0) target = $region101
    $region100: #{transformer_forward.2} parent=1 // pred_region
      %172 = dma.done [#allocation16], 16
    $region101: #{transformer_forward.2} parent=1 // pred_fallthru
      _
    %v174 = vld [vmem:[#allocation4] sm:$0xff]
    %v175 = vld [vmem:[#allocation4 + $0x8] sm:$0xff]
    %v176 = vpack.c.bf16 %v175, %v174
    %v177 = vld [vmem:[#allocation6] sm:$0xff]
    %v178 = vld [vmem:[#allocation6 + $0x8] sm:$0xf]
    %v179 = vld [vmem:[#allocation6 + $0xc] sm:$0xff]
    %v180 = vld [vmem:[#allocation6 + $0x14] sm:$0xf]
    %v181 = vld [vmem:[#allocation6 + $0x18] sm:$0xff]
    %v182 = vld [vmem:[#allocation6 + $0x20] sm:$0xf]
    %v183 = vld [vmem:[#allocation6 + $0x24] sm:$0xff]
    %v184 = vld [vmem:[#allocation6 + $0x2c] sm:$0xf]
    %v185 = vld [vmem:[#allocation6 + $0x30] sm:$0xff]
    %v186 = vld [vmem:[#allocation6 + $0x38] sm:$0xf]
    %v187 = vld [vmem:[#allocation6 + $0x3c] sm:$0xff]
    %v188 = vld [vmem:[#allocation6 + $0x44] sm:$0xf]
    %v189 = vld [vmem:[#allocation6 + $0x48] sm:$0xff]
    %v190 = vld [vmem:[#allocation6 + $0x50] sm:$0xf]
    %v191 = vld [vmem:[#allocation6 + $0x54] sm:$0xff]
    %v192 = vld [vmem:[#allocation6 + $0x5c] sm:$0xf]
    %v193 = vld [vmem:[#allocation6 + $0x60] sm:$0xff]
    %v194 = vld [vmem:[#allocation6 + $0x68] sm:$0xf]
    %v195 = vld [vmem:[#allocation6 + $0x6c] sm:$0xff]
    %v196 = vld [vmem:[#allocation6 + $0x74] sm:$0xf]
    %v197 = vld [vmem:[#allocation6 + $0x78] sm:$0xff]
    %v198 = vld [vmem:[#allocation6 + $0x80] sm:$0xf]
    %v199 = vld [vmem:[#allocation6 + $0x84] sm:$0xff]
    %v200 = vld [vmem:[#allocation6 + $0x8c] sm:$0xf]
    %v201 = vld [vmem:[#allocation6 + $0x90] sm:$0xff]
    %v202 = vld [vmem:[#allocation6 + $0x98] sm:$0xf]
    %v203 = vld [vmem:[#allocation6 + $0x9c] sm:$0xff]
    %v204 = vld [vmem:[#allocation6 + $0xa4] sm:$0xf]
    %v205 = vld [vmem:[#allocation6 + $0xa8] sm:$0xff]
    %v206 = vld [vmem:[#allocation6 + $0xb0] sm:$0xf]
    %v207 = vld [vmem:[#allocation6 + $0xb4] sm:$0xff]
    %v208 = vld [vmem:[#allocation6 + $0xbc] sm:$0xf]
    %v209 = vld [vmem:[%s2] sm:$0x7]
    %v211 = vlaneseq
    %v212 = vshrl.u32 %v211, 7
    %v213 = vsub.s32 0, %v212
    %v214 = vrot.slane %v209, %v213
    %v215 = vlaneseq
    %v216 = vshrl.u32 %v215, 7
    %v217 = vsub.s32 1, %v216
    %v218 = vrot.slane %v209, %v217
    %v219 = vlaneseq
    %v220 = vshrl.u32 %v219, 7
    %v221 = vsub.s32 2, %v220
    %v222 = vrot.slane %v209, %v221
    %v258 = vunpack.c.l.b16 %v177
    %v259 = vunpack.c.h.b16 %v177
    %v260 = vunpack.c.l.b16 %v178
    %v261 = vunpack.c.l.b16 %v179
    %v262 = vunpack.c.h.b16 %v179
    %v263 = vunpack.c.l.b16 %v180
    %v264 = vunpack.c.l.b16 %v181
    %v265 = vunpack.c.h.b16 %v181
    %v266 = vunpack.c.l.b16 %v182
    %v267 = vunpack.c.l.b16 %v183
    %v268 = vunpack.c.h.b16 %v183
    %v269 = vunpack.c.l.b16 %v184
    %v270 = vunpack.c.l.b16 %v185
    %v271 = vunpack.c.h.b16 %v185
    %v272 = vunpack.c.l.b16 %v186
    %v273 = vunpack.c.l.b16 %v187
    %v274 = vunpack.c.h.b16 %v187
    %v275 = vunpack.c.l.b16 %v188
    %v276 = vunpack.c.l.b16 %v189
    %v277 = vunpack.c.h.b16 %v189
    %v278 = vunpack.c.l.b16 %v190
    %v279 = vunpack.c.l.b16 %v191
    %v280 = vunpack.c.h.b16 %v191
    %v281 = vunpack.c.l.b16 %v192
    %v282 = vunpack.c.l.b16 %v193
    %v283 = vunpack.c.h.b16 %v193
    %v284 = vunpack.c.l.b16 %v194
    %v285 = vunpack.c.l.b16 %v195
    %v286 = vunpack.c.h.b16 %v195
    %v287 = vunpack.c.l.b16 %v196
    %v288 = vunpack.c.l.b16 %v197
    %v289 = vunpack.c.h.b16 %v197
    %v290 = vunpack.c.l.b16 %v198
    %v291 = vunpack.c.l.b16 %v199
    %v292 = vunpack.c.h.b16 %v199
    %v293 = vunpack.c.l.b16 %v200
    %v294 = vunpack.c.l.b16 %v201
    %v295 = vunpack.c.h.b16 %v201
    %v296 = vunpack.c.l.b16 %v202
    %v297 = vunpack.c.l.b16 %v203
    %v298 = vunpack.c.h.b16 %v203
    %v299 = vunpack.c.l.b16 %v204
    %v300 = vunpack.c.l.b16 %v205
    %v301 = vunpack.c.h.b16 %v205
    %v302 = vunpack.c.l.b16 %v206
    %v303 = vunpack.c.l.b16 %v207
    %v304 = vunpack.c.h.b16 %v207
    %v305 = vunpack.c.l.b16 %v208
    %v306 = vpack.c.b16 %v261, %v258
    %v307 = vpack.c.b16 %v262, %v259
    %v308 = vpack.c.b16 %v263, %v260
    %v309 = vpack.c.b16 %v267, %v264
    %v310 = vpack.c.b16 %v268, %v265
    %v311 = vpack.c.b16 %v269, %v266
    %v312 = vpack.c.b16 %v273, %v270
    %v313 = vpack.c.b16 %v274, %v271
    %v314 = vpack.c.b16 %v275, %v272
    %v315 = vpack.c.b16 %v279, %v276
    %v316 = vpack.c.b16 %v280, %v277
    %v317 = vpack.c.b16 %v281, %v278
    %v318 = vpack.c.b16 %v285, %v282
    %v319 = vpack.c.b16 %v286, %v283
    %v320 = vpack.c.b16 %v287, %v284
    %v321 = vpack.c.b16 %v291, %v288
    %v322 = vpack.c.b16 %v292, %v289
    %v323 = vpack.c.b16 %v293, %v290
    %v324 = vpack.c.b16 %v297, %v294
    %v325 = vpack.c.b16 %v298, %v295
    %v326 = vpack.c.b16 %v299, %v296
    %v327 = vpack.c.b16 %v303, %v300
    %v328 = vpack.c.b16 %v304, %v301
    %v329 = vpack.c.b16 %v305, %v302
    %354 = vmatprep.subr.bf16.mxu0 %v307
    %355 = vmatpush1.bf16.msra.mxu0 %v306
    %356 = vmatprep.subr.bf16.mxu0 %v310
    %357 = vmatpush1.bf16.msra.mxu0 %v309
    %358 = vmatprep.subr.bf16.mxu0 %v313
    %359 = vmatpush1.bf16.msra.mxu0 %v312
    %360 = vmatprep.subr.bf16.mxu0 %v316
    %361 = vmatpush1.bf16.msra.mxu0 %v315
    %362 = vmatprep.subr.bf16.mxu0 %v319
    %363 = vmatpush1.bf16.msra.mxu0 %v318
    %364 = vmatprep.subr.bf16.mxu0 %v322
    %365 = vmatpush1.bf16.msra.mxu0 %v321
    %366 = vmatprep.subr.bf16.mxu0 %v325
    %367 = vmatpush1.bf16.msra.mxu0 %v324
    %368 = vmatprep.subr.bf16.mxu0 %v328
    %369 = vmatpush1.bf16.msra.mxu0 %v327
    %370 = vmatprep.subr.bf16.mxu0 0
    %371 = vmatpush1.bf16.msra.mxu0 0
    %372 = vmatprep.subr.bf16.mxu0 0
    %373 = vmatpush1.bf16.msra.mxu0 0
    %374 = vmatprep.subr.bf16.mxu0 0
    %375 = vmatpush1.bf16.msra.mxu0 0
    %376 = vmatprep.subr.bf16.mxu0 0
    %377 = vmatpush1.bf16.msra.mxu0 0
    %378 = vmatprep.subr.bf16.mxu0 0
    %379 = vmatpush1.bf16.msra.mxu0 0
    %380 = vmatprep.subr.bf16.mxu0 0
    %381 = vmatpush1.bf16.msra.mxu0 0
    %382 = vmatprep.subr.bf16.mxu0 0
    %383 = vmatpush1.bf16.msra.mxu0 0
    %384 = vmatprep.subr.bf16.mxu0 0
    %385 = vmatpush1.bf16.msra.mxu0 0
    %386 = vmatprep.mubr.bf16.mxu0 0
    %387 = vmatmul.mubr.bf16.gmra.mrb[0].mxu0 %v176
    %v388 = vpop.f32.mrb[0].mxu0
    %v389 = vadd.f32 %v214, %v388
    %v390 = vpop.f32.mrb[0].mxu0
    %v391 = vadd.f32 %v218, %v390
    %v392 = vpop.f32.mrb[0].mxu0
    %v393 = vadd.f32 %v214, %v392
    %v394 = vpop.f32.mrb[0].mxu0
    %v395 = vadd.f32 %v218, %v394
    %396 = vdwg.mxu0
    %397 = vmatprep.subr.bf16.mxu0 0
    %398 = vmatpush1.bf16.msra.mxu0 %v308
    %399 = vmatprep.subr.bf16.mxu0 0
    %400 = vmatpush1.bf16.msra.mxu0 %v311
    %401 = vmatprep.subr.bf16.mxu0 0
    %402 = vmatpush1.bf16.msra.mxu0 %v314
    %403 = vmatprep.subr.bf16.mxu0 0
    %404 = vmatpush1.bf16.msra.mxu0 %v317
    %405 = vmatprep.subr.bf16.mxu0 0
    %406 = vmatpush1.bf16.msra.mxu0 %v320
    %407 = vmatprep.subr.bf16.mxu0 0
    %408 = vmatpush1.bf16.msra.mxu0 %v323
    %409 = vmatprep.subr.bf16.mxu0 0
    %410 = vmatpush1.bf16.msra.mxu0 %v326
    %411 = vmatprep.subr.bf16.mxu0 0
    %412 = vmatpush1.bf16.msra.mxu0 %v329
    %413 = vmatprep.subr.bf16.mxu0 0
    %414 = vmatpush1.bf16.msra.mxu0 0
    %415 = vmatprep.subr.bf16.mxu0 0
    %416 = vmatpush1.bf16.msra.mxu0 0
    %417 = vmatprep.subr.bf16.mxu0 0
    %418 = vmatpush1.bf16.msra.mxu0 0
    %419 = vmatprep.subr.bf16.mxu0 0
    %420 = vmatpush1.bf16.msra.mxu0 0
    %421 = vmatprep.subr.bf16.mxu0 0
    %422 = vmatpush1.bf16.msra.mxu0 0
    %423 = vmatprep.subr.bf16.mxu0 0
    %424 = vmatpush1.bf16.msra.mxu0 0
    %425 = vmatprep.subr.bf16.mxu0 0
    %426 = vmatpush1.bf16.msra.mxu0 0
    %427 = vmatprep.subr.bf16.mxu0 0
    %428 = vmatpush1.bf16.msra.mxu0 0
    %429 = vmatprep.mubr.bf16.mxu0 0
    %430 = vmatmul.mubr.bf16.gmra.mrb[0].mxu0 %v176
    %v431 = vpop.f32.mrb[0].mxu0
    %v432 = vadd.f32 %v222, %v431
    %v433 = vpop.f32.mrb[0].mxu0
    %v434 = vpop.f32.mrb[0].mxu0
    %v435 = vadd.f32 %v222, %v434
    %v436 = vpop.f32.mrb[0].mxu0
    %437 = vdwg.mxu0
    %v438 = vpack.c.bf16 %v435, %v432
    %v439 = vld [vmem:[#allocation8] sm:$0xf]
    %v440 = vld [vmem:[#allocation8 + $0x4] sm:$0xf]
    %v441 = vld [vmem:[#allocation8 + $0x8] sm:$0xf]
    %v442 = vld [vmem:[#allocation8 + $0xc] sm:$0xf]
    %v443 = vld [vmem:[#allocation8 + $0x10] sm:$0xf]
    %v444 = vld [vmem:[#allocation8 + $0x14] sm:$0xf]
    %v445 = vld [vmem:[#allocation8 + $0x18] sm:$0xf]
    %v446 = vld [vmem:[#allocation8 + $0x1c] sm:$0xf]
    %v447 = vld [vmem:[#allocation8 + $0x20] sm:$0xf]
    %v448 = vld [vmem:[#allocation8 + $0x24] sm:$0xf]
    %v449 = vld [vmem:[#allocation8 + $0x28] sm:$0xf]
    %v450 = vld [vmem:[#allocation8 + $0x2c] sm:$0xf]
    %v451 = vld [vmem:[#allocation8 + $0x30] sm:$0xf]
    %v452 = vld [vmem:[#allocation8 + $0x34] sm:$0xf]
    %v453 = vld [vmem:[#allocation8 + $0x38] sm:$0xf]
    %v454 = vld [vmem:[#allocation8 + $0x3c] sm:$0xf]
    %v455 = vld [vmem:[%s4] sm:$0x1]
    %v457 = vlaneseq
    %v458 = vshrl.u32 %v457, 7
    %v459 = vsub.s32 0, %v458
    %v460 = vrot.slane %v455, %v459
    %v478 = vunpack.c.l.b16 %v439
    %v479 = vunpack.c.l.b16 %v440
    %v480 = vunpack.c.l.b16 %v441
    %v481 = vunpack.c.l.b16 %v442
    %v482 = vunpack.c.l.b16 %v443
    %v483 = vunpack.c.l.b16 %v444
    %v484 = vunpack.c.l.b16 %v445
    %v485 = vunpack.c.l.b16 %v446
    %v486 = vunpack.c.l.b16 %v447
    %v487 = vunpack.c.l.b16 %v448
    %v488 = vunpack.c.l.b16 %v449
    %v489 = vunpack.c.l.b16 %v450
    %v490 = vunpack.c.l.b16 %v451
    %v491 = vunpack.c.l.b16 %v452
    %v492 = vunpack.c.l.b16 %v453
    %v493 = vunpack.c.l.b16 %v454
    %v494 = vpack.c.b16 %v479, %v478
    %v495 = vpack.c.b16 %v481, %v480
    %v496 = vpack.c.b16 %v483, %v482
    %v497 = vpack.c.b16 %v485, %v484
    %v498 = vpack.c.b16 %v487, %v486
    %v499 = vpack.c.b16 %v489, %v488
    %v500 = vpack.c.b16 %v491, %v490
    %v501 = vpack.c.b16 %v493, %v492
    %510 = vmatprep.subr.bf16.mxu0 0
    %511 = vmatpush1.bf16.msra.mxu0 %v494
    %512 = vmatprep.subr.bf16.mxu0 0
    %513 = vmatpush1.bf16.msra.mxu0 %v495
    %514 = vmatprep.subr.bf16.mxu0 0
    %515 = vmatpush1.bf16.msra.mxu0 %v496
    %516 = vmatprep.subr.bf16.mxu0 0
    %517 = vmatpush1.bf16.msra.mxu0 %v497
    %518 = vmatprep.subr.bf16.mxu0 0
    %519 = vmatpush1.bf16.msra.mxu0 %v498
    %520 = vmatprep.subr.bf16.mxu0 0
    %521 = vmatpush1.bf16.msra.mxu0 %v499
    %522 = vmatprep.subr.bf16.mxu0 0
    %523 = vmatpush1.bf16.msra.mxu0 %v500
    %524 = vmatprep.subr.bf16.mxu0 0
    %525 = vmatpush1.bf16.msra.mxu0 %v501
    %526 = vmatprep.subr.bf16.mxu0 0
    %527 = vmatpush1.bf16.msra.mxu0 0
    %528 = vmatprep.subr.bf16.mxu0 0
    %529 = vmatpush1.bf16.msra.mxu0 0
    %530 = vmatprep.subr.bf16.mxu0 0
    %531 = vmatpush1.bf16.msra.mxu0 0
    %532 = vmatprep.subr.bf16.mxu0 0
    %533 = vmatpush1.bf16.msra.mxu0 0
    %534 = vmatprep.subr.bf16.mxu0 0
    %535 = vmatpush1.bf16.msra.mxu0 0
    %536 = vmatprep.subr.bf16.mxu0 0
    %537 = vmatpush1.bf16.msra.mxu0 0
    %538 = vmatprep.subr.bf16.mxu0 0
    %539 = vmatpush1.bf16.msra.mxu0 0
    %540 = vmatprep.subr.bf16.mxu0 0
    %541 = vmatpush1.bf16.msra.mxu0 0
    %542 = vmatprep.mubr.bf16.mxu0 0
    %543 = vmatmul.mubr.bf16.gmra.mrb[0].mxu0 %v438
    %v544 = vpop.f32.mrb[0].mxu0
    %v545 = vadd.f32 %v460, %v544
    %v546 = vpop.f32.mrb[0].mxu0
    %v547 = vpop.f32.mrb[0].mxu0
    %v548 = vadd.f32 %v460, %v547
    %v549 = vpop.f32.mrb[0].mxu0
    %550 = vdwg.mxu0
    %551 = vst [vmem:[#allocation2] sm:$0xff] %v389
    %552 = vst [vmem:[#allocation2 + $0x8] sm:$0xff] %v391
    %553 = vst [vmem:[#allocation2 + $0x18] sm:$0xff] %v393
    %554 = vst [vmem:[#allocation2 + $0x20] sm:$0xff] %v395
    %555 = vst [vmem:[#allocation2 + $0x10] sm:$0xff] %v545
    %556 = vst [vmem:[#allocation2 + $0x28] sm:$0xff] %v548
    %v557 = vld [vmem:[#allocation2 + $0x10] sm:$0xff]
    %v558 = vld [vmem:[#allocation2] sm:$0xff]
    %v559 = vmul.f32 %v557, %v558
    %vm560 = vcmask 261120
    %v561 = vsel %vm560, %v559, 0.0
    %562 = vadd.xlane.f32.xlu0 %v561
    %v563 = vpop.xlane.xlu0 %562
    %v564 = vld [vmem:[#allocation2 + $0x18] sm:$0xff]
    %v565 = vmul.f32 %v557, %v564
    %v566 = vsel %vm560, %v565, 0.0
    %567 = vadd.xlane.f32.xlu0 %v566
    %v568 = vpop.xlane.xlu0 %567
    %v569 = vmax.f32 %v563, %v568
    %v570 = vsub.f32 %v563, %v569
    %v571 = vmul.f32 %v570, 1.442695
    %v572 = vpow.pop %v571
    %v573 = vadd.f32 %v572, 0.0
    %v574 = vld [vmem:[#allocation2 + $0x8] sm:$0xff]
    %v575 = vmul.f32 %v572, %v574
    %v576 = vadd.f32 %v575, 0.0
    %v577 = vsub.f32 %v568, %v569
    %v578 = vmul.f32 %v577, 1.442695
    %v579 = vpow.pop %v578
    %v580 = vadd.f32 %v573, %v579
    %v581 = vld [vmem:[#allocation2 + $0x20] sm:$0xff]
    %v582 = vmul.f32 %v579, %v581
    %v583 = vadd.f32 %v576, %v582
    %v584 = vrcp.pop %v580
    %v585 = vmul.f32 %v583, %v584
    %586 = vst.msk [vmem:[#allocation3] sm:$0xff] %vm560, %v585
    %v587 = vld [vmem:[#allocation2 + $0x28] sm:$0xff]
    %v588 = vld [vmem:[#allocation2] sm:$0xff]
    %v589 = vmul.f32 %v587, %v588
    %v590 = vsel %vm560, %v589, 0.0
    %591 = vadd.xlane.f32.xlu0 %v590
    %v592 = vpop.xlane.xlu0 %591
    %v593 = vld [vmem:[#allocation2 + $0x18] sm:$0xff]
    %v594 = vmul.f32 %v587, %v593
    %v595 = vsel %vm560, %v594, 0.0
    %596 = vadd.xlane.f32.xlu0 %v595
    %v597 = vpop.xlane.xlu0 %596
    %v598 = vmax.f32 %v592, %v597
    %v599 = vsub.f32 %v592, %v598
    %v600 = vmul.f32 %v599, 1.442695
    %v601 = vpow.pop %v600
    %v602 = vadd.f32 %v601, 0.0
    %v603 = vld [vmem:[#allocation2 + $0x8] sm:$0xff]
    %v604 = vmul.f32 %v601, %v603
    %v605 = vadd.f32 %v604, 0.0
    %v606 = vsub.f32 %v597, %v598
    %v607 = vmul.f32 %v606, 1.442695
    %v608 = vpow.pop %v607
    %v609 = vadd.f32 %v602, %v608
    %v610 = vld [vmem:[#allocation2 + $0x20] sm:$0xff]
    %v611 = vmul.f32 %v608, %v610
    %v612 = vadd.f32 %v605, %v611
    %v613 = vrcp.pop %v609
    %v614 = vmul.f32 %v612, %v613
    %615 = vst.msk [vmem:[#allocation3 + $0x8] sm:$0xff] %vm560, %v614
    %v616 = vld [vmem:[#allocation2 + $0x10] sm:$0xff]
    %v617 = vld [vmem:[#allocation2] sm:$0xff]
    %v618 = vmul.f32 %v616, %v617
    %620 = vrot.lane.b32.xlu0 %v618, 96
    %v621 = vpop.permute.xlu0 %620
    %v623 = vsel %vm560, %v621, 0.0
    %624 = vadd.xlane.f32.xlu0 %v623
    %v625 = vpop.xlane.xlu0 %624
    %v626 = vld [vmem:[#allocation2 + $0x18] sm:$0xff]
    %v627 = vmul.f32 %v616, %v626
    %629 = vrot.lane.b32.xlu0 %v627, 96
    %v630 = vpop.permute.xlu0 %629
    %v632 = vsel %vm560, %v630, 0.0
    %633 = vadd.xlane.f32.xlu0 %v632
    %v634 = vpop.xlane.xlu0 %633
    %v635 = vmax.f32 %v625, %v634
    %v636 = vsub.f32 %v625, %v635
    %v637 = vmul.f32 %v636, 1.442695
    %v638 = vpow.pop %v637
    %v639 = vadd.f32 %v638, 0.0
    %v640 = vld [vmem:[#allocation2 + $0x8] sm:$0xff]
    %v641 = vmul.f32 %v638, %v640
    %v642 = vadd.f32 %v641, 0.0
    %v643 = vsub.f32 %v634, %v635
    %v644 = vmul.f32 %v643, 1.442695
    %v645 = vpow.pop %v644
    %v646 = vadd.f32 %v639, %v645
    %v647 = vld [vmem:[#allocation2 + $0x20] sm:$0xff]
    %v648 = vmul.f32 %v645, %v647
    %v649 = vadd.f32 %v642, %v648
    %v650 = vrcp.pop %v646
    %v651 = vmul.f32 %v649, %v650
    %vm652 = vcmask 523520
    %653 = vst.msk [vmem:[#allocation3] sm:$0xff] %vm652, %v651
    %v654 = vld [vmem:[#allocation2 + $0x28] sm:$0xff]
    %v655 = vld [vmem:[#allocation2] sm:$0xff]
    %v656 = vmul.f32 %v654, %v655
    %658 = vrot.lane.b32.xlu0 %v656, 96
    %v659 = vpop.permute.xlu0 %658
    %v661 = vsel %vm560, %v659, 0.0
    %662 = vadd.xlane.f32.xlu0 %v661
    %v663 = vpop.xlane.xlu0 %662
    %v664 = vld [vmem:[#allocation2 + $0x18] sm:$0xff]
    %v665 = vmul.f32 %v654, %v664
    %667 = vrot.lane.b32.xlu0 %v665, 96
    %v668 = vpop.permute.xlu0 %667
    %v670 = vsel %vm560, %v668, 0.0
    %671 = vadd.xlane.f32.xlu0 %v670
    %v672 = vpop.xlane.xlu0 %671
    %v673 = vmax.f32 %v663, %v672
    %v674 = vsub.f32 %v663, %v673
    %v675 = vmul.f32 %v674, 1.442695
    %v676 = vpow.pop %v675
    %v677 = vadd.f32 %v676, 0.0
    %v678 = vld [vmem:[#allocation2 + $0x8] sm:$0xff]
    %v679 = vmul.f32 %v676, %v678
    %v680 = vadd.f32 %v679, 0.0
    %v681 = vsub.f32 %v672, %v673
    %v682 = vmul.f32 %v681, 1.442695
    %v683 = vpow.pop %v682
    %v684 = vadd.f32 %v677, %v683
    %v685 = vld [vmem:[#allocation2 + $0x20] sm:$0xff]
    %v686 = vmul.f32 %v683, %v685
    %v687 = vadd.f32 %v680, %v686
    %v688 = vrcp.pop %v684
    %v689 = vmul.f32 %v687, %v688
    %690 = vst.msk [vmem:[#allocation3 + $0x8] sm:$0xff] %vm652, %v689
    %v691 = vld [vmem:[#allocation2 + $0x10] sm:$0xff]
    %v692 = vld [vmem:[#allocation2] sm:$0xff]
    %v693 = vmul.f32 %v691, %v692
    %695 = vrot.lane.b32.xlu0 %v693, 64
    %v696 = vpop.permute.xlu0 %695
    %v698 = vsel %vm560, %v696, 0.0
    %699 = vadd.xlane.f32.xlu0 %v698
    %v700 = vpop.xlane.xlu0 %699
    %v701 = vld [vmem:[#allocation2 + $0x18] sm:$0xff]
    %v702 = vmul.f32 %v691, %v701
    %704 = vrot.lane.b32.xlu0 %v702, 64
    %v705 = vpop.permute.xlu0 %704
    %v707 = vsel %vm560, %v705, 0.0
    %708 = vadd.xlane.f32.xlu0 %v707
    %v709 = vpop.xlane.xlu0 %708
    %v710 = vmax.f32 %v700, %v709
    %v711 = vsub.f32 %v700, %v710
    %v712 = vmul.f32 %v711, 1.442695
    %v713 = vpow.pop %v712
    %v714 = vadd.f32 %v713, 0.0
    %v715 = vld [vmem:[#allocation2 + $0x8] sm:$0xff]
    %v716 = vmul.f32 %v713, %v715
    %v717 = vadd.f32 %v716, 0.0
    %v718 = vsub.f32 %v709, %v710
    %v719 = vmul.f32 %v718, 1.442695
    %v720 = vpow.pop %v719
    %v721 = vadd.f32 %v714, %v720
    %v722 = vld [vmem:[#allocation2 + $0x20] sm:$0xff]
    %v723 = vmul.f32 %v720, %v722
    %v724 = vadd.f32 %v717, %v723
    %v725 = vrcp.pop %v721
    %v726 = vmul.f32 %v724, %v725
    %vm727 = vcmask 785920
    %728 = vst.msk [vmem:[#allocation3] sm:$0xff] %vm727, %v726
    %v729 = vld [vmem:[#allocation2 + $0x28] sm:$0xff]
    %v730 = vld [vmem:[#allocation2] sm:$0xff]
    %v731 = vmul.f32 %v729, %v730
    %733 = vrot.lane.b32.xlu0 %v731, 64
    %v734 = vpop.permute.xlu0 %733
    %v736 = vsel %vm560, %v734, 0.0
    %737 = vadd.xlane.f32.xlu0 %v736
    %v738 = vpop.xlane.xlu0 %737
    %v739 = vld [vmem:[#allocation2 + $0x18] sm:$0xff]
    %v740 = vmul.f32 %v729, %v739
    %742 = vrot.lane.b32.xlu0 %v740, 64
    %v743 = vpop.permute.xlu0 %742
    %v745 = vsel %vm560, %v743, 0.0
    %746 = vadd.xlane.f32.xlu0 %v745
    %v747 = vpop.xlane.xlu0 %746
    %v748 = vmax.f32 %v738, %v747
    %v749 = vsub.f32 %v738, %v748
    %v750 = vmul.f32 %v749, 1.442695
    %v751 = vpow.pop %v750
    %v752 = vadd.f32 %v751, 0.0
    %v753 = vld [vmem:[#allocation2 + $0x8] sm:$0xff]
    %v754 = vmul.f32 %v751, %v753
    %v755 = vadd.f32 %v754, 0.0
    %v756 = vsub.f32 %v747, %v748
    %v757 = vmul.f32 %v756, 1.442695
    %v758 = vpow.pop %v757
    %v759 = vadd.f32 %v752, %v758
    %v760 = vld [vmem:[#allocation2 + $0x20] sm:$0xff]
    %v761 = vmul.f32 %v758, %v760
    %v762 = vadd.f32 %v755, %v761
    %v763 = vrcp.pop %v759
    %v764 = vmul.f32 %v762, %v763
    %765 = vst.msk [vmem:[#allocation3 + $0x8] sm:$0xff] %vm727, %v764
    %v766 = vld [vmem:[#allocation2 + $0x10] sm:$0xff]
    %v767 = vld [vmem:[#allocation2] sm:$0xff]
    %v768 = vmul.f32 %v766, %v767
    %770 = vrot.lane.b32.xlu0 %v768, 32
    %v771 = vpop.permute.xlu0 %770
    %v773 = vsel %vm560, %v771, 0.0
    %774 = vadd.xlane.f32.xlu0 %v773
    %v775 = vpop.xlane.xlu0 %774
    %v776 = vld [vmem:[#allocation2 + $0x18] sm:$0xff]
    %v777 = vmul.f32 %v766, %v776
    %779 = vrot.lane.b32.xlu0 %v777, 32
    %v780 = vpop.permute.xlu0 %779
    %v782 = vsel %vm560, %v780, 0.0
    %783 = vadd.xlane.f32.xlu0 %v782
    %v784 = vpop.xlane.xlu0 %783
    %v785 = vmax.f32 %v775, %v784
    %v786 = vsub.f32 %v775, %v785
    %v787 = vmul.f32 %v786, 1.442695
    %v788 = vpow.pop %v787
    %v789 = vadd.f32 %v788, 0.0
    %v790 = vld [vmem:[#allocation2 + $0x8] sm:$0xff]
    %v791 = vmul.f32 %v788, %v790
    %v792 = vadd.f32 %v791, 0.0
    %v793 = vsub.f32 %v784, %v785
    %v794 = vmul.f32 %v793, 1.442695
    %v795 = vpow.pop %v794
    %v796 = vadd.f32 %v789, %v795
    %v797 = vld [vmem:[#allocation2 + $0x20] sm:$0xff]
    %v798 = vmul.f32 %v795, %v797
    %v799 = vadd.f32 %v792, %v798
    %v800 = vrcp.pop %v796
    %v801 = vmul.f32 %v799, %v800
    %vm802 = vcmask 1048320
    %803 = vst.msk [vmem:[#allocation3] sm:$0xff] %vm802, %v801
    %v804 = vld [vmem:[#allocation2 + $0x28] sm:$0xff]
    %v805 = vld [vmem:[#allocation2] sm:$0xff]
    %v806 = vmul.f32 %v804, %v805
    %808 = vrot.lane.b32.xlu0 %v806, 32
    %v809 = vpop.permute.xlu0 %808
    %v811 = vsel %vm560, %v809, 0.0
    %812 = vadd.xlane.f32.xlu0 %v811
    %v813 = vpop.xlane.xlu0 %812
    %v814 = vld [vmem:[#allocation2 + $0x18] sm:$0xff]
    %v815 = vmul.f32 %v804, %v814
    %817 = vrot.lane.b32.xlu0 %v815, 32
    %v818 = vpop.permute.xlu0 %817
    %v820 = vsel %vm560, %v818, 0.0
    %821 = vadd.xlane.f32.xlu0 %v820
    %v822 = vpop.xlane.xlu0 %821
    %v823 = vmax.f32 %v813, %v822
    %v824 = vsub.f32 %v813, %v823
    %v825 = vmul.f32 %v824, 1.442695
    %v826 = vpow.pop %v825
    %v827 = vadd.f32 %v826, 0.0
    %v828 = vld [vmem:[#allocation2 + $0x8] sm:$0xff]
    %v829 = vmul.f32 %v826, %v828
    %v830 = vadd.f32 %v829, 0.0
    %v831 = vsub.f32 %v822, %v823
    %v832 = vmul.f32 %v831, 1.442695
    %v833 = vpow.pop %v832
    %v834 = vadd.f32 %v827, %v833
    %v835 = vld [vmem:[#allocation2 + $0x20] sm:$0xff]
    %v836 = vmul.f32 %v833, %v835
    %v837 = vadd.f32 %v830, %v836
    %v838 = vrcp.pop %v834
    %v839 = vmul.f32 %v837, %v838
    %840 = vst.msk [vmem:[#allocation3 + $0x8] sm:$0xff] %vm802, %v839
    %v841 = vld [vmem:[#allocation3] sm:$0xff]
    %v842 = vld [vmem:[#allocation3 + $0x8] sm:$0xff]
    %v843 = vpack.c.bf16 %v842, %v841
    %v844 = vld [vmem:[#allocation9] sm:$0xf]
    %v845 = vld [vmem:[#allocation9 + $0x4] sm:$0xf]
    %v846 = vld [vmem:[#allocation9 + $0x8] sm:$0xf]
    %v847 = vld [vmem:[#allocation9 + $0xc] sm:$0xf]
    %v848 = vld [vmem:[#allocation9 + $0x10] sm:$0xf]
    %v849 = vld [vmem:[#allocation9 + $0x14] sm:$0xf]
    %v850 = vld [vmem:[#allocation9 + $0x18] sm:$0xf]
    %v851 = vld [vmem:[#allocation9 + $0x1c] sm:$0xf]
    %v852 = vld [vmem:[#allocation9 + $0x20] sm:$0xf]
    %v853 = vld [vmem:[#allocation9 + $0x24] sm:$0xf]
    %v854 = vld [vmem:[#allocation9 + $0x28] sm:$0xf]
    %v855 = vld [vmem:[#allocation9 + $0x2c] sm:$0xf]
    %v856 = vld [vmem:[#allocation9 + $0x30] sm:$0xf]
    %v857 = vld [vmem:[#allocation9 + $0x34] sm:$0xf]
    %v858 = vld [vmem:[#allocation9 + $0x38] sm:$0xf]
    %v859 = vld [vmem:[#allocation9 + $0x3c] sm:$0xf]
    %v860 = vld [vmem:[%s6] sm:$0x1]
    %v862 = vlaneseq
    %v863 = vshrl.u32 %v862, 7
    %v864 = vsub.s32 0, %v863
    %v865 = vrot.slane %v860, %v864
    %v883 = vunpack.c.l.b16 %v844
    %v884 = vunpack.c.l.b16 %v845
    %v885 = vunpack.c.l.b16 %v846
    %v886 = vunpack.c.l.b16 %v847
    %v887 = vunpack.c.l.b16 %v848
    %v888 = vunpack.c.l.b16 %v849
    %v889 = vunpack.c.l.b16 %v850
    %v890 = vunpack.c.l.b16 %v851
    %v891 = vunpack.c.l.b16 %v852
    %v892 = vunpack.c.l.b16 %v853
    %v893 = vunpack.c.l.b16 %v854
    %v894 = vunpack.c.l.b16 %v855
    %v895 = vunpack.c.l.b16 %v856
    %v896 = vunpack.c.l.b16 %v857
    %v897 = vunpack.c.l.b16 %v858
    %v898 = vunpack.c.l.b16 %v859
    %v899 = vpack.c.b16 %v884, %v883
    %v900 = vpack.c.b16 %v886, %v885
    %v901 = vpack.c.b16 %v888, %v887
    %v902 = vpack.c.b16 %v890, %v889
    %v903 = vpack.c.b16 %v892, %v891
    %v904 = vpack.c.b16 %v894, %v893
    %v905 = vpack.c.b16 %v896, %v895
    %v906 = vpack.c.b16 %v898, %v897
    %915 = vmatprep.subr.bf16.mxu0 0
    %916 = vmatpush1.bf16.msra.mxu0 %v899
    %917 = vmatprep.subr.bf16.mxu0 0
    %918 = vmatpush1.bf16.msra.mxu0 %v900
    %919 = vmatprep.subr.bf16.mxu0 0
    %920 = vmatpush1.bf16.msra.mxu0 %v901
    %921 = vmatprep.subr.bf16.mxu0 0
    %922 = vmatpush1.bf16.msra.mxu0 %v902
    %923 = vmatprep.subr.bf16.mxu0 0
    %924 = vmatpush1.bf16.msra.mxu0 %v903
    %925 = vmatprep.subr.bf16.mxu0 0
    %926 = vmatpush1.bf16.msra.mxu0 %v904
    %927 = vmatprep.subr.bf16.mxu0 0
    %928 = vmatpush1.bf16.msra.mxu0 %v905
    %929 = vmatprep.subr.bf16.mxu0 0
    %930 = vmatpush1.bf16.msra.mxu0 %v906
    %931 = vmatprep.subr.bf16.mxu0 0
    %932 = vmatpush1.bf16.msra.mxu0 0
    %933 = vmatprep.subr.bf16.mxu0 0
    %934 = vmatpush1.bf16.msra.mxu0 0
    %935 = vmatprep.subr.bf16.mxu0 0
    %936 = vmatpush1.bf16.msra.mxu0 0
    %937 = vmatprep.subr.bf16.mxu0 0
    %938 = vmatpush1.bf16.msra.mxu0 0
    %939 = vmatprep.subr.bf16.mxu0 0
    %940 = vmatpush1.bf16.msra.mxu0 0
    %941 = vmatprep.subr.bf16.mxu0 0
    %942 = vmatpush1.bf16.msra.mxu0 0
    %943 = vmatprep.subr.bf16.mxu0 0
    %944 = vmatpush1.bf16.msra.mxu0 0
    %945 = vmatprep.subr.bf16.mxu0 0
    %946 = vmatpush1.bf16.msra.mxu0 0
    %947 = vmatprep.mubr.bf16.mxu0 0
    %948 = vmatmul.mubr.bf16.gmra.mrb[0].mxu0 %v843
    %v949 = vpop.f32.mrb[0].mxu0
    %v950 = vadd.f32 %v865, %v949
    %v951 = vpop.f32.mrb[0].mxu0
    %v952 = vpop.f32.mrb[0].mxu0
    %v953 = vadd.f32 %v865, %v952
    %v954 = vpop.f32.mrb[0].mxu0
    %955 = vdwg.mxu0
    %v956 = vpack.c.bf16 %v953, %v950
    %v957 = vld [vmem:[#allocation11] sm:$0xff]
    %v958 = vld [vmem:[#allocation11 + $0x8] sm:$0xff]
    %v959 = vld [vmem:[#allocation11 + $0x10] sm:$0xff]
    %v960 = vld [vmem:[#allocation11 + $0x18] sm:$0xff]
    %v961 = vld [vmem:[#allocation11 + $0x20] sm:$0xff]
    %v962 = vld [vmem:[#allocation11 + $0x28] sm:$0xff]
    %v963 = vld [vmem:[#allocation11 + $0x30] sm:$0xff]
    %v964 = vld [vmem:[#allocation11 + $0x38] sm:$0xff]
    %v965 = vld [vmem:[#allocation11 + $0x40] sm:$0xff]
    %v966 = vld [vmem:[#allocation11 + $0x48] sm:$0xff]
    %v967 = vld [vmem:[#allocation11 + $0x50] sm:$0xff]
    %v968 = vld [vmem:[#allocation11 + $0x58] sm:$0xff]
    %v969 = vld [vmem:[#allocation11 + $0x60] sm:$0xff]
    %v970 = vld [vmem:[#allocation11 + $0x68] sm:$0xff]
    %v971 = vld [vmem:[#allocation11 + $0x70] sm:$0xff]
    %v972 = vld [vmem:[#allocation11 + $0x78] sm:$0xff]
    %v973 = vld [vmem:[#allocation12] sm:$0xff]
    %v974 = vld [vmem:[#allocation12 + $0x8] sm:$0xff]
    %v975 = vld [vmem:[#allocation12 + $0x10] sm:$0xff]
    %v976 = vld [vmem:[#allocation12 + $0x18] sm:$0xff]
    %v977 = vld [vmem:[#allocation12 + $0x20] sm:$0xff]
    %v978 = vld [vmem:[#allocation12 + $0x28] sm:$0xff]
    %v979 = vld [vmem:[#allocation12 + $0x30] sm:$0xff]
    %v980 = vld [vmem:[#allocation12 + $0x38] sm:$0xff]
    %v981 = vld [vmem:[#allocation12 + $0x40] sm:$0xff]
    %v982 = vld [vmem:[#allocation12 + $0x48] sm:$0xff]
    %v983 = vld [vmem:[#allocation12 + $0x50] sm:$0xff]
    %v984 = vld [vmem:[#allocation12 + $0x58] sm:$0xff]
    %v985 = vld [vmem:[#allocation12 + $0x60] sm:$0xff]
    %v986 = vld [vmem:[#allocation12 + $0x68] sm:$0xff]
    %v987 = vld [vmem:[#allocation12 + $0x70] sm:$0xff]
    %v988 = vld [vmem:[#allocation12 + $0x78] sm:$0xff]
    %v1005 = vunpack.c.l.b16 %v973
    %v1006 = vunpack.c.h.b16 %v973
    %v1007 = vunpack.c.l.b16 %v974
    %v1008 = vunpack.c.h.b16 %v974
    %v1009 = vunpack.c.l.b16 %v975
    %v1010 = vunpack.c.h.b16 %v975
    %v1011 = vunpack.c.l.b16 %v976
    %v1012 = vunpack.c.h.b16 %v976
    %v1013 = vunpack.c.l.b16 %v977
    %v1014 = vunpack.c.h.b16 %v977
    %v1015 = vunpack.c.l.b16 %v978
    %v1016 = vunpack.c.h.b16 %v978
    %v1017 = vunpack.c.l.b16 %v979
    %v1018 = vunpack.c.h.b16 %v979
    %v1019 = vunpack.c.l.b16 %v980
    %v1020 = vunpack.c.h.b16 %v980
    %v1021 = vunpack.c.l.b16 %v981
    %v1022 = vunpack.c.h.b16 %v981
    %v1023 = vunpack.c.l.b16 %v982
    %v1024 = vunpack.c.h.b16 %v982
    %v1025 = vunpack.c.l.b16 %v983
    %v1026 = vunpack.c.h.b16 %v983
    %v1027 = vunpack.c.l.b16 %v984
    %v1028 = vunpack.c.h.b16 %v984
    %v1029 = vunpack.c.l.b16 %v985
    %v1030 = vunpack.c.h.b16 %v985
    %v1031 = vunpack.c.l.b16 %v986
    %v1032 = vunpack.c.h.b16 %v986
    %v1033 = vunpack.c.l.b16 %v987
    %v1034 = vunpack.c.h.b16 %v987
    %v1035 = vunpack.c.l.b16 %v988
    %v1036 = vunpack.c.h.b16 %v988
    %v1037 = vpack.c.b16 %v1007, %v1005
    %v1038 = vpack.c.b16 %v1008, %v1006
    %v1039 = vpack.c.b16 %v1011, %v1009
    %v1040 = vpack.c.b16 %v1012, %v1010
    %v1041 = vpack.c.b16 %v1015, %v1013
    %v1042 = vpack.c.b16 %v1016, %v1014
    %v1043 = vpack.c.b16 %v1019, %v1017
    %v1044 = vpack.c.b16 %v1020, %v1018
    %v1045 = vpack.c.b16 %v1023, %v1021
    %v1046 = vpack.c.b16 %v1024, %v1022
    %v1047 = vpack.c.b16 %v1027, %v1025
    %v1048 = vpack.c.b16 %v1028, %v1026
    %v1049 = vpack.c.b16 %v1031, %v1029
    %v1050 = vpack.c.b16 %v1032, %v1030
    %v1051 = vpack.c.b16 %v1035, %v1033
    %v1052 = vpack.c.b16 %v1036, %v1034
    %1069 = vmatprep.subr.bf16.mxu0 %v1038
    %1070 = vmatpush1.bf16.msra.mxu0 %v1037
    %1071 = vmatprep.subr.bf16.mxu0 %v1040
    %1072 = vmatpush1.bf16.msra.mxu0 %v1039
    %1073 = vmatprep.subr.bf16.mxu0 %v1042
    %1074 = vmatpush1.bf16.msra.mxu0 %v1041
    %1075 = vmatprep.subr.bf16.mxu0 %v1044
    %1076 = vmatpush1.bf16.msra.mxu0 %v1043
    %1077 = vmatprep.subr.bf16.mxu0 %v1046
    %1078 = vmatpush1.bf16.msra.mxu0 %v1045
    %1079 = vmatprep.subr.bf16.mxu0 %v1048
    %1080 = vmatpush1.bf16.msra.mxu0 %v1047
    %1081 = vmatprep.subr.bf16.mxu0 %v1050
    %1082 = vmatpush1.bf16.msra.mxu0 %v1049
    %1083 = vmatprep.subr.bf16.mxu0 %v1052
    %1084 = vmatpush1.bf16.msra.mxu0 %v1051
    %1085 = vmatprep.subr.bf16.mxu0 0
    %1086 = vmatpush1.bf16.msra.mxu0 0
    %1087 = vmatprep.subr.bf16.mxu0 0
    %1088 = vmatpush1.bf16.msra.mxu0 0
    %1089 = vmatprep.subr.bf16.mxu0 0
    %1090 = vmatpush1.bf16.msra.mxu0 0
    %1091 = vmatprep.subr.bf16.mxu0 0
    %1092 = vmatpush1.bf16.msra.mxu0 0
    %1093 = vmatprep.subr.bf16.mxu0 0
    %1094 = vmatpush1.bf16.msra.mxu0 0
    %1095 = vmatprep.subr.bf16.mxu0 0
    %1096 = vmatpush1.bf16.msra.mxu0 0
    %1097 = vmatprep.subr.bf16.mxu0 0
    %1098 = vmatpush1.bf16.msra.mxu0 0
    %1099 = vmatprep.subr.bf16.mxu0 0
    %1100 = vmatpush1.bf16.msra.mxu0 0
    %1101 = vmatprep.mubr.bf16.mxu0 0
    %1102 = vmatmul.mubr.bf16.gmra.mrb[0].mxu0 %v438
    %v1103 = vpop.f32.mrb[0].mxu0
    %v1104 = vadd.f32 0.0, %v1103
    %v1105 = vpop.f32.mrb[0].mxu0
    %v1106 = vadd.f32 0.0, %v1105
    %v1107 = vpop.f32.mrb[0].mxu0
    %v1108 = vadd.f32 0.0, %v1107
    %v1109 = vpop.f32.mrb[0].mxu0
    %v1110 = vadd.f32 0.0, %v1109
    %1111 = vdwg.mxu0
    %v1128 = vunpack.c.l.b16 %v957
    %v1129 = vunpack.c.h.b16 %v957
    %v1130 = vunpack.c.l.b16 %v958
    %v1131 = vunpack.c.h.b16 %v958
    %v1132 = vunpack.c.l.b16 %v959
    %v1133 = vunpack.c.h.b16 %v959
    %v1134 = vunpack.c.l.b16 %v960
    %v1135 = vunpack.c.h.b16 %v960
    %v1136 = vunpack.c.l.b16 %v961
    %v1137 = vunpack.c.h.b16 %v961
    %v1138 = vunpack.c.l.b16 %v962
    %v1139 = vunpack.c.h.b16 %v962
    %v1140 = vunpack.c.l.b16 %v963
    %v1141 = vunpack.c.h.b16 %v963
    %v1142 = vunpack.c.l.b16 %v964
    %v1143 = vunpack.c.h.b16 %v964
    %v1144 = vunpack.c.l.b16 %v965
    %v1145 = vunpack.c.h.b16 %v965
    %v1146 = vunpack.c.l.b16 %v966
    %v1147 = vunpack.c.h.b16 %v966
    %v1148 = vunpack.c.l.b16 %v967
    %v1149 = vunpack.c.h.b16 %v967
    %v1150 = vunpack.c.l.b16 %v968
    %v1151 = vunpack.c.h.b16 %v968
    %v1152 = vunpack.c.l.b16 %v969
    %v1153 = vunpack.c.h.b16 %v969
    %v1154 = vunpack.c.l.b16 %v970
    %v1155 = vunpack.c.h.b16 %v970
    %v1156 = vunpack.c.l.b16 %v971
    %v1157 = vunpack.c.h.b16 %v971
    %v1158 = vunpack.c.l.b16 %v972
    %v1159 = vunpack.c.h.b16 %v972
    %v1160 = vpack.c.b16 %v1130, %v1128
    %v1161 = vpack.c.b16 %v1131, %v1129
    %v1162 = vpack.c.b16 %v1134, %v1132
    %v1163 = vpack.c.b16 %v1135, %v1133
    %v1164 = vpack.c.b16 %v1138, %v1136
    %v1165 = vpack.c.b16 %v1139, %v1137
    %v1166 = vpack.c.b16 %v1142, %v1140
    %v1167 = vpack.c.b16 %v1143, %v1141
    %v1168 = vpack.c.b16 %v1146, %v1144
    %v1169 = vpack.c.b16 %v1147, %v1145
    %v1170 = vpack.c.b16 %v1150, %v1148
    %v1171 = vpack.c.b16 %v1151, %v1149
    %v1172 = vpack.c.b16 %v1154, %v1152
    %v1173 = vpack.c.b16 %v1155, %v1153
    %v1174 = vpack.c.b16 %v1158, %v1156
    %v1175 = vpack.c.b16 %v1159, %v1157
    %1192 = vmatprep.subr.bf16.mxu0 %v1161
    %1193 = vmatpush1.bf16.msra.mxu0 %v1160
    %1194 = vmatprep.subr.bf16.mxu0 %v1163
    %1195 = vmatpush1.bf16.msra.mxu0 %v1162
    %1196 = vmatprep.subr.bf16.mxu0 %v1165
    %1197 = vmatpush1.bf16.msra.mxu0 %v1164
    %1198 = vmatprep.subr.bf16.mxu0 %v1167
    %1199 = vmatpush1.bf16.msra.mxu0 %v1166
    %1200 = vmatprep.subr.bf16.mxu0 %v1169
    %1201 = vmatpush1.bf16.msra.mxu0 %v1168
    %1202 = vmatprep.subr.bf16.mxu0 %v1171
    %1203 = vmatpush1.bf16.msra.mxu0 %v1170
    %1204 = vmatprep.subr.bf16.mxu0 %v1173
    %1205 = vmatpush1.bf16.msra.mxu0 %v1172
    %1206 = vmatprep.subr.bf16.mxu0 %v1175
    %1207 = vmatpush1.bf16.msra.mxu0 %v1174
    %1208 = vmatprep.subr.bf16.mxu0 0
    %1209 = vmatpush1.bf16.msra.mxu0 0
    %1210 = vmatprep.subr.bf16.mxu0 0
    %1211 = vmatpush1.bf16.msra.mxu0 0
    %1212 = vmatprep.subr.bf16.mxu0 0
    %1213 = vmatpush1.bf16.msra.mxu0 0
    %1214 = vmatprep.subr.bf16.mxu0 0
    %1215 = vmatpush1.bf16.msra.mxu0 0
    %1216 = vmatprep.subr.bf16.mxu0 0
    %1217 = vmatpush1.bf16.msra.mxu0 0
    %1218 = vmatprep.subr.bf16.mxu0 0
    %1219 = vmatpush1.bf16.msra.mxu0 0
    %1220 = vmatprep.subr.bf16.mxu0 0
    %1221 = vmatpush1.bf16.msra.mxu0 0
    %1222 = vmatprep.subr.bf16.mxu0 0
    %1223 = vmatpush1.bf16.msra.mxu0 0
    %1224 = vmatprep.mubr.bf16.mxu0 0
    %1225 = vmatmul.mubr.bf16.gmra.mrb[0].mxu0 %v956
    %v1226 = vpop.f32.mrb[0].mxu0
    %v1227 = vadd.f32 %v1104, %v1226
    %v1228 = vpop.f32.mrb[0].mxu0
    %v1229 = vadd.f32 %v1106, %v1228
    %v1230 = vpop.f32.mrb[0].mxu0
    %v1231 = vadd.f32 %v1108, %v1230
    %v1232 = vpop.f32.mrb[0].mxu0
    %v1233 = vadd.f32 %v1110, %v1232
    %1234 = vdwg.mxu0
    %v1235 = vld [vmem:[%s9] sm:$0x3]
    %v1237 = vlaneseq
    %v1238 = vshrl.u32 %v1237, 7
    %v1239 = vsub.s32 0, %v1238
    %v1240 = vrot.slane %v1235, %v1239
    %v1241 = vlaneseq
    %v1242 = vshrl.u32 %v1241, 7
    %v1243 = vsub.s32 1, %v1242
    %v1244 = vrot.slane %v1235, %v1243
    %v1247 = vadd.f32 %v1227, %v1240
    %v1248 = vadd.f32 %v1229, %v1244
    %v1249 = vadd.f32 %v1231, %v1240
    %v1250 = vadd.f32 %v1233, %v1244
    %v1251 = vsub.f32 0.0, %v1247
    %v1252 = vsub.f32 0.0, %v1249
    %v1253 = vmul.f32 %v1251, 1.442695
    %v1254 = vpow.pop %v1253
    %v1255 = vmul.f32 %v1252, 1.442695
    %v1256 = vpow.pop %v1255
    %v1257 = vadd.f32 %v1254, 1.0
    %v1258 = vadd.f32 %v1256, 1.0
    %v1259 = vrcp.pop %v1257
    %v1260 = vmul.f32 1.0, %v1259
    %v1261 = vrcp.pop %v1258
    %v1262 = vmul.f32 1.0, %v1261
    %v1263 = vmul.f32 %v1260, %v1248
    %v1264 = vmul.f32 %v1262, %v1250
    %v1265 = vld [vmem:[%s10] sm:$0x1]
    %v1266 = vld [vmem:[%s11] sm:$0x1]
    %v1267 = vadd.f32 %v1263, %v174
    %v1268 = vadd.f32 %v1264, %v175
    %1269 = vadd.xlane.f32.xlu0 %v1267
    %v1270 = vpop.xlane.xlu0 %1269
    %1271 = vadd.xlane.f32.xlu0 %v1268
    %v1272 = vpop.xlane.xlu0 %1271
    %v1273 = vrcp.pop 128.0
    %v1274 = vmul.f32 %v1270, %v1273
    %v1275 = vmul.f32 %v1272, %v1273
    %v1276 = vsub.f32 %v1267, %v1274
    %v1277 = vsub.f32 %v1268, %v1275
    %v1278 = vmul.f32 %v1276, %v1276
    %v1279 = vmul.f32 %v1277, %v1277
    %1280 = vadd.xlane.f32.xlu0 %v1278
    %v1281 = vpop.xlane.xlu0 %1280
    %1282 = vadd.xlane.f32.xlu0 %v1279
    %v1283 = vpop.xlane.xlu0 %1282
    %v1284 = vmul.f32 %v1281, %v1273
    %v1285 = vmul.f32 %v1283, %v1273
    %v1286 = vadd.f32 %v1284, 1e-05
    %v1287 = vadd.f32 %v1285, 1e-05
    %v1288 = vrsqrt.pop %v1286
    %v1289 = vrsqrt.pop %v1287
    %v1290 = vmul.f32 %v1276, %v1288
    %v1291 = vmul.f32 %v1277, %v1289
    %v1293 = vlaneseq
    %v1294 = vshrl.u32 %v1293, 7
    %v1295 = vsub.s32 0, %v1294
    %v1296 = vrot.slane %v1265, %v1295
    %v1298 = vmul.f32 %v1290, %v1296
    %v1299 = vmul.f32 %v1291, %v1296
    %v1301 = vlaneseq
    %v1302 = vshrl.u32 %v1301, 7
    %v1303 = vsub.s32 0, %v1302
    %v1304 = vrot.slane %v1266, %v1303
    %v1306 = vadd.f32 %v1298, %v1304
    %v1307 = vadd.f32 %v1299, %v1304
    %v1308 = vpack.c.bf16 %v1307, %v1306
    %v1309 = vld [vmem:[#allocation14] sm:$0xff]
    %v1310 = vld [vmem:[#allocation14 + $0x8] sm:$0xff]
    %v1311 = vld [vmem:[#allocation14 + $0x10] sm:$0xff]
    %v1312 = vld [vmem:[#allocation14 + $0x18] sm:$0xff]
    %v1313 = vld [vmem:[#allocation14 + $0x20] sm:$0xff]
    %v1314 = vld [vmem:[#allocation14 + $0x28] sm:$0xff]
    %v1315 = vld [vmem:[#allocation14 + $0x30] sm:$0xff]
    %v1316 = vld [vmem:[#allocation14 + $0x38] sm:$0xff]
    %v1317 = vld [vmem:[#allocation14 + $0x40] sm:$0xff]
    %v1318 = vld [vmem:[#allocation14 + $0x48] sm:$0xff]
    %v1319 = vld [vmem:[#allocation14 + $0x50] sm:$0xff]
    %v1320 = vld [vmem:[#allocation14 + $0x58] sm:$0xff]
    %v1321 = vld [vmem:[#allocation14 + $0x60] sm:$0xff]
    %v1322 = vld [vmem:[#allocation14 + $0x68] sm:$0xff]
    %v1323 = vld [vmem:[#allocation14 + $0x70] sm:$0xff]
    %v1324 = vld [vmem:[#allocation14 + $0x78] sm:$0xff]
    %v1325 = vld [vmem:[#allocation14 + $0x80] sm:$0xff]
    %v1326 = vld [vmem:[#allocation14 + $0x88] sm:$0xff]
    %v1327 = vld [vmem:[#allocation14 + $0x90] sm:$0xff]
    %v1328 = vld [vmem:[#allocation14 + $0x98] sm:$0xff]
    %v1329 = vld [vmem:[#allocation14 + $0xa0] sm:$0xff]
    %v1330 = vld [vmem:[#allocation14 + $0xa8] sm:$0xff]
    %v1331 = vld [vmem:[#allocation14 + $0xb0] sm:$0xff]
    %v1332 = vld [vmem:[#allocation14 + $0xb8] sm:$0xff]
    %v1333 = vld [vmem:[#allocation14 + $0xc0] sm:$0xff]
    %v1334 = vld [vmem:[#allocation14 + $0xc8] sm:$0xff]
    %v1335 = vld [vmem:[#allocation14 + $0xd0] sm:$0xff]
    %v1336 = vld [vmem:[#allocation14 + $0xd8] sm:$0xff]
    %v1337 = vld [vmem:[#allocation14 + $0xe0] sm:$0xff]
    %v1338 = vld [vmem:[#allocation14 + $0xe8] sm:$0xff]
    %v1339 = vld [vmem:[#allocation14 + $0xf0] sm:$0xff]
    %v1340 = vld [vmem:[#allocation14 + $0xf8] sm:$0xff]
    %v1341 = vld [vmem:[%s13] sm:$0xf]
    %v1343 = vlaneseq
    %v1344 = vshrl.u32 %v1343, 7
    %v1345 = vsub.s32 0, %v1344
    %v1346 = vrot.slane %v1341, %v1345
    %v1347 = vlaneseq
    %v1348 = vshrl.u32 %v1347, 7
    %v1349 = vsub.s32 1, %v1348
    %v1350 = vrot.slane %v1341, %v1349
    %v1351 = vlaneseq
    %v1352 = vshrl.u32 %v1351, 7
    %v1353 = vsub.s32 2, %v1352
    %v1354 = vrot.slane %v1341, %v1353
    %v1355 = vlaneseq
    %v1356 = vshrl.u32 %v1355, 7
    %v1357 = vsub.s32 3, %v1356
    %v1358 = vrot.slane %v1341, %v1357
    %v1395 = vunpack.c.l.b16 %v1309
    %v1396 = vunpack.c.h.b16 %v1309
    %v1397 = vunpack.c.l.b16 %v1310
    %v1398 = vunpack.c.h.b16 %v1310
    %v1399 = vunpack.c.l.b16 %v1311
    %v1400 = vunpack.c.h.b16 %v1311
    %v1401 = vunpack.c.l.b16 %v1312
    %v1402 = vunpack.c.h.b16 %v1312
    %v1403 = vunpack.c.l.b16 %v1313
    %v1404 = vunpack.c.h.b16 %v1313
    %v1405 = vunpack.c.l.b16 %v1314
    %v1406 = vunpack.c.h.b16 %v1314
    %v1407 = vunpack.c.l.b16 %v1315
    %v1408 = vunpack.c.h.b16 %v1315
    %v1409 = vunpack.c.l.b16 %v1316
    %v1410 = vunpack.c.h.b16 %v1316
    %v1411 = vunpack.c.l.b16 %v1317
    %v1412 = vunpack.c.h.b16 %v1317
    %v1413 = vunpack.c.l.b16 %v1318
    %v1414 = vunpack.c.h.b16 %v1318
    %v1415 = vunpack.c.l.b16 %v1319
    %v1416 = vunpack.c.h.b16 %v1319
    %v1417 = vunpack.c.l.b16 %v1320
    %v1418 = vunpack.c.h.b16 %v1320
    %v1419 = vunpack.c.l.b16 %v1321
    %v1420 = vunpack.c.h.b16 %v1321
    %v1421 = vunpack.c.l.b16 %v1322
    %v1422 = vunpack.c.h.b16 %v1322
    %v1423 = vunpack.c.l.b16 %v1323
    %v1424 = vunpack.c.h.b16 %v1323
    %v1425 = vunpack.c.l.b16 %v1324
    %v1426 = vunpack.c.h.b16 %v1324
    %v1427 = vunpack.c.l.b16 %v1325
    %v1428 = vunpack.c.h.b16 %v1325
    %v1429 = vunpack.c.l.b16 %v1326
    %v1430 = vunpack.c.h.b16 %v1326
    %v1431 = vunpack.c.l.b16 %v1327
    %v1432 = vunpack.c.h.b16 %v1327
    %v1433 = vunpack.c.l.b16 %v1328
    %v1434 = vunpack.c.h.b16 %v1328
    %v1435 = vunpack.c.l.b16 %v1329
    %v1436 = vunpack.c.h.b16 %v1329
    %v1437 = vunpack.c.l.b16 %v1330
    %v1438 = vunpack.c.h.b16 %v1330
    %v1439 = vunpack.c.l.b16 %v1331
    %v1440 = vunpack.c.h.b16 %v1331
    %v1441 = vunpack.c.l.b16 %v1332
    %v1442 = vunpack.c.h.b16 %v1332
    %v1443 = vunpack.c.l.b16 %v1333
    %v1444 = vunpack.c.h.b16 %v1333
    %v1445 = vunpack.c.l.b16 %v1334
    %v1446 = vunpack.c.h.b16 %v1334
    %v1447 = vunpack.c.l.b16 %v1335
    %v1448 = vunpack.c.h.b16 %v1335
    %v1449 = vunpack.c.l.b16 %v1336
    %v1450 = vunpack.c.h.b16 %v1336
    %v1451 = vunpack.c.l.b16 %v1337
    %v1452 = vunpack.c.h.b16 %v1337
    %v1453 = vunpack.c.l.b16 %v1338
    %v1454 = vunpack.c.h.b16 %v1338
    %v1455 = vunpack.c.l.b16 %v1339
    %v1456 = vunpack.c.h.b16 %v1339
    %v1457 = vunpack.c.l.b16 %v1340
    %v1458 = vunpack.c.h.b16 %v1340
    %v1459 = vpack.c.b16 %v1399, %v1395
    %v1460 = vpack.c.b16 %v1400, %v1396
    %v1461 = vpack.c.b16 %v1401, %v1397
    %v1462 = vpack.c.b16 %v1402, %v1398
    %v1463 = vpack.c.b16 %v1407, %v1403
    %v1464 = vpack.c.b16 %v1408, %v1404
    %v1465 = vpack.c.b16 %v1409, %v1405
    %v1466 = vpack.c.b16 %v1410, %v1406
    %v1467 = vpack.c.b16 %v1415, %v1411
    %v1468 = vpack.c.b16 %v1416, %v1412
    %v1469 = vpack.c.b16 %v1417, %v1413
    %v1470 = vpack.c.b16 %v1418, %v1414
    %v1471 = vpack.c.b16 %v1423, %v1419
    %v1472 = vpack.c.b16 %v1424, %v1420
    %v1473 = vpack.c.b16 %v1425, %v1421
    %v1474 = vpack.c.b16 %v1426, %v1422
    %v1475 = vpack.c.b16 %v1431, %v1427
    %v1476 = vpack.c.b16 %v1432, %v1428
    %v1477 = vpack.c.b16 %v1433, %v1429
    %v1478 = vpack.c.b16 %v1434, %v1430
    %v1479 = vpack.c.b16 %v1439, %v1435
    %v1480 = vpack.c.b16 %v1440, %v1436
    %v1481 = vpack.c.b16 %v1441, %v1437
    %v1482 = vpack.c.b16 %v1442, %v1438
    %v1483 = vpack.c.b16 %v1447, %v1443
    %v1484 = vpack.c.b16 %v1448, %v1444
    %v1485 = vpack.c.b16 %v1449, %v1445
    %v1486 = vpack.c.b16 %v1450, %v1446
    %v1487 = vpack.c.b16 %v1455, %v1451
    %v1488 = vpack.c.b16 %v1456, %v1452
    %v1489 = vpack.c.b16 %v1457, %v1453
    %v1490 = vpack.c.b16 %v1458, %v1454
    %1523 = vmatprep.subr.bf16.mxu0 %v1460
    %1524 = vmatpush1.bf16.msra.mxu0 %v1459
    %1525 = vmatprep.subr.bf16.mxu0 %v1464
    %1526 = vmatpush1.bf16.msra.mxu0 %v1463
    %1527 = vmatprep.subr.bf16.mxu0 %v1468
    %1528 = vmatpush1.bf16.msra.mxu0 %v1467
    %1529 = vmatprep.subr.bf16.mxu0 %v1472
    %1530 = vmatpush1.bf16.msra.mxu0 %v1471
    %1531 = vmatprep.subr.bf16.mxu0 %v1476
    %1532 = vmatpush1.bf16.msra.mxu0 %v1475
    %1533 = vmatprep.subr.bf16.mxu0 %v1480
    %1534 = vmatpush1.bf16.msra.mxu0 %v1479
    %1535 = vmatprep.subr.bf16.mxu0 %v1484
    %1536 = vmatpush1.bf16.msra.mxu0 %v1483
    %1537 = vmatprep.subr.bf16.mxu0 %v1488
    %1538 = vmatpush1.bf16.msra.mxu0 %v1487
    %1539 = vmatprep.subr.bf16.mxu0 0
    %1540 = vmatpush1.bf16.msra.mxu0 0
    %1541 = vmatprep.subr.bf16.mxu0 0
    %1542 = vmatpush1.bf16.msra.mxu0 0
    %1543 = vmatprep.subr.bf16.mxu0 0
    %1544 = vmatpush1.bf16.msra.mxu0 0
    %1545 = vmatprep.subr.bf16.mxu0 0
    %1546 = vmatpush1.bf16.msra.mxu0 0
    %1547 = vmatprep.subr.bf16.mxu0 0
    %1548 = vmatpush1.bf16.msra.mxu0 0
    %1549 = vmatprep.subr.bf16.mxu0 0
    %1550 = vmatpush1.bf16.msra.mxu0 0
    %1551 = vmatprep.subr.bf16.mxu0 0
    %1552 = vmatpush1.bf16.msra.mxu0 0
    %1553 = vmatprep.subr.bf16.mxu0 0
    %1554 = vmatpush1.bf16.msra.mxu0 0
    %1555 = vmatprep.mubr.bf16.mxu0 0
    %1556 = vmatmul.mubr.bf16.gmra.mrb[0].mxu0 %v1308
    %v1557 = vpop.f32.mrb[0].mxu0
    %v1558 = vadd.f32 %v1346, %v1557
    %v1559 = vpop.f32.mrb[0].mxu0
    %v1560 = vadd.f32 %v1350, %v1559
    %v1561 = vpop.f32.mrb[0].mxu0
    %v1562 = vadd.f32 %v1346, %v1561
    %v1563 = vpop.f32.mrb[0].mxu0
    %v1564 = vadd.f32 %v1350, %v1563
    %1565 = vdwg.mxu0
    %1566 = vmatprep.subr.bf16.mxu0 %v1462
    %1567 = vmatpush1.bf16.msra.mxu0 %v1461
    %1568 = vmatprep.subr.bf16.mxu0 %v1466
    %1569 = vmatpush1.bf16.msra.mxu0 %v1465
    %1570 = vmatprep.subr.bf16.mxu0 %v1470
    %1571 = vmatpush1.bf16.msra.mxu0 %v1469
    %1572 = vmatprep.subr.bf16.mxu0 %v1474
    %1573 = vmatpush1.bf16.msra.mxu0 %v1473
    %1574 = vmatprep.subr.bf16.mxu0 %v1478
    %1575 = vmatpush1.bf16.msra.mxu0 %v1477
    %1576 = vmatprep.subr.bf16.mxu0 %v1482
    %1577 = vmatpush1.bf16.msra.mxu0 %v1481
    %1578 = vmatprep.subr.bf16.mxu0 %v1486
    %1579 = vmatpush1.bf16.msra.mxu0 %v1485
    %1580 = vmatprep.subr.bf16.mxu0 %v1490
    %1581 = vmatpush1.bf16.msra.mxu0 %v1489
    %1582 = vmatprep.subr.bf16.mxu0 0
    %1583 = vmatpush1.bf16.msra.mxu0 0
    %1584 = vmatprep.subr.bf16.mxu0 0
    %1585 = vmatpush1.bf16.msra.mxu0 0
    %1586 = vmatprep.subr.bf16.mxu0 0
    %1587 = vmatpush1.bf16.msra.mxu0 0
    %1588 = vmatprep.subr.bf16.mxu0 0
    %1589 = vmatpush1.bf16.msra.mxu0 0
    %1590 = vmatprep.subr.bf16.mxu0 0
    %1591 = vmatpush1.bf16.msra.mxu0 0
    %1592 = vmatprep.subr.bf16.mxu0 0
    %1593 = vmatpush1.bf16.msra.mxu0 0
    %1594 = vmatprep.subr.bf16.mxu0 0
    %1595 = vmatpush1.bf16.msra.mxu0 0
    %1596 = vmatprep.subr.bf16.mxu0 0
    %1597 = vmatpush1.bf16.msra.mxu0 0
    %1598 = vmatprep.mubr.bf16.mxu0 0
    %1599 = vmatmul.mubr.bf16.gmra.mrb[0].mxu0 %v1308
    %v1600 = vpop.f32.mrb[0].mxu0
    %v1601 = vadd.f32 %v1354, %v1600
    %v1602 = vpop.f32.mrb[0].mxu0
    %v1603 = vadd.f32 %v1358, %v1602
    %v1604 = vpop.f32.mrb[0].mxu0
    %v1605 = vadd.f32 %v1354, %v1604
    %v1606 = vpop.f32.mrb[0].mxu0
    %v1607 = vadd.f32 %v1358, %v1606
    %1608 = vdwg.mxu0
    %v1609 = vmul.f32 %v1558, 0.5
    %v1610 = vmul.f32 %v1560, 0.5
    %v1611 = vmul.f32 %v1601, 0.5
    %v1612 = vmul.f32 %v1603, 0.5
    %v1613 = vmul.f32 %v1562, 0.5
    %v1614 = vmul.f32 %v1564, 0.5
    %v1615 = vmul.f32 %v1605, 0.5
    %v1616 = vmul.f32 %v1607, 0.5
    %v1617 = vmul.f32 %v1558, 0.044715
    %v1618 = vmul.f32 %v1560, 0.044715
    %v1619 = vmul.f32 %v1601, 0.044715
    %v1620 = vmul.f32 %v1603, 0.044715
    %v1621 = vmul.f32 %v1562, 0.044715
    %v1622 = vmul.f32 %v1564, 0.044715
    %v1623 = vmul.f32 %v1605, 0.044715
    %v1624 = vmul.f32 %v1607, 0.044715
    %v1625 = vmul.f32 %v1617, %v1558
    %v1626 = vmul.f32 %v1618, %v1560
    %v1627 = vmul.f32 %v1619, %v1601
    %v1628 = vmul.f32 %v1620, %v1603
    %v1629 = vmul.f32 %v1621, %v1562
    %v1630 = vmul.f32 %v1622, %v1564
    %v1631 = vmul.f32 %v1623, %v1605
    %v1632 = vmul.f32 %v1624, %v1607
    %v1633 = vmul.f32 %v1625, %v1558
    %v1634 = vmul.f32 %v1626, %v1560
    %v1635 = vmul.f32 %v1627, %v1601
    %v1636 = vmul.f32 %v1628, %v1603
    %v1637 = vmul.f32 %v1629, %v1562
    %v1638 = vmul.f32 %v1630, %v1564
    %v1639 = vmul.f32 %v1631, %v1605
    %v1640 = vmul.f32 %v1632, %v1607
    %v1641 = vadd.f32 %v1558, %v1633
    %v1642 = vadd.f32 %v1560, %v1634
    %v1643 = vadd.f32 %v1601, %v1635
    %v1644 = vadd.f32 %v1603, %v1636
    %v1645 = vadd.f32 %v1562, %v1637
    %v1646 = vadd.f32 %v1564, %v1638
    %v1647 = vadd.f32 %v1605, %v1639
    %v1648 = vadd.f32 %v1607, %v1640
    %v1649 = vmul.f32 %v1641, 0.7978846
    %v1650 = vmul.f32 %v1642, 0.7978846
    %v1651 = vmul.f32 %v1643, 0.7978846
    %v1652 = vmul.f32 %v1644, 0.7978846
    %v1653 = vmul.f32 %v1645, 0.7978846
    %v1654 = vmul.f32 %v1646, 0.7978846
    %v1655 = vmul.f32 %v1647, 0.7978846
    %v1656 = vmul.f32 %v1648, 0.7978846
    %v1657 = vtanh.pop %v1649
    %v1658 = vtanh.pop %v1650
    %v1659 = vtanh.pop %v1651
    %v1660 = vtanh.pop %v1652
    %v1661 = vtanh.pop %v1653
    %v1662 = vtanh.pop %v1654
    %v1663 = vtanh.pop %v1655
    %v1664 = vtanh.pop %v1656
    %v1665 = vadd.f32 %v1657, 1.0
    %v1666 = vadd.f32 %v1658, 1.0
    %v1667 = vadd.f32 %v1659, 1.0
    %v1668 = vadd.f32 %v1660, 1.0
    %v1669 = vadd.f32 %v1661, 1.0
    %v1670 = vadd.f32 %v1662, 1.0
    %v1671 = vadd.f32 %v1663, 1.0
    %v1672 = vadd.f32 %v1664, 1.0
    %v1673 = vmul.f32 %v1609, %v1665
    %v1674 = vmul.f32 %v1610, %v1666
    %v1675 = vmul.f32 %v1611, %v1667
    %v1676 = vmul.f32 %v1612, %v1668
    %v1677 = vmul.f32 %v1613, %v1669
    %v1678 = vmul.f32 %v1614, %v1670
    %v1679 = vmul.f32 %v1615, %v1671
    %v1680 = vmul.f32 %v1616, %v1672
    %v1681 = vpack.c.bf16 %v1677, %v1673
    %v1682 = vpack.c.bf16 %v1678, %v1674
    %v1683 = vpack.c.bf16 %v1679, %v1675
    %v1684 = vpack.c.bf16 %v1680, %v1676
    %v1685 = vld [vmem:[#allocation15] sm:$0xf]
    %v1686 = vld [vmem:[#allocation15 + $0x4] sm:$0xf]
    %v1687 = vld [vmem:[#allocation15 + $0x8] sm:$0xf]
    %v1688 = vld [vmem:[#allocation15 + $0xc] sm:$0xf]
    %v1689 = vld [vmem:[#allocation15 + $0x10] sm:$0xf]
    %v1690 = vld [vmem:[#allocation15 + $0x14] sm:$0xf]
    %v1691 = vld [vmem:[#allocation15 + $0x18] sm:$0xf]
    %v1692 = vld [vmem:[#allocation15 + $0x1c] sm:$0xf]
    %v1693 = vld [vmem:[#allocation15 + $0x20] sm:$0xf]
    %v1694 = vld [vmem:[#allocation15 + $0x24] sm:$0xf]
    %v1695 = vld [vmem:[#allocation15 + $0x28] sm:$0xf]
    %v1696 = vld [vmem:[#allocation15 + $0x2c] sm:$0xf]
    %v1697 = vld [vmem:[#allocation15 + $0x30] sm:$0xf]
    %v1698 = vld [vmem:[#allocation15 + $0x34] sm:$0xf]
    %v1699 = vld [vmem:[#allocation15 + $0x38] sm:$0xf]
    %v1700 = vld [vmem:[#allocation15 + $0x3c] sm:$0xf]
    %v1701 = vld [vmem:[#allocation15 + $0x40] sm:$0xf]
    %v1702 = vld [vmem:[#allocation15 + $0x44] sm:$0xf]
    %v1703 = vld [vmem:[#allocation15 + $0x48] sm:$0xf]
    %v1704 = vld [vmem:[#allocation15 + $0x4c] sm:$0xf]
    %v1705 = vld [vmem:[#allocation15 + $0x50] sm:$0xf]
    %v1706 = vld [vmem:[#allocation15 + $0x54] sm:$0xf]
    %v1707 = vld [vmem:[#allocation15 + $0x58] sm:$0xf]
    %v1708 = vld [vmem:[#allocation15 + $0x5c] sm:$0xf]
    %v1709 = vld [vmem:[#allocation15 + $0x60] sm:$0xf]
    %v1710 = vld [vmem:[#allocation15 + $0x64] sm:$0xf]
    %v1711 = vld [vmem:[#allocation15 + $0x68] sm:$0xf]
    %v1712 = vld [vmem:[#allocation15 + $0x6c] sm:$0xf]
    %v1713 = vld [vmem:[#allocation15 + $0x70] sm:$0xf]
    %v1714 = vld [vmem:[#allocation15 + $0x74] sm:$0xf]
    %v1715 = vld [vmem:[#allocation15 + $0x78] sm:$0xf]
    %v1716 = vld [vmem:[#allocation15 + $0x7c] sm:$0xf]
    %v1717 = vld [vmem:[#allocation15 + $0x80] sm:$0xf]
    %v1718 = vld [vmem:[#allocation15 + $0x84] sm:$0xf]
    %v1719 = vld [vmem:[#allocation15 + $0x88] sm:$0xf]
    %v1720 = vld [vmem:[#allocation15 + $0x8c] sm:$0xf]
    %v1721 = vld [vmem:[#allocation15 + $0x90] sm:$0xf]
    %v1722 = vld [vmem:[#allocation15 + $0x94] sm:$0xf]
    %v1723 = vld [vmem:[#allocation15 + $0x98] sm:$0xf]
    %v1724 = vld [vmem:[#allocation15 + $0x9c] sm:$0xf]
    %v1725 = vld [vmem:[#allocation15 + $0xa0] sm:$0xf]
    %v1726 = vld [vmem:[#allocation15 + $0xa4] sm:$0xf]
    %v1727 = vld [vmem:[#allocation15 + $0xa8] sm:$0xf]
    %v1728 = vld [vmem:[#allocation15 + $0xac] sm:$0xf]
    %v1729 = vld [vmem:[#allocation15 + $0xb0] sm:$0xf]
    %v1730 = vld [vmem:[#allocation15 + $0xb4] sm:$0xf]
    %v1731 = vld [vmem:[#allocation15 + $0xb8] sm:$0xf]
    %v1732 = vld [vmem:[#allocation15 + $0xbc] sm:$0xf]
    %v1733 = vld [vmem:[#allocation15 + $0xc0] sm:$0xf]
    %v1734 = vld [vmem:[#allocation15 + $0xc4] sm:$0xf]
    %v1735 = vld [vmem:[#allocation15 + $0xc8] sm:$0xf]
    %v1736 = vld [vmem:[#allocation15 + $0xcc] sm:$0xf]
    %v1737 = vld [vmem:[#allocation15 + $0xd0] sm:$0xf]
    %v1738 = vld [vmem:[#allocation15 + $0xd4] sm:$0xf]
    %v1739 = vld [vmem:[#allocation15 + $0xd8] sm:$0xf]
    %v1740 = vld [vmem:[#allocation15 + $0xdc] sm:$0xf]
    %v1741 = vld [vmem:[#allocation15 + $0xe0] sm:$0xf]
    %v1742 = vld [vmem:[#allocation15 + $0xe4] sm:$0xf]
    %v1743 = vld [vmem:[#allocation15 + $0xe8] sm:$0xf]
    %v1744 = vld [vmem:[#allocation15 + $0xec] sm:$0xf]
    %v1745 = vld [vmem:[#allocation15 + $0xf0] sm:$0xf]
    %v1746 = vld [vmem:[#allocation15 + $0xf4] sm:$0xf]
    %v1747 = vld [vmem:[#allocation15 + $0xf8] sm:$0xf]
    %v1748 = vld [vmem:[#allocation15 + $0xfc] sm:$0xf]
    %v1749 = vld [vmem:[#allocation17] sm:$0x1]
    %v1751 = vlaneseq
    %v1752 = vshrl.u32 %v1751, 7
    %v1753 = vsub.s32 0, %v1752
    %v1754 = vrot.slane %v1749, %v1753
    %v1820 = vunpack.c.l.b16 %v1685
    %v1821 = vunpack.c.l.b16 %v1686
    %v1822 = vunpack.c.l.b16 %v1687
    %v1823 = vunpack.c.l.b16 %v1688
    %v1824 = vunpack.c.l.b16 %v1689
    %v1825 = vunpack.c.l.b16 %v1690
    %v1826 = vunpack.c.l.b16 %v1691
    %v1827 = vunpack.c.l.b16 %v1692
    %v1828 = vunpack.c.l.b16 %v1693
    %v1829 = vunpack.c.l.b16 %v1694
    %v1830 = vunpack.c.l.b16 %v1695
    %v1831 = vunpack.c.l.b16 %v1696
    %v1832 = vunpack.c.l.b16 %v1697
    %v1833 = vunpack.c.l.b16 %v1698
    %v1834 = vunpack.c.l.b16 %v1699
    %v1835 = vunpack.c.l.b16 %v1700
    %v1836 = vunpack.c.l.b16 %v1701
    %v1837 = vunpack.c.l.b16 %v1702
    %v1838 = vunpack.c.l.b16 %v1703
    %v1839 = vunpack.c.l.b16 %v1704
    %v1840 = vunpack.c.l.b16 %v1705
    %v1841 = vunpack.c.l.b16 %v1706
    %v1842 = vunpack.c.l.b16 %v1707
    %v1843 = vunpack.c.l.b16 %v1708
    %v1844 = vunpack.c.l.b16 %v1709
    %v1845 = vunpack.c.l.b16 %v1710
    %v1846 = vunpack.c.l.b16 %v1711
    %v1847 = vunpack.c.l.b16 %v1712
    %v1848 = vunpack.c.l.b16 %v1713
    %v1849 = vunpack.c.l.b16 %v1714
    %v1850 = vunpack.c.l.b16 %v1715
    %v1851 = vunpack.c.l.b16 %v1716
    %v1852 = vunpack.c.l.b16 %v1717
    %v1853 = vunpack.c.l.b16 %v1718
    %v1854 = vunpack.c.l.b16 %v1719
    %v1855 = vunpack.c.l.b16 %v1720
    %v1856 = vunpack.c.l.b16 %v1721
    %v1857 = vunpack.c.l.b16 %v1722
    %v1858 = vunpack.c.l.b16 %v1723
    %v1859 = vunpack.c.l.b16 %v1724
    %v1860 = vunpack.c.l.b16 %v1725
    %v1861 = vunpack.c.l.b16 %v1726
    %v1862 = vunpack.c.l.b16 %v1727
    %v1863 = vunpack.c.l.b16 %v1728
    %v1864 = vunpack.c.l.b16 %v1729
    %v1865 = vunpack.c.l.b16 %v1730
    %v1866 = vunpack.c.l.b16 %v1731
    %v1867 = vunpack.c.l.b16 %v1732
    %v1868 = vunpack.c.l.b16 %v1733
    %v1869 = vunpack.c.l.b16 %v1734
    %v1870 = vunpack.c.l.b16 %v1735
    %v1871 = vunpack.c.l.b16 %v1736
    %v1872 = vunpack.c.l.b16 %v1737
    %v1873 = vunpack.c.l.b16 %v1738
    %v1874 = vunpack.c.l.b16 %v1739
    %v1875 = vunpack.c.l.b16 %v1740
    %v1876 = vunpack.c.l.b16 %v1741
    %v1877 = vunpack.c.l.b16 %v1742
    %v1878 = vunpack.c.l.b16 %v1743
    %v1879 = vunpack.c.l.b16 %v1744
    %v1880 = vunpack.c.l.b16 %v1745
    %v1881 = vunpack.c.l.b16 %v1746
    %v1882 = vunpack.c.l.b16 %v1747
    %v1883 = vunpack.c.l.b16 %v1748
    %v1884 = vpack.c.b16 %v1821, %v1820
    %v1885 = vpack.c.b16 %v1823, %v1822
    %v1886 = vpack.c.b16 %v1825, %v1824
    %v1887 = vpack.c.b16 %v1827, %v1826
    %v1888 = vpack.c.b16 %v1829, %v1828
    %v1889 = vpack.c.b16 %v1831, %v1830
    %v1890 = vpack.c.b16 %v1833, %v1832
    %v1891 = vpack.c.b16 %v1835, %v1834
    %v1892 = vpack.c.b16 %v1837, %v1836
    %v1893 = vpack.c.b16 %v1839, %v1838
    %v1894 = vpack.c.b16 %v1841, %v1840
    %v1895 = vpack.c.b16 %v1843, %v1842
    %v1896 = vpack.c.b16 %v1845, %v1844
    %v1897 = vpack.c.b16 %v1847, %v1846
    %v1898 = vpack.c.b16 %v1849, %v1848
    %v1899 = vpack.c.b16 %v1851, %v1850
    %v1900 = vpack.c.b16 %v1853, %v1852
    %v1901 = vpack.c.b16 %v1855, %v1854
    %v1902 = vpack.c.b16 %v1857, %v1856
    %v1903 = vpack.c.b16 %v1859, %v1858
    %v1904 = vpack.c.b16 %v1861, %v1860
    %v1905 = vpack.c.b16 %v1863, %v1862
    %v1906 = vpack.c.b16 %v1865, %v1864
    %v1907 = vpack.c.b16 %v1867, %v1866
    %v1908 = vpack.c.b16 %v1869, %v1868
    %v1909 = vpack.c.b16 %v1871, %v1870
    %v1910 = vpack.c.b16 %v1873, %v1872
    %v1911 = vpack.c.b16 %v1875, %v1874
    %v1912 = vpack.c.b16 %v1877, %v1876
    %v1913 = vpack.c.b16 %v1879, %v1878
    %v1914 = vpack.c.b16 %v1881, %v1880
    %v1915 = vpack.c.b16 %v1883, %v1882
    %1948 = vmatprep.subr.bf16.mxu0 0
    %1949 = vmatpush1.bf16.msra.mxu0 %v1884
    %1950 = vmatprep.subr.bf16.mxu0 0
    %1951 = vmatpush1.bf16.msra.mxu0 %v1885
    %1952 = vmatprep.subr.bf16.mxu0 0
    %1953 = vmatpush1.bf16.msra.mxu0 %v1886
    %1954 = vmatprep.subr.bf16.mxu0 0
    %1955 = vmatpush1.bf16.msra.mxu0 %v1887
    %1956 = vmatprep.subr.bf16.mxu0 0
    %1957 = vmatpush1.bf16.msra.mxu0 %v1888
    %1958 = vmatprep.subr.bf16.mxu0 0
    %1959 = vmatpush1.bf16.msra.mxu0 %v1889
    %1960 = vmatprep.subr.bf16.mxu0 0
    %1961 = vmatpush1.bf16.msra.mxu0 %v1890
    %1962 = vmatprep.subr.bf16.mxu0 0
    %1963 = vmatpush1.bf16.msra.mxu0 %v1891
    %1964 = vmatprep.subr.bf16.mxu0 0
    %1965 = vmatpush1.bf16.msra.mxu0 %v1892
    %1966 = vmatprep.subr.bf16.mxu0 0
    %1967 = vmatpush1.bf16.msra.mxu0 %v1893
    %1968 = vmatprep.subr.bf16.mxu0 0
    %1969 = vmatpush1.bf16.msra.mxu0 %v1894
    %1970 = vmatprep.subr.bf16.mxu0 0
    %1971 = vmatpush1.bf16.msra.mxu0 %v1895
    %1972 = vmatprep.subr.bf16.mxu0 0
    %1973 = vmatpush1.bf16.msra.mxu0 %v1896
    %1974 = vmatprep.subr.bf16.mxu0 0
    %1975 = vmatpush1.bf16.msra.mxu0 %v1897
    %1976 = vmatprep.subr.bf16.mxu0 0
    %1977 = vmatpush1.bf16.msra.mxu0 %v1898
    %1978 = vmatprep.subr.bf16.mxu0 0
    %1979 = vmatpush1.bf16.msra.mxu0 %v1899
    %1980 = vmatprep.mubr.bf16.mxu0 %v1682
    %1981 = vmatmul.mubr.bf16.gmra.mrb[0].mxu0 %v1681
    %v1982 = vpop.f32.mrb[0].mxu0
    %v1983 = vadd.f32 %v1754, %v1982
    %v1984 = vpop.f32.mrb[0].mxu0
    %v1985 = vpop.f32.mrb[0].mxu0
    %v1986 = vadd.f32 %v1754, %v1985
    %v1987 = vpop.f32.mrb[0].mxu0
    %1988 = vdwg.mxu0
    %1989 = vmatprep.subr.bf16.mxu0 0
    %1990 = vmatpush1.bf16.msra.mxu0 %v1900
    %1991 = vmatprep.subr.bf16.mxu0 0
    %1992 = vmatpush1.bf16.msra.mxu0 %v1901
    %1993 = vmatprep.subr.bf16.mxu0 0
    %1994 = vmatpush1.bf16.msra.mxu0 %v1902
    %1995 = vmatprep.subr.bf16.mxu0 0
    %1996 = vmatpush1.bf16.msra.mxu0 %v1903
    %1997 = vmatprep.subr.bf16.mxu0 0
    %1998 = vmatpush1.bf16.msra.mxu0 %v1904
    %1999 = vmatprep.subr.bf16.mxu0 0
    %2000 = vmatpush1.bf16.msra.mxu0 %v1905
    %2001 = vmatprep.subr.bf16.mxu0 0
    %2002 = vmatpush1.bf16.msra.mxu0 %v1906
    %2003 = vmatprep.subr.bf16.mxu0 0
    %2004 = vmatpush1.bf16.msra.mxu0 %v1907
    %2005 = vmatprep.subr.bf16.mxu0 0
    %2006 = vmatpush1.bf16.msra.mxu0 %v1908
    %2007 = vmatprep.subr.bf16.mxu0 0
    %2008 = vmatpush1.bf16.msra.mxu0 %v1909
    %2009 = vmatprep.subr.bf16.mxu0 0
    %2010 = vmatpush1.bf16.msra.mxu0 %v1910
    %2011 = vmatprep.subr.bf16.mxu0 0
    %2012 = vmatpush1.bf16.msra.mxu0 %v1911
    %2013 = vmatprep.subr.bf16.mxu0 0
    %2014 = vmatpush1.bf16.msra.mxu0 %v1912
    %2015 = vmatprep.subr.bf16.mxu0 0
    %2016 = vmatpush1.bf16.msra.mxu0 %v1913
    %2017 = vmatprep.subr.bf16.mxu0 0
    %2018 = vmatpush1.bf16.msra.mxu0 %v1914
    %2019 = vmatprep.subr.bf16.mxu0 0
    %2020 = vmatpush1.bf16.msra.mxu0 %v1915
    %2021 = vmatprep.mubr.bf16.mxu0 %v1684
    %2022 = vmatmul.mubr.bf16.gmra.mrb[0].mxu0 %v1683
    %v2023 = vpop.f32.mrb[0].mxu0
    %v2024 = vadd.f32 %v1983, %v2023
    %v2025 = vpop.f32.mrb[0].mxu0
    %v2026 = vpop.f32.mrb[0].mxu0
    %v2027 = vadd.f32 %v1986, %v2026
    %v2028 = vpop.f32.mrb[0].mxu0
    %2029 = vdwg.mxu0
    %v2030 = vadd.f32 %v2024, %v1306
    %v2031 = vadd.f32 %v2027, %v1307
    %2032 = vadd.xlane.f32.xlu0 %v2030
    %v2033 = vpop.xlane.xlu0 %2032
    %2034 = vadd.xlane.f32.xlu0 %v2031
    %v2035 = vpop.xlane.xlu0 %2034
    %v2036 = vmul.f32 %v2033, %v1273
    %v2037 = vmul.f32 %v2035, %v1273
    %v2038 = vsub.f32 %v2030, %v2036
    %v2039 = vsub.f32 %v2031, %v2037
    %v2040 = vmul.f32 %v2038, %v2038
    %v2041 = vmul.f32 %v2039, %v2039
    %2042 = vadd.xlane.f32.xlu0 %v2040
    %v2043 = vpop.xlane.xlu0 %2042
    %2044 = vadd.xlane.f32.xlu0 %v2041
    %v2045 = vpop.xlane.xlu0 %2044
    %v2046 = vmul.f32 %v2043, %v1273
    %v2047 = vmul.f32 %v2045, %v1273
    %v2048 = vadd.f32 %v2046, 1e-05
    %v2049 = vadd.f32 %v2047, 1e-05
    %v2050 = vrsqrt.pop %v2048
    %v2051 = vrsqrt.pop %v2049
    %v2052 = vmul.f32 %v2038, %v2050
    %v2053 = vmul.f32 %v2039, %v2051
    %v2054 = vmul.f32 %v2052, %v1296
    %v2055 = vmul.f32 %v2053, %v1296
    %v2056 = vadd.f32 %v2054, %v1304
    %v2057 = vadd.f32 %v2055, %v1304
    %v2058 = vadd.f32 %v2056, %v174
    %v2059 = vadd.f32 %v2057, %v175
    %2060 = vst [vmem:[%s16] sm:$0xff] %v2058
    %2061 = vst [vmem:[%s16 + $0x8] sm:$0xff] %v2059
    // Predicated region
    $region102: #{transformer_forward.2} parent=1 // pred_check
      _
    $region103: #{transformer_forward.2} parent=1 // pred_check_branch
      %2063 = sbr.rel (0) target = $region105
    $region104: #{transformer_forward.2} parent=1 // pred_region
      _
    $region105: #{transformer_forward.2} parent=1 // pred_fallthru
      _
    // Predicated region
    $region106: #{transformer_forward.2} parent=1 // pred_check
      _
    $region107: #{transformer_forward.2} parent=1 // pred_check_branch
      %2065 = sbr.rel (0) target = $region109
    $region108: #{transformer_forward.2} parent=1 // pred_region
      _
    $region109: #{transformer_forward.2} parent=1 // pred_fallthru
      _
    %2066 = vsyncpa [#allocation5], 1
    %2067 = vsyncpa [#allocation7], 1
    %2068 = vsyncpa [#allocation10], 1
    %2069 = vsyncpa [#allocation13], 1
    %2070 = vsyncpa [#allocation16], 1

// kernel: transformer_forward.3
$region0: #{transformer_forward.3}
  #allocation0 [shape = 'u32[]', space=smem, size = 0x4, offset = 0x4, fixed_abs, tag = 'smem constant byte address 0x4 - core index']
  #allocation1 [shape = 'u32[144,128]{1,0:T(1,128)}', space=vmem, size = 0x12000, scoped, tag = 'internal scratch']
  #allocation2 [shape = 'f32[16,384]{1,0:T(8,128)}', space=vmem, size = 0x6000, scoped, tag = 'scratch operand']
  #allocation3 [shape = 'f32[16,128]{1,0:T(8,128)}', space=vmem, size = 0x2000, scoped, tag = 'scratch operand']
  %s0 = inlined_call_operand.vmem [shape: f32[16,128], index: 0, kind: input, shape index: {}]
  %s1 = inlined_call_operand.vmem [shape: bf16[128,384], index: 1, kind: input, shape index: {}]
  %s2 = inlined_call_operand.vmem [shape: f32[1,384], index: 2, kind: input, shape index: {}]
  %s3 = inlined_call_operand.vmem [shape: bf16[128,128], index: 3, kind: input, shape index: {}]
  %s4 = inlined_call_operand.vmem [shape: f32[1,128], index: 4, kind: input, shape index: {}]
  %s5 = inlined_call_operand.vmem [shape: bf16[128,128], index: 5, kind: input, shape index: {}]
  %s6 = inlined_call_operand.vmem [shape: f32[1,128], index: 6, kind: input, shape index: {}]
  %s7 = inlined_call_operand.vmem [shape: bf16[128,256], index: 7, kind: input, shape index: {}]
  %s8 = inlined_call_operand.vmem [shape: bf16[128,256], index: 8, kind: input, shape index: {}]
  %s9 = inlined_call_operand.vmem [shape: f32[1,256], index: 9, kind: input, shape index: {}]
  %s10 = inlined_call_operand.vmem [shape: f32[1,128], index: 10, kind: input, shape index: {}]
  %s11 = inlined_call_operand.vmem [shape: f32[1,128], index: 11, kind: input, shape index: {}]
  %s12 = inlined_call_operand.vmem [shape: bf16[128,512], index: 12, kind: input, shape index: {}]
  %s13 = inlined_call_operand.vmem [shape: f32[1,512], index: 13, kind: input, shape index: {}]
  %s14 = inlined_call_operand.vmem [shape: bf16[512,128], index: 14, kind: input, shape index: {}]
  %s15 = inlined_call_operand.vmem [shape: f32[1,128], index: 15, kind: input, shape index: {}]
  %s16 = inlined_call_operand.hbm [shape: f32[16,128], index: 16, kind: output, shape index: {}]
  %s17 = sld [smem:[#allocation0]]
  $region74: #{transformer_forward.3} parent=0
    _
  %s19 = ssub.s32 1, %s17
  %s20 = scalar_select 0, %s19, %s17
  $region1: #{transformer_forward.3} parent=0
    #allocation4 [shape = 'u8[8192]{0}', space=vmem, size = 0x2000, scoped, tag = 'output window, operand 0, single buffered']
    #allocation5 [shape = 's32[1]{0}', space=sflag, size = 0x4, scoped, tag = 'scoped memory for transformer_forward.3']
    %21 = vsyncpa [#allocation5], 0
    // Predicated region
    $region2: #{transformer_forward.3} parent=1 // pred_check
      _
    $region3: #{transformer_forward.3} parent=1 // pred_check_branch
      %23 = sbr.rel (0) target = $region5
    $region4: #{transformer_forward.3} parent=1 // pred_region
      _
    $region5: #{transformer_forward.3} parent=1 // pred_fallthru
      _
    // Predicated region
    $region6: #{transformer_forward.3} parent=1 // pred_check
      _
    $region7: #{transformer_forward.3} parent=1 // pred_check_branch
      %25 = sbr.rel (0) target = $region9
    $region8: #{transformer_forward.3} parent=1 // pred_region
      _
    $region9: #{transformer_forward.3} parent=1 // pred_fallthru
      _
    // Predicated region
    $region10: #{transformer_forward.3} parent=1 // pred_check
      _
    $region11: #{transformer_forward.3} parent=1 // pred_check_branch
      %27 = sbr.rel (0) target = $region13
    $region12: #{transformer_forward.3} parent=1 // pred_region
      _
    $region13: #{transformer_forward.3} parent=1 // pred_fallthru
      _
    // Predicated region
    $region14: #{transformer_forward.3} parent=1 // pred_check
      _
    $region15: #{transformer_forward.3} parent=1 // pred_check_branch
      %29 = sbr.rel (0) target = $region17
    $region16: #{transformer_forward.3} parent=1 // pred_region
      _
    $region17: #{transformer_forward.3} parent=1 // pred_fallthru
      _
    // Predicated region
    $region18: #{transformer_forward.3} parent=1 // pred_check
      _
    $region19: #{transformer_forward.3} parent=1 // pred_check_branch
      %31 = sbr.rel (0) target = $region21
    $region20: #{transformer_forward.3} parent=1 // pred_region
      _
    $region21: #{transformer_forward.3} parent=1 // pred_fallthru
      _
    // Predicated region
    $region22: #{transformer_forward.3} parent=1 // pred_check
      _
    $region23: #{transformer_forward.3} parent=1 // pred_check_branch
      %33 = sbr.rel (0) target = $region25
    $region24: #{transformer_forward.3} parent=1 // pred_region
      _
    $region25: #{transformer_forward.3} parent=1 // pred_fallthru
      _
    // Predicated region
    $region26: #{transformer_forward.3} parent=1 // pred_check
      _
    $region27: #{transformer_forward.3} parent=1 // pred_check_branch
      %35 = sbr.rel (0) target = $region29
    $region28: #{transformer_forward.3} parent=1 // pred_region
      _
    $region29: #{transformer_forward.3} parent=1 // pred_fallthru
      _
    // Predicated region
    $region30: #{transformer_forward.3} parent=1 // pred_check
      _
    $region31: #{transformer_forward.3} parent=1 // pred_check_branch
      %37 = sbr.rel (0) target = $region33
    $region32: #{transformer_forward.3} parent=1 // pred_region
      _
    $region33: #{transformer_forward.3} parent=1 // pred_fallthru
      _
    // Predicated region
    $region34: #{transformer_forward.3} parent=1 // pred_check
      _
    $region35: #{transformer_forward.3} parent=1 // pred_check_branch
      %39 = sbr.rel (0) target = $region37
    $region36: #{transformer_forward.3} parent=1 // pred_region
      _
    $region37: #{transformer_forward.3} parent=1 // pred_fallthru
      _
    // Predicated region
    $region38: #{transformer_forward.3} parent=1 // pred_check
      _
    $region39: #{transformer_forward.3} parent=1 // pred_check_branch
      %41 = sbr.rel (0) target = $region41
    $region40: #{transformer_forward.3} parent=1 // pred_region
      _
    $region41: #{transformer_forward.3} parent=1 // pred_fallthru
      _
    // Predicated region
    $region42: #{transformer_forward.3} parent=1 // pred_check
      _
    $region43: #{transformer_forward.3} parent=1 // pred_check_branch
      %43 = sbr.rel (0) target = $region45
    $region44: #{transformer_forward.3} parent=1 // pred_region
      _
    $region45: #{transformer_forward.3} parent=1 // pred_fallthru
      _
    // Predicated region
    $region46: #{transformer_forward.3} parent=1 // pred_check
      _
    $region47: #{transformer_forward.3} parent=1 // pred_check_branch
      %45 = sbr.rel (0) target = $region49
    $region48: #{transformer_forward.3} parent=1 // pred_region
      _
    $region49: #{transformer_forward.3} parent=1 // pred_fallthru
      _
    // Predicated region
    $region50: #{transformer_forward.3} parent=1 // pred_check
      _
    $region51: #{transformer_forward.3} parent=1 // pred_check_branch
      %47 = sbr.rel (0) target = $region53
    $region52: #{transformer_forward.3} parent=1 // pred_region
      _
    $region53: #{transformer_forward.3} parent=1 // pred_fallthru
      _
    // Predicated region
    $region54: #{transformer_forward.3} parent=1 // pred_check
      _
    $region55: #{transformer_forward.3} parent=1 // pred_check_branch
      %49 = sbr.rel (0) target = $region57
    $region56: #{transformer_forward.3} parent=1 // pred_region
      _
    $region57: #{transformer_forward.3} parent=1 // pred_fallthru
      _
    // Predicated region
    $region58: #{transformer_forward.3} parent=1 // pred_check
      _
    $region59: #{transformer_forward.3} parent=1 // pred_check_branch
      %51 = sbr.rel (0) target = $region61
    $region60: #{transformer_forward.3} parent=1 // pred_region
      _
    $region61: #{transformer_forward.3} parent=1 // pred_fallthru
      _
    // Predicated region
    $region62: #{transformer_forward.3} parent=1 // pred_check
      _
    $region63: #{transformer_forward.3} parent=1 // pred_check_branch
      %53 = sbr.rel (0) target = $region65
    $region64: #{transformer_forward.3} parent=1 // pred_region
      _
    $region65: #{transformer_forward.3} parent=1 // pred_fallthru
      _
    %v55 = vld [vmem:[%s0] sm:$0xff]
    %v56 = vld [vmem:[%s0 + $0x8] sm:$0xff]
    %v57 = vpack.c.bf16 %v56, %v55
    %v58 = vld [vmem:[%s1] sm:$0xff]
    %v59 = vld [vmem:[%s1 + $0x8] sm:$0xf]
    %v60 = vld [vmem:[%s1 + $0xc] sm:$0xff]
    %v61 = vld [vmem:[%s1 + $0x14] sm:$0xf]
    %v62 = vld [vmem:[%s1 + $0x18] sm:$0xff]
    %v63 = vld [vmem:[%s1 + $0x20] sm:$0xf]
    %v64 = vld [vmem:[%s1 + $0x24] sm:$0xff]
    %v65 = vld [vmem:[%s1 + $0x2c] sm:$0xf]
    %v66 = vld [vmem:[%s1 + $0x30] sm:$0xff]
    %v67 = vld [vmem:[%s1 + $0x38] sm:$0xf]
    %v68 = vld [vmem:[%s1 + $0x3c] sm:$0xff]
    %v69 = vld [vmem:[%s1 + $0x44] sm:$0xf]
    %v70 = vld [vmem:[%s1 + $0x48] sm:$0xff]
    %v71 = vld [vmem:[%s1 + $0x50] sm:$0xf]
    %v72 = vld [vmem:[%s1 + $0x54] sm:$0xff]
    %v73 = vld [vmem:[%s1 + $0x5c] sm:$0xf]
    %v74 = vld [vmem:[%s1 + $0x60] sm:$0xff]
    %v75 = vld [vmem:[%s1 + $0x68] sm:$0xf]
    %v76 = vld [vmem:[%s1 + $0x6c] sm:$0xff]
    %v77 = vld [vmem:[%s1 + $0x74] sm:$0xf]
    %v78 = vld [vmem:[%s1 + $0x78] sm:$0xff]
    %v79 = vld [vmem:[%s1 + $0x80] sm:$0xf]
    %v80 = vld [vmem:[%s1 + $0x84] sm:$0xff]
    %v81 = vld [vmem:[%s1 + $0x8c] sm:$0xf]
    %v82 = vld [vmem:[%s1 + $0x90] sm:$0xff]
    %v83 = vld [vmem:[%s1 + $0x98] sm:$0xf]
    %v84 = vld [vmem:[%s1 + $0x9c] sm:$0xff]
    %v85 = vld [vmem:[%s1 + $0xa4] sm:$0xf]
    %v86 = vld [vmem:[%s1 + $0xa8] sm:$0xff]
    %v87 = vld [vmem:[%s1 + $0xb0] sm:$0xf]
    %v88 = vld [vmem:[%s1 + $0xb4] sm:$0xff]
    %v89 = vld [vmem:[%s1 + $0xbc] sm:$0xf]
    %v90 = vld [vmem:[%s2] sm:$0x7]
    %v92 = vlaneseq
    %v93 = vshrl.u32 %v92, 7
    %v94 = vsub.s32 0, %v93
    %v95 = vrot.slane %v90, %v94
    %v96 = vlaneseq
    %v97 = vshrl.u32 %v96, 7
    %v98 = vsub.s32 1, %v97
    %v99 = vrot.slane %v90, %v98
    %v100 = vlaneseq
    %v101 = vshrl.u32 %v100, 7
    %v102 = vsub.s32 2, %v101
    %v103 = vrot.slane %v90, %v102
    %v139 = vunpack.c.l.b16 %v58
    %v140 = vunpack.c.h.b16 %v58
    %v141 = vunpack.c.l.b16 %v59
    %v142 = vunpack.c.l.b16 %v60
    %v143 = vunpack.c.h.b16 %v60
    %v144 = vunpack.c.l.b16 %v61
    %v145 = vunpack.c.l.b16 %v62
    %v146 = vunpack.c.h.b16 %v62
    %v147 = vunpack.c.l.b16 %v63
    %v148 = vunpack.c.l.b16 %v64
    %v149 = vunpack.c.h.b16 %v64
    %v150 = vunpack.c.l.b16 %v65
    %v151 = vunpack.c.l.b16 %v66
    %v152 = vunpack.c.h.b16 %v66
    %v153 = vunpack.c.l.b16 %v67
    %v154 = vunpack.c.l.b16 %v68
    %v155 = vunpack.c.h.b16 %v68
    %v156 = vunpack.c.l.b16 %v69
    %v157 = vunpack.c.l.b16 %v70
    %v158 = vunpack.c.h.b16 %v70
    %v159 = vunpack.c.l.b16 %v71
    %v160 = vunpack.c.l.b16 %v72
    %v161 = vunpack.c.h.b16 %v72
    %v162 = vunpack.c.l.b16 %v73
    %v163 = vunpack.c.l.b16 %v74
    %v164 = vunpack.c.h.b16 %v74
    %v165 = vunpack.c.l.b16 %v75
    %v166 = vunpack.c.l.b16 %v76
    %v167 = vunpack.c.h.b16 %v76
    %v168 = vunpack.c.l.b16 %v77
    %v169 = vunpack.c.l.b16 %v78
    %v170 = vunpack.c.h.b16 %v78
    %v171 = vunpack.c.l.b16 %v79
    %v172 = vunpack.c.l.b16 %v80
    %v173 = vunpack.c.h.b16 %v80
    %v174 = vunpack.c.l.b16 %v81
    %v175 = vunpack.c.l.b16 %v82
    %v176 = vunpack.c.h.b16 %v82
    %v177 = vunpack.c.l.b16 %v83
    %v178 = vunpack.c.l.b16 %v84
    %v179 = vunpack.c.h.b16 %v84
    %v180 = vunpack.c.l.b16 %v85
    %v181 = vunpack.c.l.b16 %v86
    %v182 = vunpack.c.h.b16 %v86
    %v183 = vunpack.c.l.b16 %v87
    %v184 = vunpack.c.l.b16 %v88
    %v185 = vunpack.c.h.b16 %v88
    %v186 = vunpack.c.l.b16 %v89
    %v187 = vpack.c.b16 %v142, %v139
    %v188 = vpack.c.b16 %v143, %v140
    %v189 = vpack.c.b16 %v144, %v141
    %v190 = vpack.c.b16 %v148, %v145
    %v191 = vpack.c.b16 %v149, %v146
    %v192 = vpack.c.b16 %v150, %v147
    %v193 = vpack.c.b16 %v154, %v151
    %v194 = vpack.c.b16 %v155, %v152
    %v195 = vpack.c.b16 %v156, %v153
    %v196 = vpack.c.b16 %v160, %v157
    %v197 = vpack.c.b16 %v161, %v158
    %v198 = vpack.c.b16 %v162, %v159
    %v199 = vpack.c.b16 %v166, %v163
    %v200 = vpack.c.b16 %v167, %v164
    %v201 = vpack.c.b16 %v168, %v165
    %v202 = vpack.c.b16 %v172, %v169
    %v203 = vpack.c.b16 %v173, %v170
    %v204 = vpack.c.b16 %v174, %v171
    %v205 = vpack.c.b16 %v178, %v175
    %v206 = vpack.c.b16 %v179, %v176
    %v207 = vpack.c.b16 %v180, %v177
    %v208 = vpack.c.b16 %v184, %v181
    %v209 = vpack.c.b16 %v185, %v182
    %v210 = vpack.c.b16 %v186, %v183
    %235 = vmatprep.subr.bf16.mxu0 %v188
    %236 = vmatpush1.bf16.msra.mxu0 %v187
    %237 = vmatprep.subr.bf16.mxu0 %v191
    %238 = vmatpush1.bf16.msra.mxu0 %v190
    %239 = vmatprep.subr.bf16.mxu0 %v194
    %240 = vmatpush1.bf16.msra.mxu0 %v193
    %241 = vmatprep.subr.bf16.mxu0 %v197
    %242 = vmatpush1.bf16.msra.mxu0 %v196
    %243 = vmatprep.subr.bf16.mxu0 %v200
    %244 = vmatpush1.bf16.msra.mxu0 %v199
    %245 = vmatprep.subr.bf16.mxu0 %v203
    %246 = vmatpush1.bf16.msra.mxu0 %v202
    %247 = vmatprep.subr.bf16.mxu0 %v206
    %248 = vmatpush1.bf16.msra.mxu0 %v205
    %249 = vmatprep.subr.bf16.mxu0 %v209
    %250 = vmatpush1.bf16.msra.mxu0 %v208
    %251 = vmatprep.subr.bf16.mxu0 0
    %252 = vmatpush1.bf16.msra.mxu0 0
    %253 = vmatprep.subr.bf16.mxu0 0
    %254 = vmatpush1.bf16.msra.mxu0 0
    %255 = vmatprep.subr.bf16.mxu0 0
    %256 = vmatpush1.bf16.msra.mxu0 0
    %257 = vmatprep.subr.bf16.mxu0 0
    %258 = vmatpush1.bf16.msra.mxu0 0
    %259 = vmatprep.subr.bf16.mxu0 0
    %260 = vmatpush1.bf16.msra.mxu0 0
    %261 = vmatprep.subr.bf16.mxu0 0
    %262 = vmatpush1.bf16.msra.mxu0 0
    %263 = vmatprep.subr.bf16.mxu0 0
    %264 = vmatpush1.bf16.msra.mxu0 0
    %265 = vmatprep.subr.bf16.mxu0 0
    %266 = vmatpush1.bf16.msra.mxu0 0
    %267 = vmatprep.mubr.bf16.mxu0 0
    %268 = vmatmul.mubr.bf16.gmra.mrb[0].mxu0 %v57
    %v269 = vpop.f32.mrb[0].mxu0
    %v270 = vadd.f32 %v95, %v269
    %v271 = vpop.f32.mrb[0].mxu0
    %v272 = vadd.f32 %v99, %v271
    %v273 = vpop.f32.mrb[0].mxu0
    %v274 = vadd.f32 %v95, %v273
    %v275 = vpop.f32.mrb[0].mxu0
    %v276 = vadd.f32 %v99, %v275
    %277 = vdwg.mxu0
    %278 = vmatprep.subr.bf16.mxu0 0
    %279 = vmatpush1.bf16.msra.mxu0 %v189
    %280 = vmatprep.subr.bf16.mxu0 0
    %281 = vmatpush1.bf16.msra.mxu0 %v192
    %282 = vmatprep.subr.bf16.mxu0 0
    %283 = vmatpush1.bf16.msra.mxu0 %v195
    %284 = vmatprep.subr.bf16.mxu0 0
    %285 = vmatpush1.bf16.msra.mxu0 %v198
    %286 = vmatprep.subr.bf16.mxu0 0
    %287 = vmatpush1.bf16.msra.mxu0 %v201
    %288 = vmatprep.subr.bf16.mxu0 0
    %289 = vmatpush1.bf16.msra.mxu0 %v204
    %290 = vmatprep.subr.bf16.mxu0 0
    %291 = vmatpush1.bf16.msra.mxu0 %v207
    %292 = vmatprep.subr.bf16.mxu0 0
    %293 = vmatpush1.bf16.msra.mxu0 %v210
    %294 = vmatprep.subr.bf16.mxu0 0
    %295 = vmatpush1.bf16.msra.mxu0 0
    %296 = vmatprep.subr.bf16.mxu0 0
    %297 = vmatpush1.bf16.msra.mxu0 0
    %298 = vmatprep.subr.bf16.mxu0 0
    %299 = vmatpush1.bf16.msra.mxu0 0
    %300 = vmatprep.subr.bf16.mxu0 0
    %301 = vmatpush1.bf16.msra.mxu0 0
    %302 = vmatprep.subr.bf16.mxu0 0
    %303 = vmatpush1.bf16.msra.mxu0 0
    %304 = vmatprep.subr.bf16.mxu0 0
    %305 = vmatpush1.bf16.msra.mxu0 0
    %306 = vmatprep.subr.bf16.mxu0 0
    %307 = vmatpush1.bf16.msra.mxu0 0
    %308 = vmatprep.subr.bf16.mxu0 0
    %309 = vmatpush1.bf16.msra.mxu0 0
    %310 = vmatprep.mubr.bf16.mxu0 0
    %311 = vmatmul.mubr.bf16.gmra.mrb[0].mxu0 %v57
    %v312 = vpop.f32.mrb[0].mxu0
    %v313 = vadd.f32 %v103, %v312
    %v314 = vpop.f32.mrb[0].mxu0
    %v315 = vpop.f32.mrb[0].mxu0
    %v316 = vadd.f32 %v103, %v315
    %v317 = vpop.f32.mrb[0].mxu0
    %318 = vdwg.mxu0
    %v319 = vpack.c.bf16 %v316, %v313
    %v320 = vld [vmem:[%s3] sm:$0xf]
    %v321 = vld [vmem:[%s3 + $0x4] sm:$0xf]
    %v322 = vld [vmem:[%s3 + $0x8] sm:$0xf]
    %v323 = vld [vmem:[%s3 + $0xc] sm:$0xf]
    %v324 = vld [vmem:[%s3 + $0x10] sm:$0xf]
    %v325 = vld [vmem:[%s3 + $0x14] sm:$0xf]
    %v326 = vld [vmem:[%s3 + $0x18] sm:$0xf]
    %v327 = vld [vmem:[%s3 + $0x1c] sm:$0xf]
    %v328 = vld [vmem:[%s3 + $0x20] sm:$0xf]
    %v329 = vld [vmem:[%s3 + $0x24] sm:$0xf]
    %v330 = vld [vmem:[%s3 + $0x28] sm:$0xf]
    %v331 = vld [vmem:[%s3 + $0x2c] sm:$0xf]
    %v332 = vld [vmem:[%s3 + $0x30] sm:$0xf]
    %v333 = vld [vmem:[%s3 + $0x34] sm:$0xf]
    %v334 = vld [vmem:[%s3 + $0x38] sm:$0xf]
    %v335 = vld [vmem:[%s3 + $0x3c] sm:$0xf]
    %v336 = vld [vmem:[%s4] sm:$0x1]
    %v338 = vlaneseq
    %v339 = vshrl.u32 %v338, 7
    %v340 = vsub.s32 0, %v339
    %v341 = vrot.slane %v336, %v340
    %v359 = vunpack.c.l.b16 %v320
    %v360 = vunpack.c.l.b16 %v321
    %v361 = vunpack.c.l.b16 %v322
    %v362 = vunpack.c.l.b16 %v323
    %v363 = vunpack.c.l.b16 %v324
    %v364 = vunpack.c.l.b16 %v325
    %v365 = vunpack.c.l.b16 %v326
    %v366 = vunpack.c.l.b16 %v327
    %v367 = vunpack.c.l.b16 %v328
    %v368 = vunpack.c.l.b16 %v329
    %v369 = vunpack.c.l.b16 %v330
    %v370 = vunpack.c.l.b16 %v331
    %v371 = vunpack.c.l.b16 %v332
    %v372 = vunpack.c.l.b16 %v333
    %v373 = vunpack.c.l.b16 %v334
    %v374 = vunpack.c.l.b16 %v335
    %v375 = vpack.c.b16 %v360, %v359
    %v376 = vpack.c.b16 %v362, %v361
    %v377 = vpack.c.b16 %v364, %v363
    %v378 = vpack.c.b16 %v366, %v365
    %v379 = vpack.c.b16 %v368, %v367
    %v380 = vpack.c.b16 %v370, %v369
    %v381 = vpack.c.b16 %v372, %v371
    %v382 = vpack.c.b16 %v374, %v373
    %391 = vmatprep.subr.bf16.mxu0 0
    %392 = vmatpush1.bf16.msra.mxu0 %v375
    %393 = vmatprep.subr.bf16.mxu0 0
    %394 = vmatpush1.bf16.msra.mxu0 %v376
    %395 = vmatprep.subr.bf16.mxu0 0
    %396 = vmatpush1.bf16.msra.mxu0 %v377
    %397 = vmatprep.subr.bf16.mxu0 0
    %398 = vmatpush1.bf16.msra.mxu0 %v378
    %399 = vmatprep.subr.bf16.mxu0 0
    %400 = vmatpush1.bf16.msra.mxu0 %v379
    %401 = vmatprep.subr.bf16.mxu0 0
    %402 = vmatpush1.bf16.msra.mxu0 %v380
    %403 = vmatprep.subr.bf16.mxu0 0
    %404 = vmatpush1.bf16.msra.mxu0 %v381
    %405 = vmatprep.subr.bf16.mxu0 0
    %406 = vmatpush1.bf16.msra.mxu0 %v382
    %407 = vmatprep.subr.bf16.mxu0 0
    %408 = vmatpush1.bf16.msra.mxu0 0
    %409 = vmatprep.subr.bf16.mxu0 0
    %410 = vmatpush1.bf16.msra.mxu0 0
    %411 = vmatprep.subr.bf16.mxu0 0
    %412 = vmatpush1.bf16.msra.mxu0 0
    %413 = vmatprep.subr.bf16.mxu0 0
    %414 = vmatpush1.bf16.msra.mxu0 0
    %415 = vmatprep.subr.bf16.mxu0 0
    %416 = vmatpush1.bf16.msra.mxu0 0
    %417 = vmatprep.subr.bf16.mxu0 0
    %418 = vmatpush1.bf16.msra.mxu0 0
    %419 = vmatprep.subr.bf16.mxu0 0
    %420 = vmatpush1.bf16.msra.mxu0 0
    %421 = vmatprep.subr.bf16.mxu0 0
    %422 = vmatpush1.bf16.msra.mxu0 0
    %423 = vmatprep.mubr.bf16.mxu0 0
    %424 = vmatmul.mubr.bf16.gmra.mrb[0].mxu0 %v319
    %v425 = vpop.f32.mrb[0].mxu0
    %v426 = vadd.f32 %v341, %v425
    %v427 = vpop.f32.mrb[0].mxu0
    %v428 = vpop.f32.mrb[0].mxu0
    %v429 = vadd.f32 %v341, %v428
    %v430 = vpop.f32.mrb[0].mxu0
    %431 = vdwg.mxu0
    %432 = vst [vmem:[#allocation2] sm:$0xff] %v270
    %433 = vst [vmem:[#allocation2 + $0x8] sm:$0xff] %v272
    %434 = vst [vmem:[#allocation2 + $0x18] sm:$0xff] %v274
    %435 = vst [vmem:[#allocation2 + $0x20] sm:$0xff] %v276
    %436 = vst [vmem:[#allocation2 + $0x10] sm:$0xff] %v426
    %437 = vst [vmem:[#allocation2 + $0x28] sm:$0xff] %v429
    %v438 = vld [vmem:[#allocation2 + $0x10] sm:$0xff]
    %v439 = vld [vmem:[#allocation2] sm:$0xff]
    %v440 = vmul.f32 %v438, %v439
    %vm441 = vcmask 261120
    %v442 = vsel %vm441, %v440, 0.0
    %443 = vadd.xlane.f32.xlu0 %v442
    %v444 = vpop.xlane.xlu0 %443
    %v445 = vld [vmem:[#allocation2 + $0x18] sm:$0xff]
    %v446 = vmul.f32 %v438, %v445
    %v447 = vsel %vm441, %v446, 0.0
    %448 = vadd.xlane.f32.xlu0 %v447
    %v449 = vpop.xlane.xlu0 %448
    %v450 = vmax.f32 %v444, %v449
    %v451 = vsub.f32 %v444, %v450
    %v452 = vmul.f32 %v451, 1.442695
    %v453 = vpow.pop %v452
    %v454 = vadd.f32 %v453, 0.0
    %v455 = vld [vmem:[#allocation2 + $0x8] sm:$0xff]
    %v456 = vmul.f32 %v453, %v455
    %v457 = vadd.f32 %v456, 0.0
    %v458 = vsub.f32 %v449, %v450
    %v459 = vmul.f32 %v458, 1.442695
    %v460 = vpow.pop %v459
    %v461 = vadd.f32 %v454, %v460
    %v462 = vld [vmem:[#allocation2 + $0x20] sm:$0xff]
    %v463 = vmul.f32 %v460, %v462
    %v464 = vadd.f32 %v457, %v463
    %v465 = vrcp.pop %v461
    %v466 = vmul.f32 %v464, %v465
    %467 = vst.msk [vmem:[#allocation3] sm:$0xff] %vm441, %v466
    %v468 = vld [vmem:[#allocation2 + $0x28] sm:$0xff]
    %v469 = vld [vmem:[#allocation2] sm:$0xff]
    %v470 = vmul.f32 %v468, %v469
    %v471 = vsel %vm441, %v470, 0.0
    %472 = vadd.xlane.f32.xlu0 %v471
    %v473 = vpop.xlane.xlu0 %472
    %v474 = vld [vmem:[#allocation2 + $0x18] sm:$0xff]
    %v475 = vmul.f32 %v468, %v474
    %v476 = vsel %vm441, %v475, 0.0
    %477 = vadd.xlane.f32.xlu0 %v476
    %v478 = vpop.xlane.xlu0 %477
    %v479 = vmax.f32 %v473, %v478
    %v480 = vsub.f32 %v473, %v479
    %v481 = vmul.f32 %v480, 1.442695
    %v482 = vpow.pop %v481
    %v483 = vadd.f32 %v482, 0.0
    %v484 = vld [vmem:[#allocation2 + $0x8] sm:$0xff]
    %v485 = vmul.f32 %v482, %v484
    %v486 = vadd.f32 %v485, 0.0
    %v487 = vsub.f32 %v478, %v479
    %v488 = vmul.f32 %v487, 1.442695
    %v489 = vpow.pop %v488
    %v490 = vadd.f32 %v483, %v489
    %v491 = vld [vmem:[#allocation2 + $0x20] sm:$0xff]
    %v492 = vmul.f32 %v489, %v491
    %v493 = vadd.f32 %v486, %v492
    %v494 = vrcp.pop %v490
    %v495 = vmul.f32 %v493, %v494
    %496 = vst.msk [vmem:[#allocation3 + $0x8] sm:$0xff] %vm441, %v495
    %v497 = vld [vmem:[#allocation2 + $0x10] sm:$0xff]
    %v498 = vld [vmem:[#allocation2] sm:$0xff]
    %v499 = vmul.f32 %v497, %v498
    %501 = vrot.lane.b32.xlu0 %v499, 96
    %v502 = vpop.permute.xlu0 %501
    %v504 = vsel %vm441, %v502, 0.0
    %505 = vadd.xlane.f32.xlu0 %v504
    %v506 = vpop.xlane.xlu0 %505
    %v507 = vld [vmem:[#allocation2 + $0x18] sm:$0xff]
    %v508 = vmul.f32 %v497, %v507
    %510 = vrot.lane.b32.xlu0 %v508, 96
    %v511 = vpop.permute.xlu0 %510
    %v513 = vsel %vm441, %v511, 0.0
    %514 = vadd.xlane.f32.xlu0 %v513
    %v515 = vpop.xlane.xlu0 %514
    %v516 = vmax.f32 %v506, %v515
    %v517 = vsub.f32 %v506, %v516
    %v518 = vmul.f32 %v517, 1.442695
    %v519 = vpow.pop %v518
    %v520 = vadd.f32 %v519, 0.0
    %v521 = vld [vmem:[#allocation2 + $0x8] sm:$0xff]
    %v522 = vmul.f32 %v519, %v521
    %v523 = vadd.f32 %v522, 0.0
    %v524 = vsub.f32 %v515, %v516
    %v525 = vmul.f32 %v524, 1.442695
    %v526 = vpow.pop %v525
    %v527 = vadd.f32 %v520, %v526
    %v528 = vld [vmem:[#allocation2 + $0x20] sm:$0xff]
    %v529 = vmul.f32 %v526, %v528
    %v530 = vadd.f32 %v523, %v529
    %v531 = vrcp.pop %v527
    %v532 = vmul.f32 %v530, %v531
    %vm533 = vcmask 523520
    %534 = vst.msk [vmem:[#allocation3] sm:$0xff] %vm533, %v532
    %v535 = vld [vmem:[#allocation2 + $0x28] sm:$0xff]
    %v536 = vld [vmem:[#allocation2] sm:$0xff]
    %v537 = vmul.f32 %v535, %v536
    %539 = vrot.lane.b32.xlu0 %v537, 96
    %v540 = vpop.permute.xlu0 %539
    %v542 = vsel %vm441, %v540, 0.0
    %543 = vadd.xlane.f32.xlu0 %v542
    %v544 = vpop.xlane.xlu0 %543
    %v545 = vld [vmem:[#allocation2 + $0x18] sm:$0xff]
    %v546 = vmul.f32 %v535, %v545
    %548 = vrot.lane.b32.xlu0 %v546, 96
    %v549 = vpop.permute.xlu0 %548
    %v551 = vsel %vm441, %v549, 0.0
    %552 = vadd.xlane.f32.xlu0 %v551
    %v553 = vpop.xlane.xlu0 %552
    %v554 = vmax.f32 %v544, %v553
    %v555 = vsub.f32 %v544, %v554
    %v556 = vmul.f32 %v555, 1.442695
    %v557 = vpow.pop %v556
    %v558 = vadd.f32 %v557, 0.0
    %v559 = vld [vmem:[#allocation2 + $0x8] sm:$0xff]
    %v560 = vmul.f32 %v557, %v559
    %v561 = vadd.f32 %v560, 0.0
    %v562 = vsub.f32 %v553, %v554
    %v563 = vmul.f32 %v562, 1.442695
    %v564 = vpow.pop %v563
    %v565 = vadd.f32 %v558, %v564
    %v566 = vld [vmem:[#allocation2 + $0x20] sm:$0xff]
    %v567 = vmul.f32 %v564, %v566
    %v568 = vadd.f32 %v561, %v567
    %v569 = vrcp.pop %v565
    %v570 = vmul.f32 %v568, %v569
    %571 = vst.msk [vmem:[#allocation3 + $0x8] sm:$0xff] %vm533, %v570
    %v572 = vld [vmem:[#allocation2 + $0x10] sm:$0xff]
    %v573 = vld [vmem:[#allocation2] sm:$0xff]
    %v574 = vmul.f32 %v572, %v573
    %576 = vrot.lane.b32.xlu0 %v574, 64
    %v577 = vpop.permute.xlu0 %576
    %v579 = vsel %vm441, %v577, 0.0
    %580 = vadd.xlane.f32.xlu0 %v579
    %v581 = vpop.xlane.xlu0 %580
    %v582 = vld [vmem:[#allocation2 + $0x18] sm:$0xff]
    %v583 = vmul.f32 %v572, %v582
    %585 = vrot.lane.b32.xlu0 %v583, 64
    %v586 = vpop.permute.xlu0 %585
    %v588 = vsel %vm441, %v586, 0.0
    %589 = vadd.xlane.f32.xlu0 %v588
    %v590 = vpop.xlane.xlu0 %589
    %v591 = vmax.f32 %v581, %v590
    %v592 = vsub.f32 %v581, %v591
    %v593 = vmul.f32 %v592, 1.442695
    %v594 = vpow.pop %v593
    %v595 = vadd.f32 %v594, 0.0
    %v596 = vld [vmem:[#allocation2 + $0x8] sm:$0xff]
    %v597 = vmul.f32 %v594, %v596
    %v598 = vadd.f32 %v597, 0.0
    %v599 = vsub.f32 %v590, %v591
    %v600 = vmul.f32 %v599, 1.442695
    %v601 = vpow.pop %v600
    %v602 = vadd.f32 %v595, %v601
    %v603 = vld [vmem:[#allocation2 + $0x20] sm:$0xff]
    %v604 = vmul.f32 %v601, %v603
    %v605 = vadd.f32 %v598, %v604
    %v606 = vrcp.pop %v602
    %v607 = vmul.f32 %v605, %v606
    %vm608 = vcmask 785920
    %609 = vst.msk [vmem:[#allocation3] sm:$0xff] %vm608, %v607
    %v610 = vld [vmem:[#allocation2 + $0x28] sm:$0xff]
    %v611 = vld [vmem:[#allocation2] sm:$0xff]
    %v612 = vmul.f32 %v610, %v611
    %614 = vrot.lane.b32.xlu0 %v612, 64
    %v615 = vpop.permute.xlu0 %614
    %v617 = vsel %vm441, %v615, 0.0
    %618 = vadd.xlane.f32.xlu0 %v617
    %v619 = vpop.xlane.xlu0 %618
    %v620 = vld [vmem:[#allocation2 + $0x18] sm:$0xff]
    %v621 = vmul.f32 %v610, %v620
    %623 = vrot.lane.b32.xlu0 %v621, 64
    %v624 = vpop.permute.xlu0 %623
    %v626 = vsel %vm441, %v624, 0.0
    %627 = vadd.xlane.f32.xlu0 %v626
    %v628 = vpop.xlane.xlu0 %627
    %v629 = vmax.f32 %v619, %v628
    %v630 = vsub.f32 %v619, %v629
    %v631 = vmul.f32 %v630, 1.442695
    %v632 = vpow.pop %v631
    %v633 = vadd.f32 %v632, 0.0
    %v634 = vld [vmem:[#allocation2 + $0x8] sm:$0xff]
    %v635 = vmul.f32 %v632, %v634
    %v636 = vadd.f32 %v635, 0.0
    %v637 = vsub.f32 %v628, %v629
    %v638 = vmul.f32 %v637, 1.442695
    %v639 = vpow.pop %v638
    %v640 = vadd.f32 %v633, %v639
    %v641 = vld [vmem:[#allocation2 + $0x20] sm:$0xff]
    %v642 = vmul.f32 %v639, %v641
    %v643 = vadd.f32 %v636, %v642
    %v644 = vrcp.pop %v640
    %v645 = vmul.f32 %v643, %v644
    %646 = vst.msk [vmem:[#allocation3 + $0x8] sm:$0xff] %vm608, %v645
    %v647 = vld [vmem:[#allocation2 + $0x10] sm:$0xff]
    %v648 = vld [vmem:[#allocation2] sm:$0xff]
    %v649 = vmul.f32 %v647, %v648
    %651 = vrot.lane.b32.xlu0 %v649, 32
    %v652 = vpop.permute.xlu0 %651
    %v654 = vsel %vm441, %v652, 0.0
    %655 = vadd.xlane.f32.xlu0 %v654
    %v656 = vpop.xlane.xlu0 %655
    %v657 = vld [vmem:[#allocation2 + $0x18] sm:$0xff]
    %v658 = vmul.f32 %v647, %v657
    %660 = vrot.lane.b32.xlu0 %v658, 32
    %v661 = vpop.permute.xlu0 %660
    %v663 = vsel %vm441, %v661, 0.0
    %664 = vadd.xlane.f32.xlu0 %v663
    %v665 = vpop.xlane.xlu0 %664
    %v666 = vmax.f32 %v656, %v665
    %v667 = vsub.f32 %v656, %v666
    %v668 = vmul.f32 %v667, 1.442695
    %v669 = vpow.pop %v668
    %v670 = vadd.f32 %v669, 0.0
    %v671 = vld [vmem:[#allocation2 + $0x8] sm:$0xff]
    %v672 = vmul.f32 %v669, %v671
    %v673 = vadd.f32 %v672, 0.0
    %v674 = vsub.f32 %v665, %v666
    %v675 = vmul.f32 %v674, 1.442695
    %v676 = vpow.pop %v675
    %v677 = vadd.f32 %v670, %v676
    %v678 = vld [vmem:[#allocation2 + $0x20] sm:$0xff]
    %v679 = vmul.f32 %v676, %v678
    %v680 = vadd.f32 %v673, %v679
    %v681 = vrcp.pop %v677
    %v682 = vmul.f32 %v680, %v681
    %vm683 = vcmask 1048320
    %684 = vst.msk [vmem:[#allocation3] sm:$0xff] %vm683, %v682
    %v685 = vld [vmem:[#allocation2 + $0x28] sm:$0xff]
    %v686 = vld [vmem:[#allocation2] sm:$0xff]
    %v687 = vmul.f32 %v685, %v686
    %689 = vrot.lane.b32.xlu0 %v687, 32
    %v690 = vpop.permute.xlu0 %689
    %v692 = vsel %vm441, %v690, 0.0
    %693 = vadd.xlane.f32.xlu0 %v692
    %v694 = vpop.xlane.xlu0 %693
    %v695 = vld [vmem:[#allocation2 + $0x18] sm:$0xff]
    %v696 = vmul.f32 %v685, %v695
    %698 = vrot.lane.b32.xlu0 %v696, 32
    %v699 = vpop.permute.xlu0 %698
    %v701 = vsel %vm441, %v699, 0.0
    %702 = vadd.xlane.f32.xlu0 %v701
    %v703 = vpop.xlane.xlu0 %702
    %v704 = vmax.f32 %v694, %v703
    %v705 = vsub.f32 %v694, %v704
    %v706 = vmul.f32 %v705, 1.442695
    %v707 = vpow.pop %v706
    %v708 = vadd.f32 %v707, 0.0
    %v709 = vld [vmem:[#allocation2 + $0x8] sm:$0xff]
    %v710 = vmul.f32 %v707, %v709
    %v711 = vadd.f32 %v710, 0.0
    %v712 = vsub.f32 %v703, %v704
    %v713 = vmul.f32 %v712, 1.442695
    %v714 = vpow.pop %v713
    %v715 = vadd.f32 %v708, %v714
    %v716 = vld [vmem:[#allocation2 + $0x20] sm:$0xff]
    %v717 = vmul.f32 %v714, %v716
    %v718 = vadd.f32 %v711, %v717
    %v719 = vrcp.pop %v715
    %v720 = vmul.f32 %v718, %v719
    %721 = vst.msk [vmem:[#allocation3 + $0x8] sm:$0xff] %vm683, %v720
    %v722 = vld [vmem:[#allocation3] sm:$0xff]
    %v723 = vld [vmem:[#allocation3 + $0x8] sm:$0xff]
    %v724 = vpack.c.bf16 %v723, %v722
    %v725 = vld [vmem:[%s5] sm:$0xf]
    %v726 = vld [vmem:[%s5 + $0x4] sm:$0xf]
    %v727 = vld [vmem:[%s5 + $0x8] sm:$0xf]
    %v728 = vld [vmem:[%s5 + $0xc] sm:$0xf]
    %v729 = vld [vmem:[%s5 + $0x10] sm:$0xf]
    %v730 = vld [vmem:[%s5 + $0x14] sm:$0xf]
    %v731 = vld [vmem:[%s5 + $0x18] sm:$0xf]
    %v732 = vld [vmem:[%s5 + $0x1c] sm:$0xf]
    %v733 = vld [vmem:[%s5 + $0x20] sm:$0xf]
    %v734 = vld [vmem:[%s5 + $0x24] sm:$0xf]
    %v735 = vld [vmem:[%s5 + $0x28] sm:$0xf]
    %v736 = vld [vmem:[%s5 + $0x2c] sm:$0xf]
    %v737 = vld [vmem:[%s5 + $0x30] sm:$0xf]
    %v738 = vld [vmem:[%s5 + $0x34] sm:$0xf]
    %v739 = vld [vmem:[%s5 + $0x38] sm:$0xf]
    %v740 = vld [vmem:[%s5 + $0x3c] sm:$0xf]
    %v741 = vld [vmem:[%s6] sm:$0x1]
    %v743 = vlaneseq
    %v744 = vshrl.u32 %v743, 7
    %v745 = vsub.s32 0, %v744
    %v746 = vrot.slane %v741, %v745
    %v764 = vunpack.c.l.b16 %v725
    %v765 = vunpack.c.l.b16 %v726
    %v766 = vunpack.c.l.b16 %v727
    %v767 = vunpack.c.l.b16 %v728
    %v768 = vunpack.c.l.b16 %v729
    %v769 = vunpack.c.l.b16 %v730
    %v770 = vunpack.c.l.b16 %v731
    %v771 = vunpack.c.l.b16 %v732
    %v772 = vunpack.c.l.b16 %v733
    %v773 = vunpack.c.l.b16 %v734
    %v774 = vunpack.c.l.b16 %v735
    %v775 = vunpack.c.l.b16 %v736
    %v776 = vunpack.c.l.b16 %v737
    %v777 = vunpack.c.l.b16 %v738
    %v778 = vunpack.c.l.b16 %v739
    %v779 = vunpack.c.l.b16 %v740
    %v780 = vpack.c.b16 %v765, %v764
    %v781 = vpack.c.b16 %v767, %v766
    %v782 = vpack.c.b16 %v769, %v768
    %v783 = vpack.c.b16 %v771, %v770
    %v784 = vpack.c.b16 %v773, %v772
    %v785 = vpack.c.b16 %v775, %v774
    %v786 = vpack.c.b16 %v777, %v776
    %v787 = vpack.c.b16 %v779, %v778
    %796 = vmatprep.subr.bf16.mxu0 0
    %797 = vmatpush1.bf16.msra.mxu0 %v780
    %798 = vmatprep.subr.bf16.mxu0 0
    %799 = vmatpush1.bf16.msra.mxu0 %v781
    %800 = vmatprep.subr.bf16.mxu0 0
    %801 = vmatpush1.bf16.msra.mxu0 %v782
    %802 = vmatprep.subr.bf16.mxu0 0
    %803 = vmatpush1.bf16.msra.mxu0 %v783
    %804 = vmatprep.subr.bf16.mxu0 0
    %805 = vmatpush1.bf16.msra.mxu0 %v784
    %806 = vmatprep.subr.bf16.mxu0 0
    %807 = vmatpush1.bf16.msra.mxu0 %v785
    %808 = vmatprep.subr.bf16.mxu0 0
    %809 = vmatpush1.bf16.msra.mxu0 %v786
    %810 = vmatprep.subr.bf16.mxu0 0
    %811 = vmatpush1.bf16.msra.mxu0 %v787
    %812 = vmatprep.subr.bf16.mxu0 0
    %813 = vmatpush1.bf16.msra.mxu0 0
    %814 = vmatprep.subr.bf16.mxu0 0
    %815 = vmatpush1.bf16.msra.mxu0 0
    %816 = vmatprep.subr.bf16.mxu0 0
    %817 = vmatpush1.bf16.msra.mxu0 0
    %818 = vmatprep.subr.bf16.mxu0 0
    %819 = vmatpush1.bf16.msra.mxu0 0
    %820 = vmatprep.subr.bf16.mxu0 0
    %821 = vmatpush1.bf16.msra.mxu0 0
    %822 = vmatprep.subr.bf16.mxu0 0
    %823 = vmatpush1.bf16.msra.mxu0 0
    %824 = vmatprep.subr.bf16.mxu0 0
    %825 = vmatpush1.bf16.msra.mxu0 0
    %826 = vmatprep.subr.bf16.mxu0 0
    %827 = vmatpush1.bf16.msra.mxu0 0
    %828 = vmatprep.mubr.bf16.mxu0 0
    %829 = vmatmul.mubr.bf16.gmra.mrb[0].mxu0 %v724
    %v830 = vpop.f32.mrb[0].mxu0
    %v831 = vadd.f32 %v746, %v830
    %v832 = vpop.f32.mrb[0].mxu0
    %v833 = vpop.f32.mrb[0].mxu0
    %v834 = vadd.f32 %v746, %v833
    %v835 = vpop.f32.mrb[0].mxu0
    %836 = vdwg.mxu0
    %v837 = vpack.c.bf16 %v834, %v831
    %v838 = vld [vmem:[%s7] sm:$0xff]
    %v839 = vld [vmem:[%s7 + $0x8] sm:$0xff]
    %v840 = vld [vmem:[%s7 + $0x10] sm:$0xff]
    %v841 = vld [vmem:[%s7 + $0x18] sm:$0xff]
    %v842 = vld [vmem:[%s7 + $0x20] sm:$0xff]
    %v843 = vld [vmem:[%s7 + $0x28] sm:$0xff]
    %v844 = vld [vmem:[%s7 + $0x30] sm:$0xff]
    %v845 = vld [vmem:[%s7 + $0x38] sm:$0xff]
    %v846 = vld [vmem:[%s7 + $0x40] sm:$0xff]
    %v847 = vld [vmem:[%s7 + $0x48] sm:$0xff]
    %v848 = vld [vmem:[%s7 + $0x50] sm:$0xff]
    %v849 = vld [vmem:[%s7 + $0x58] sm:$0xff]
    %v850 = vld [vmem:[%s7 + $0x60] sm:$0xff]
    %v851 = vld [vmem:[%s7 + $0x68] sm:$0xff]
    %v852 = vld [vmem:[%s7 + $0x70] sm:$0xff]
    %v853 = vld [vmem:[%s7 + $0x78] sm:$0xff]
    %v854 = vld [vmem:[%s8] sm:$0xff]
    %v855 = vld [vmem:[%s8 + $0x8] sm:$0xff]
    %v856 = vld [vmem:[%s8 + $0x10] sm:$0xff]
    %v857 = vld [vmem:[%s8 + $0x18] sm:$0xff]
    %v858 = vld [vmem:[%s8 + $0x20] sm:$0xff]
    %v859 = vld [vmem:[%s8 + $0x28] sm:$0xff]
    %v860 = vld [vmem:[%s8 + $0x30] sm:$0xff]
    %v861 = vld [vmem:[%s8 + $0x38] sm:$0xff]
    %v862 = vld [vmem:[%s8 + $0x40] sm:$0xff]
    %v863 = vld [vmem:[%s8 + $0x48] sm:$0xff]
    %v864 = vld [vmem:[%s8 + $0x50] sm:$0xff]
    %v865 = vld [vmem:[%s8 + $0x58] sm:$0xff]
    %v866 = vld [vmem:[%s8 + $0x60] sm:$0xff]
    %v867 = vld [vmem:[%s8 + $0x68] sm:$0xff]
    %v868 = vld [vmem:[%s8 + $0x70] sm:$0xff]
    %v869 = vld [vmem:[%s8 + $0x78] sm:$0xff]
    %v886 = vunpack.c.l.b16 %v854
    %v887 = vunpack.c.h.b16 %v854
    %v888 = vunpack.c.l.b16 %v855
    %v889 = vunpack.c.h.b16 %v855
    %v890 = vunpack.c.l.b16 %v856
    %v891 = vunpack.c.h.b16 %v856
    %v892 = vunpack.c.l.b16 %v857
    %v893 = vunpack.c.h.b16 %v857
    %v894 = vunpack.c.l.b16 %v858
    %v895 = vunpack.c.h.b16 %v858
    %v896 = vunpack.c.l.b16 %v859
    %v897 = vunpack.c.h.b16 %v859
    %v898 = vunpack.c.l.b16 %v860
    %v899 = vunpack.c.h.b16 %v860
    %v900 = vunpack.c.l.b16 %v861
    %v901 = vunpack.c.h.b16 %v861
    %v902 = vunpack.c.l.b16 %v862
    %v903 = vunpack.c.h.b16 %v862
    %v904 = vunpack.c.l.b16 %v863
    %v905 = vunpack.c.h.b16 %v863
    %v906 = vunpack.c.l.b16 %v864
    %v907 = vunpack.c.h.b16 %v864
    %v908 = vunpack.c.l.b16 %v865
    %v909 = vunpack.c.h.b16 %v865
    %v910 = vunpack.c.l.b16 %v866
    %v911 = vunpack.c.h.b16 %v866
    %v912 = vunpack.c.l.b16 %v867
    %v913 = vunpack.c.h.b16 %v867
    %v914 = vunpack.c.l.b16 %v868
    %v915 = vunpack.c.h.b16 %v868
    %v916 = vunpack.c.l.b16 %v869
    %v917 = vunpack.c.h.b16 %v869
    %v918 = vpack.c.b16 %v888, %v886
    %v919 = vpack.c.b16 %v889, %v887
    %v920 = vpack.c.b16 %v892, %v890
    %v921 = vpack.c.b16 %v893, %v891
    %v922 = vpack.c.b16 %v896, %v894
    %v923 = vpack.c.b16 %v897, %v895
    %v924 = vpack.c.b16 %v900, %v898
    %v925 = vpack.c.b16 %v901, %v899
    %v926 = vpack.c.b16 %v904, %v902
    %v927 = vpack.c.b16 %v905, %v903
    %v928 = vpack.c.b16 %v908, %v906
    %v929 = vpack.c.b16 %v909, %v907
    %v930 = vpack.c.b16 %v912, %v910
    %v931 = vpack.c.b16 %v913, %v911
    %v932 = vpack.c.b16 %v916, %v914
    %v933 = vpack.c.b16 %v917, %v915
    %950 = vmatprep.subr.bf16.mxu0 %v919
    %951 = vmatpush1.bf16.msra.mxu0 %v918
    %952 = vmatprep.subr.bf16.mxu0 %v921
    %953 = vmatpush1.bf16.msra.mxu0 %v920
    %954 = vmatprep.subr.bf16.mxu0 %v923
    %955 = vmatpush1.bf16.msra.mxu0 %v922
    %956 = vmatprep.subr.bf16.mxu0 %v925
    %957 = vmatpush1.bf16.msra.mxu0 %v924
    %958 = vmatprep.subr.bf16.mxu0 %v927
    %959 = vmatpush1.bf16.msra.mxu0 %v926
    %960 = vmatprep.subr.bf16.mxu0 %v929
    %961 = vmatpush1.bf16.msra.mxu0 %v928
    %962 = vmatprep.subr.bf16.mxu0 %v931
    %963 = vmatpush1.bf16.msra.mxu0 %v930
    %964 = vmatprep.subr.bf16.mxu0 %v933
    %965 = vmatpush1.bf16.msra.mxu0 %v932
    %966 = vmatprep.subr.bf16.mxu0 0
    %967 = vmatpush1.bf16.msra.mxu0 0
    %968 = vmatprep.subr.bf16.mxu0 0
    %969 = vmatpush1.bf16.msra.mxu0 0
    %970 = vmatprep.subr.bf16.mxu0 0
    %971 = vmatpush1.bf16.msra.mxu0 0
    %972 = vmatprep.subr.bf16.mxu0 0
    %973 = vmatpush1.bf16.msra.mxu0 0
    %974 = vmatprep.subr.bf16.mxu0 0
    %975 = vmatpush1.bf16.msra.mxu0 0
    %976 = vmatprep.subr.bf16.mxu0 0
    %977 = vmatpush1.bf16.msra.mxu0 0
    %978 = vmatprep.subr.bf16.mxu0 0
    %979 = vmatpush1.bf16.msra.mxu0 0
    %980 = vmatprep.subr.bf16.mxu0 0
    %981 = vmatpush1.bf16.msra.mxu0 0
    %982 = vmatprep.mubr.bf16.mxu0 0
    %983 = vmatmul.mubr.bf16.gmra.mrb[0].mxu0 %v319
    %v984 = vpop.f32.mrb[0].mxu0
    %v985 = vadd.f32 0.0, %v984
    %v986 = vpop.f32.mrb[0].mxu0
    %v987 = vadd.f32 0.0, %v986
    %v988 = vpop.f32.mrb[0].mxu0
    %v989 = vadd.f32 0.0, %v988
    %v990 = vpop.f32.mrb[0].mxu0
    %v991 = vadd.f32 0.0, %v990
    %992 = vdwg.mxu0
    %v1009 = vunpack.c.l.b16 %v838
    %v1010 = vunpack.c.h.b16 %v838
    %v1011 = vunpack.c.l.b16 %v839
    %v1012 = vunpack.c.h.b16 %v839
    %v1013 = vunpack.c.l.b16 %v840
    %v1014 = vunpack.c.h.b16 %v840
    %v1015 = vunpack.c.l.b16 %v841
    %v1016 = vunpack.c.h.b16 %v841
    %v1017 = vunpack.c.l.b16 %v842
    %v1018 = vunpack.c.h.b16 %v842
    %v1019 = vunpack.c.l.b16 %v843
    %v1020 = vunpack.c.h.b16 %v843
    %v1021 = vunpack.c.l.b16 %v844
    %v1022 = vunpack.c.h.b16 %v844
    %v1023 = vunpack.c.l.b16 %v845
    %v1024 = vunpack.c.h.b16 %v845
    %v1025 = vunpack.c.l.b16 %v846
    %v1026 = vunpack.c.h.b16 %v846
    %v1027 = vunpack.c.l.b16 %v847
    %v1028 = vunpack.c.h.b16 %v847
    %v1029 = vunpack.c.l.b16 %v848
    %v1030 = vunpack.c.h.b16 %v848
    %v1031 = vunpack.c.l.b16 %v849
    %v1032 = vunpack.c.h.b16 %v849
    %v1033 = vunpack.c.l.b16 %v850
    %v1034 = vunpack.c.h.b16 %v850
    %v1035 = vunpack.c.l.b16 %v851
    %v1036 = vunpack.c.h.b16 %v851
    %v1037 = vunpack.c.l.b16 %v852
    %v1038 = vunpack.c.h.b16 %v852
    %v1039 = vunpack.c.l.b16 %v853
    %v1040 = vunpack.c.h.b16 %v853
    %v1041 = vpack.c.b16 %v1011, %v1009
    %v1042 = vpack.c.b16 %v1012, %v1010
    %v1043 = vpack.c.b16 %v1015, %v1013
    %v1044 = vpack.c.b16 %v1016, %v1014
    %v1045 = vpack.c.b16 %v1019, %v1017
    %v1046 = vpack.c.b16 %v1020, %v1018
    %v1047 = vpack.c.b16 %v1023, %v1021
    %v1048 = vpack.c.b16 %v1024, %v1022
    %v1049 = vpack.c.b16 %v1027, %v1025
    %v1050 = vpack.c.b16 %v1028, %v1026
    %v1051 = vpack.c.b16 %v1031, %v1029
    %v1052 = vpack.c.b16 %v1032, %v1030
    %v1053 = vpack.c.b16 %v1035, %v1033
    %v1054 = vpack.c.b16 %v1036, %v1034
    %v1055 = vpack.c.b16 %v1039, %v1037
    %v1056 = vpack.c.b16 %v1040, %v1038
    %1073 = vmatprep.subr.bf16.mxu0 %v1042
    %1074 = vmatpush1.bf16.msra.mxu0 %v1041
    %1075 = vmatprep.subr.bf16.mxu0 %v1044
    %1076 = vmatpush1.bf16.msra.mxu0 %v1043
    %1077 = vmatprep.subr.bf16.mxu0 %v1046
    %1078 = vmatpush1.bf16.msra.mxu0 %v1045
    %1079 = vmatprep.subr.bf16.mxu0 %v1048
    %1080 = vmatpush1.bf16.msra.mxu0 %v1047
    %1081 = vmatprep.subr.bf16.mxu0 %v1050
    %1082 = vmatpush1.bf16.msra.mxu0 %v1049
    %1083 = vmatprep.subr.bf16.mxu0 %v1052
    %1084 = vmatpush1.bf16.msra.mxu0 %v1051
    %1085 = vmatprep.subr.bf16.mxu0 %v1054
    %1086 = vmatpush1.bf16.msra.mxu0 %v1053
    %1087 = vmatprep.subr.bf16.mxu0 %v1056
    %1088 = vmatpush1.bf16.msra.mxu0 %v1055
    %1089 = vmatprep.subr.bf16.mxu0 0
    %1090 = vmatpush1.bf16.msra.mxu0 0
    %1091 = vmatprep.subr.bf16.mxu0 0
    %1092 = vmatpush1.bf16.msra.mxu0 0
    %1093 = vmatprep.subr.bf16.mxu0 0
    %1094 = vmatpush1.bf16.msra.mxu0 0
    %1095 = vmatprep.subr.bf16.mxu0 0
    %1096 = vmatpush1.bf16.msra.mxu0 0
    %1097 = vmatprep.subr.bf16.mxu0 0
    %1098 = vmatpush1.bf16.msra.mxu0 0
    %1099 = vmatprep.subr.bf16.mxu0 0
    %1100 = vmatpush1.bf16.msra.mxu0 0
    %1101 = vmatprep.subr.bf16.mxu0 0
    %1102 = vmatpush1.bf16.msra.mxu0 0
    %1103 = vmatprep.subr.bf16.mxu0 0
    %1104 = vmatpush1.bf16.msra.mxu0 0
    %1105 = vmatprep.mubr.bf16.mxu0 0
    %1106 = vmatmul.mubr.bf16.gmra.mrb[0].mxu0 %v837
    %v1107 = vpop.f32.mrb[0].mxu0
    %v1108 = vadd.f32 %v985, %v1107
    %v1109 = vpop.f32.mrb[0].mxu0
    %v1110 = vadd.f32 %v987, %v1109
    %v1111 = vpop.f32.mrb[0].mxu0
    %v1112 = vadd.f32 %v989, %v1111
    %v1113 = vpop.f32.mrb[0].mxu0
    %v1114 = vadd.f32 %v991, %v1113
    %1115 = vdwg.mxu0
    %v1116 = vld [vmem:[%s9] sm:$0x3]
    %v1118 = vlaneseq
    %v1119 = vshrl.u32 %v1118, 7
    %v1120 = vsub.s32 0, %v1119
    %v1121 = vrot.slane %v1116, %v1120
    %v1122 = vlaneseq
    %v1123 = vshrl.u32 %v1122, 7
    %v1124 = vsub.s32 1, %v1123
    %v1125 = vrot.slane %v1116, %v1124
    %v1128 = vadd.f32 %v1108, %v1121
    %v1129 = vadd.f32 %v1110, %v1125
    %v1130 = vadd.f32 %v1112, %v1121
    %v1131 = vadd.f32 %v1114, %v1125
    %v1132 = vsub.f32 0.0, %v1128
    %v1133 = vsub.f32 0.0, %v1130
    %v1134 = vmul.f32 %v1132, 1.442695
    %v1135 = vpow.pop %v1134
    %v1136 = vmul.f32 %v1133, 1.442695
    %v1137 = vpow.pop %v1136
    %v1138 = vadd.f32 %v1135, 1.0
    %v1139 = vadd.f32 %v1137, 1.0
    %v1140 = vrcp.pop %v1138
    %v1141 = vmul.f32 1.0, %v1140
    %v1142 = vrcp.pop %v1139
    %v1143 = vmul.f32 1.0, %v1142
    %v1144 = vmul.f32 %v1141, %v1129
    %v1145 = vmul.f32 %v1143, %v1131
    %v1146 = vld [vmem:[%s10] sm:$0x1]
    %v1147 = vld [vmem:[%s11] sm:$0x1]
    %v1148 = vadd.f32 %v1144, %v55
    %v1149 = vadd.f32 %v1145, %v56
    %1150 = vadd.xlane.f32.xlu0 %v1148
    %v1151 = vpop.xlane.xlu0 %1150
    %1152 = vadd.xlane.f32.xlu0 %v1149
    %v1153 = vpop.xlane.xlu0 %1152
    %v1154 = vrcp.pop 128.0
    %v1155 = vmul.f32 %v1151, %v1154
    %v1156 = vmul.f32 %v1153, %v1154
    %v1157 = vsub.f32 %v1148, %v1155
    %v1158 = vsub.f32 %v1149, %v1156
    %v1159 = vmul.f32 %v1157, %v1157
    %v1160 = vmul.f32 %v1158, %v1158
    %1161 = vadd.xlane.f32.xlu0 %v1159
    %v1162 = vpop.xlane.xlu0 %1161
    %1163 = vadd.xlane.f32.xlu0 %v1160
    %v1164 = vpop.xlane.xlu0 %1163
    %v1165 = vmul.f32 %v1162, %v1154
    %v1166 = vmul.f32 %v1164, %v1154
    %v1167 = vadd.f32 %v1165, 1e-05
    %v1168 = vadd.f32 %v1166, 1e-05
    %v1169 = vrsqrt.pop %v1167
    %v1170 = vrsqrt.pop %v1168
    %v1171 = vmul.f32 %v1157, %v1169
    %v1172 = vmul.f32 %v1158, %v1170
    %v1174 = vlaneseq
    %v1175 = vshrl.u32 %v1174, 7
    %v1176 = vsub.s32 0, %v1175
    %v1177 = vrot.slane %v1146, %v1176
    %v1179 = vmul.f32 %v1171, %v1177
    %v1180 = vmul.f32 %v1172, %v1177
    %v1182 = vlaneseq
    %v1183 = vshrl.u32 %v1182, 7
    %v1184 = vsub.s32 0, %v1183
    %v1185 = vrot.slane %v1147, %v1184
    %v1187 = vadd.f32 %v1179, %v1185
    %v1188 = vadd.f32 %v1180, %v1185
    %v1189 = vpack.c.bf16 %v1188, %v1187
    %v1190 = vld [vmem:[%s12] sm:$0xff]
    %v1191 = vld [vmem:[%s12 + $0x8] sm:$0xff]
    %v1192 = vld [vmem:[%s12 + $0x10] sm:$0xff]
    %v1193 = vld [vmem:[%s12 + $0x18] sm:$0xff]
    %v1194 = vld [vmem:[%s12 + $0x20] sm:$0xff]
    %v1195 = vld [vmem:[%s12 + $0x28] sm:$0xff]
    %v1196 = vld [vmem:[%s12 + $0x30] sm:$0xff]
    %v1197 = vld [vmem:[%s12 + $0x38] sm:$0xff]
    %v1198 = vld [vmem:[%s12 + $0x40] sm:$0xff]
    %v1199 = vld [vmem:[%s12 + $0x48] sm:$0xff]
    %v1200 = vld [vmem:[%s12 + $0x50] sm:$0xff]
    %v1201 = vld [vmem:[%s12 + $0x58] sm:$0xff]
    %v1202 = vld [vmem:[%s12 + $0x60] sm:$0xff]
    %v1203 = vld [vmem:[%s12 + $0x68] sm:$0xff]
    %v1204 = vld [vmem:[%s12 + $0x70] sm:$0xff]
    %v1205 = vld [vmem:[%s12 + $0x78] sm:$0xff]
    %v1206 = vld [vmem:[%s12 + $0x80] sm:$0xff]
    %v1207 = vld [vmem:[%s12 + $0x88] sm:$0xff]
    %v1208 = vld [vmem:[%s12 + $0x90] sm:$0xff]
    %v1209 = vld [vmem:[%s12 + $0x98] sm:$0xff]
    %v1210 = vld [vmem:[%s12 + $0xa0] sm:$0xff]
    %v1211 = vld [vmem:[%s12 + $0xa8] sm:$0xff]
    %v1212 = vld [vmem:[%s12 + $0xb0] sm:$0xff]
    %v1213 = vld [vmem:[%s12 + $0xb8] sm:$0xff]
    %v1214 = vld [vmem:[%s12 + $0xc0] sm:$0xff]
    %v1215 = vld [vmem:[%s12 + $0xc8] sm:$0xff]
    %v1216 = vld [vmem:[%s12 + $0xd0] sm:$0xff]
    %v1217 = vld [vmem:[%s12 + $0xd8] sm:$0xff]
    %v1218 = vld [vmem:[%s12 + $0xe0] sm:$0xff]
    %v1219 = vld [vmem:[%s12 + $0xe8] sm:$0xff]
    %v1220 = vld [vmem:[%s12 + $0xf0] sm:$0xff]
    %v1221 = vld [vmem:[%s12 + $0xf8] sm:$0xff]
    %v1222 = vld [vmem:[%s13] sm:$0xf]
    %v1224 = vlaneseq
    %v1225 = vshrl.u32 %v1224, 7
    %v1226 = vsub.s32 0, %v1225
    %v1227 = vrot.slane %v1222, %v1226
    %v1228 = vlaneseq
    %v1229 = vshrl.u32 %v1228, 7
    %v1230 = vsub.s32 1, %v1229
    %v1231 = vrot.slane %v1222, %v1230
    %v1232 = vlaneseq
    %v1233 = vshrl.u32 %v1232, 7
    %v1234 = vsub.s32 2, %v1233
    %v1235 = vrot.slane %v1222, %v1234
    %v1236 = vlaneseq
    %v1237 = vshrl.u32 %v1236, 7
    %v1238 = vsub.s32 3, %v1237
    %v1239 = vrot.slane %v1222, %v1238
    %v1276 = vunpack.c.l.b16 %v1190
    %v1277 = vunpack.c.h.b16 %v1190
    %v1278 = vunpack.c.l.b16 %v1191
    %v1279 = vunpack.c.h.b16 %v1191
    %v1280 = vunpack.c.l.b16 %v1192
    %v1281 = vunpack.c.h.b16 %v1192
    %v1282 = vunpack.c.l.b16 %v1193
    %v1283 = vunpack.c.h.b16 %v1193
    %v1284 = vunpack.c.l.b16 %v1194
    %v1285 = vunpack.c.h.b16 %v1194
    %v1286 = vunpack.c.l.b16 %v1195
    %v1287 = vunpack.c.h.b16 %v1195
    %v1288 = vunpack.c.l.b16 %v1196
    %v1289 = vunpack.c.h.b16 %v1196
    %v1290 = vunpack.c.l.b16 %v1197
    %v1291 = vunpack.c.h.b16 %v1197
    %v1292 = vunpack.c.l.b16 %v1198
    %v1293 = vunpack.c.h.b16 %v1198
    %v1294 = vunpack.c.l.b16 %v1199
    %v1295 = vunpack.c.h.b16 %v1199
    %v1296 = vunpack.c.l.b16 %v1200
    %v1297 = vunpack.c.h.b16 %v1200
    %v1298 = vunpack.c.l.b16 %v1201
    %v1299 = vunpack.c.h.b16 %v1201
    %v1300 = vunpack.c.l.b16 %v1202
    %v1301 = vunpack.c.h.b16 %v1202
    %v1302 = vunpack.c.l.b16 %v1203
    %v1303 = vunpack.c.h.b16 %v1203
    %v1304 = vunpack.c.l.b16 %v1204
    %v1305 = vunpack.c.h.b16 %v1204
    %v1306 = vunpack.c.l.b16 %v1205
    %v1307 = vunpack.c.h.b16 %v1205
    %v1308 = vunpack.c.l.b16 %v1206
    %v1309 = vunpack.c.h.b16 %v1206
    %v1310 = vunpack.c.l.b16 %v1207
    %v1311 = vunpack.c.h.b16 %v1207
    %v1312 = vunpack.c.l.b16 %v1208
    %v1313 = vunpack.c.h.b16 %v1208
    %v1314 = vunpack.c.l.b16 %v1209
    %v1315 = vunpack.c.h.b16 %v1209
    %v1316 = vunpack.c.l.b16 %v1210
    %v1317 = vunpack.c.h.b16 %v1210
    %v1318 = vunpack.c.l.b16 %v1211
    %v1319 = vunpack.c.h.b16 %v1211
    %v1320 = vunpack.c.l.b16 %v1212
    %v1321 = vunpack.c.h.b16 %v1212
    %v1322 = vunpack.c.l.b16 %v1213
    %v1323 = vunpack.c.h.b16 %v1213
    %v1324 = vunpack.c.l.b16 %v1214
    %v1325 = vunpack.c.h.b16 %v1214
    %v1326 = vunpack.c.l.b16 %v1215
    %v1327 = vunpack.c.h.b16 %v1215
    %v1328 = vunpack.c.l.b16 %v1216
    %v1329 = vunpack.c.h.b16 %v1216
    %v1330 = vunpack.c.l.b16 %v1217
    %v1331 = vunpack.c.h.b16 %v1217
    %v1332 = vunpack.c.l.b16 %v1218
    %v1333 = vunpack.c.h.b16 %v1218
    %v1334 = vunpack.c.l.b16 %v1219
    %v1335 = vunpack.c.h.b16 %v1219
    %v1336 = vunpack.c.l.b16 %v1220
    %v1337 = vunpack.c.h.b16 %v1220
    %v1338 = vunpack.c.l.b16 %v1221
    %v1339 = vunpack.c.h.b16 %v1221
    %v1340 = vpack.c.b16 %v1280, %v1276
    %v1341 = vpack.c.b16 %v1281, %v1277
    %v1342 = vpack.c.b16 %v1282, %v1278
    %v1343 = vpack.c.b16 %v1283, %v1279
    %v1344 = vpack.c.b16 %v1288, %v1284
    %v1345 = vpack.c.b16 %v1289, %v1285
    %v1346 = vpack.c.b16 %v1290, %v1286
    %v1347 = vpack.c.b16 %v1291, %v1287
    %v1348 = vpack.c.b16 %v1296, %v1292
    %v1349 = vpack.c.b16 %v1297, %v1293
    %v1350 = vpack.c.b16 %v1298, %v1294
    %v1351 = vpack.c.b16 %v1299, %v1295
    %v1352 = vpack.c.b16 %v1304, %v1300
    %v1353 = vpack.c.b16 %v1305, %v1301
    %v1354 = vpack.c.b16 %v1306, %v1302
    %v1355 = vpack.c.b16 %v1307, %v1303
    %v1356 = vpack.c.b16 %v1312, %v1308
    %v1357 = vpack.c.b16 %v1313, %v1309
    %v1358 = vpack.c.b16 %v1314, %v1310
    %v1359 = vpack.c.b16 %v1315, %v1311
    %v1360 = vpack.c.b16 %v1320, %v1316
    %v1361 = vpack.c.b16 %v1321, %v1317
    %v1362 = vpack.c.b16 %v1322, %v1318
    %v1363 = vpack.c.b16 %v1323, %v1319
    %v1364 = vpack.c.b16 %v1328, %v1324
    %v1365 = vpack.c.b16 %v1329, %v1325
    %v1366 = vpack.c.b16 %v1330, %v1326
    %v1367 = vpack.c.b16 %v1331, %v1327
    %v1368 = vpack.c.b16 %v1336, %v1332
    %v1369 = vpack.c.b16 %v1337, %v1333
    %v1370 = vpack.c.b16 %v1338, %v1334
    %v1371 = vpack.c.b16 %v1339, %v1335
    %1404 = vmatprep.subr.bf16.mxu0 %v1341
    %1405 = vmatpush1.bf16.msra.mxu0 %v1340
    %1406 = vmatprep.subr.bf16.mxu0 %v1345
    %1407 = vmatpush1.bf16.msra.mxu0 %v1344
    %1408 = vmatprep.subr.bf16.mxu0 %v1349
    %1409 = vmatpush1.bf16.msra.mxu0 %v1348
    %1410 = vmatprep.subr.bf16.mxu0 %v1353
    %1411 = vmatpush1.bf16.msra.mxu0 %v1352
    %1412 = vmatprep.subr.bf16.mxu0 %v1357
    %1413 = vmatpush1.bf16.msra.mxu0 %v1356
    %1414 = vmatprep.subr.bf16.mxu0 %v1361
    %1415 = vmatpush1.bf16.msra.mxu0 %v1360
    %1416 = vmatprep.subr.bf16.mxu0 %v1365
    %1417 = vmatpush1.bf16.msra.mxu0 %v1364
    %1418 = vmatprep.subr.bf16.mxu0 %v1369
    %1419 = vmatpush1.bf16.msra.mxu0 %v1368
    %1420 = vmatprep.subr.bf16.mxu0 0
    %1421 = vmatpush1.bf16.msra.mxu0 0
    %1422 = vmatprep.subr.bf16.mxu0 0
    %1423 = vmatpush1.bf16.msra.mxu0 0
    %1424 = vmatprep.subr.bf16.mxu0 0
    %1425 = vmatpush1.bf16.msra.mxu0 0
    %1426 = vmatprep.subr.bf16.mxu0 0
    %1427 = vmatpush1.bf16.msra.mxu0 0
    %1428 = vmatprep.subr.bf16.mxu0 0
    %1429 = vmatpush1.bf16.msra.mxu0 0
    %1430 = vmatprep.subr.bf16.mxu0 0
    %1431 = vmatpush1.bf16.msra.mxu0 0
    %1432 = vmatprep.subr.bf16.mxu0 0
    %1433 = vmatpush1.bf16.msra.mxu0 0
    %1434 = vmatprep.subr.bf16.mxu0 0
    %1435 = vmatpush1.bf16.msra.mxu0 0
    %1436 = vmatprep.mubr.bf16.mxu0 0
    %1437 = vmatmul.mubr.bf16.gmra.mrb[0].mxu0 %v1189
    %v1438 = vpop.f32.mrb[0].mxu0
    %v1439 = vadd.f32 %v1227, %v1438
    %v1440 = vpop.f32.mrb[0].mxu0
    %v1441 = vadd.f32 %v1231, %v1440
    %v1442 = vpop.f32.mrb[0].mxu0
    %v1443 = vadd.f32 %v1227, %v1442
    %v1444 = vpop.f32.mrb[0].mxu0
    %v1445 = vadd.f32 %v1231, %v1444
    %1446 = vdwg.mxu0
    %1447 = vmatprep.subr.bf16.mxu0 %v1343
    %1448 = vmatpush1.bf16.msra.mxu0 %v1342
    %1449 = vmatprep.subr.bf16.mxu0 %v1347
    %1450 = vmatpush1.bf16.msra.mxu0 %v1346
    %1451 = vmatprep.subr.bf16.mxu0 %v1351
    %1452 = vmatpush1.bf16.msra.mxu0 %v1350
    %1453 = vmatprep.subr.bf16.mxu0 %v1355
    %1454 = vmatpush1.bf16.msra.mxu0 %v1354
    %1455 = vmatprep.subr.bf16.mxu0 %v1359
    %1456 = vmatpush1.bf16.msra.mxu0 %v1358
    %1457 = vmatprep.subr.bf16.mxu0 %v1363
    %1458 = vmatpush1.bf16.msra.mxu0 %v1362
    %1459 = vmatprep.subr.bf16.mxu0 %v1367
    %1460 = vmatpush1.bf16.msra.mxu0 %v1366
    %1461 = vmatprep.subr.bf16.mxu0 %v1371
    %1462 = vmatpush1.bf16.msra.mxu0 %v1370
    %1463 = vmatprep.subr.bf16.mxu0 0
    %1464 = vmatpush1.bf16.msra.mxu0 0
    %1465 = vmatprep.subr.bf16.mxu0 0
    %1466 = vmatpush1.bf16.msra.mxu0 0
    %1467 = vmatprep.subr.bf16.mxu0 0
    %1468 = vmatpush1.bf16.msra.mxu0 0
    %1469 = vmatprep.subr.bf16.mxu0 0
    %1470 = vmatpush1.bf16.msra.mxu0 0
    %1471 = vmatprep.subr.bf16.mxu0 0
    %1472 = vmatpush1.bf16.msra.mxu0 0
    %1473 = vmatprep.subr.bf16.mxu0 0
    %1474 = vmatpush1.bf16.msra.mxu0 0
    %1475 = vmatprep.subr.bf16.mxu0 0
    %1476 = vmatpush1.bf16.msra.mxu0 0
    %1477 = vmatprep.subr.bf16.mxu0 0
    %1478 = vmatpush1.bf16.msra.mxu0 0
    %1479 = vmatprep.mubr.bf16.mxu0 0
    %1480 = vmatmul.mubr.bf16.gmra.mrb[0].mxu0 %v1189
    %v1481 = vpop.f32.mrb[0].mxu0
    %v1482 = vadd.f32 %v1235, %v1481
    %v1483 = vpop.f32.mrb[0].mxu0
    %v1484 = vadd.f32 %v1239, %v1483
    %v1485 = vpop.f32.mrb[0].mxu0
    %v1486 = vadd.f32 %v1235, %v1485
    %v1487 = vpop.f32.mrb[0].mxu0
    %v1488 = vadd.f32 %v1239, %v1487
    %1489 = vdwg.mxu0
    %v1490 = vmul.f32 %v1439, 0.5
    %v1491 = vmul.f32 %v1441, 0.5
    %v1492 = vmul.f32 %v1482, 0.5
    %v1493 = vmul.f32 %v1484, 0.5
    %v1494 = vmul.f32 %v1443, 0.5
    %v1495 = vmul.f32 %v1445, 0.5
    %v1496 = vmul.f32 %v1486, 0.5
    %v1497 = vmul.f32 %v1488, 0.5
    %v1498 = vmul.f32 %v1439, 0.044715
    %v1499 = vmul.f32 %v1441, 0.044715
    %v1500 = vmul.f32 %v1482, 0.044715
    %v1501 = vmul.f32 %v1484, 0.044715
    %v1502 = vmul.f32 %v1443, 0.044715
    %v1503 = vmul.f32 %v1445, 0.044715
    %v1504 = vmul.f32 %v1486, 0.044715
    %v1505 = vmul.f32 %v1488, 0.044715
    %v1506 = vmul.f32 %v1498, %v1439
    %v1507 = vmul.f32 %v1499, %v1441
    %v1508 = vmul.f32 %v1500, %v1482
    %v1509 = vmul.f32 %v1501, %v1484
    %v1510 = vmul.f32 %v1502, %v1443
    %v1511 = vmul.f32 %v1503, %v1445
    %v1512 = vmul.f32 %v1504, %v1486
    %v1513 = vmul.f32 %v1505, %v1488
    %v1514 = vmul.f32 %v1506, %v1439
    %v1515 = vmul.f32 %v1507, %v1441
    %v1516 = vmul.f32 %v1508, %v1482
    %v1517 = vmul.f32 %v1509, %v1484
    %v1518 = vmul.f32 %v1510, %v1443
    %v1519 = vmul.f32 %v1511, %v1445
    %v1520 = vmul.f32 %v1512, %v1486
    %v1521 = vmul.f32 %v1513, %v1488
    %v1522 = vadd.f32 %v1439, %v1514
    %v1523 = vadd.f32 %v1441, %v1515
    %v1524 = vadd.f32 %v1482, %v1516
    %v1525 = vadd.f32 %v1484, %v1517
    %v1526 = vadd.f32 %v1443, %v1518
    %v1527 = vadd.f32 %v1445, %v1519
    %v1528 = vadd.f32 %v1486, %v1520
    %v1529 = vadd.f32 %v1488, %v1521
    %v1530 = vmul.f32 %v1522, 0.7978846
    %v1531 = vmul.f32 %v1523, 0.7978846
    %v1532 = vmul.f32 %v1524, 0.7978846
    %v1533 = vmul.f32 %v1525, 0.7978846
    %v1534 = vmul.f32 %v1526, 0.7978846
    %v1535 = vmul.f32 %v1527, 0.7978846
    %v1536 = vmul.f32 %v1528, 0.7978846
    %v1537 = vmul.f32 %v1529, 0.7978846
    %v1538 = vtanh.pop %v1530
    %v1539 = vtanh.pop %v1531
    %v1540 = vtanh.pop %v1532
    %v1541 = vtanh.pop %v1533
    %v1542 = vtanh.pop %v1534
    %v1543 = vtanh.pop %v1535
    %v1544 = vtanh.pop %v1536
    %v1545 = vtanh.pop %v1537
    %v1546 = vadd.f32 %v1538, 1.0
    %v1547 = vadd.f32 %v1539, 1.0
    %v1548 = vadd.f32 %v1540, 1.0
    %v1549 = vadd.f32 %v1541, 1.0
    %v1550 = vadd.f32 %v1542, 1.0
    %v1551 = vadd.f32 %v1543, 1.0
    %v1552 = vadd.f32 %v1544, 1.0
    %v1553 = vadd.f32 %v1545, 1.0
    %v1554 = vmul.f32 %v1490, %v1546
    %v1555 = vmul.f32 %v1491, %v1547
    %v1556 = vmul.f32 %v1492, %v1548
    %v1557 = vmul.f32 %v1493, %v1549
    %v1558 = vmul.f32 %v1494, %v1550
    %v1559 = vmul.f32 %v1495, %v1551
    %v1560 = vmul.f32 %v1496, %v1552
    %v1561 = vmul.f32 %v1497, %v1553
    %v1562 = vpack.c.bf16 %v1558, %v1554
    %v1563 = vpack.c.bf16 %v1559, %v1555
    %v1564 = vpack.c.bf16 %v1560, %v1556
    %v1565 = vpack.c.bf16 %v1561, %v1557
    %v1566 = vld [vmem:[%s14] sm:$0xf]
    %v1567 = vld [vmem:[%s14 + $0x4] sm:$0xf]
    %v1568 = vld [vmem:[%s14 + $0x8] sm:$0xf]
    %v1569 = vld [vmem:[%s14 + $0xc] sm:$0xf]
    %v1570 = vld [vmem:[%s14 + $0x10] sm:$0xf]
    %v1571 = vld [vmem:[%s14 + $0x14] sm:$0xf]
    %v1572 = vld [vmem:[%s14 + $0x18] sm:$0xf]
    %v1573 = vld [vmem:[%s14 + $0x1c] sm:$0xf]
    %v1574 = vld [vmem:[%s14 + $0x20] sm:$0xf]
    %v1575 = vld [vmem:[%s14 + $0x24] sm:$0xf]
    %v1576 = vld [vmem:[%s14 + $0x28] sm:$0xf]
    %v1577 = vld [vmem:[%s14 + $0x2c] sm:$0xf]
    %v1578 = vld [vmem:[%s14 + $0x30] sm:$0xf]
    %v1579 = vld [vmem:[%s14 + $0x34] sm:$0xf]
    %v1580 = vld [vmem:[%s14 + $0x38] sm:$0xf]
    %v1581 = vld [vmem:[%s14 + $0x3c] sm:$0xf]
    %v1582 = vld [vmem:[%s14 + $0x40] sm:$0xf]
    %v1583 = vld [vmem:[%s14 + $0x44] sm:$0xf]
    %v1584 = vld [vmem:[%s14 + $0x48] sm:$0xf]
    %v1585 = vld [vmem:[%s14 + $0x4c] sm:$0xf]
    %v1586 = vld [vmem:[%s14 + $0x50] sm:$0xf]
    %v1587 = vld [vmem:[%s14 + $0x54] sm:$0xf]
    %v1588 = vld [vmem:[%s14 + $0x58] sm:$0xf]
    %v1589 = vld [vmem:[%s14 + $0x5c] sm:$0xf]
    %v1590 = vld [vmem:[%s14 + $0x60] sm:$0xf]
    %v1591 = vld [vmem:[%s14 + $0x64] sm:$0xf]
    %v1592 = vld [vmem:[%s14 + $0x68] sm:$0xf]
    %v1593 = vld [vmem:[%s14 + $0x6c] sm:$0xf]
    %v1594 = vld [vmem:[%s14 + $0x70] sm:$0xf]
    %v1595 = vld [vmem:[%s14 + $0x74] sm:$0xf]
    %v1596 = vld [vmem:[%s14 + $0x78] sm:$0xf]
    %v1597 = vld [vmem:[%s14 + $0x7c] sm:$0xf]
    %v1598 = vld [vmem:[%s14 + $0x80] sm:$0xf]
    %v1599 = vld [vmem:[%s14 + $0x84] sm:$0xf]
    %v1600 = vld [vmem:[%s14 + $0x88] sm:$0xf]
    %v1601 = vld [vmem:[%s14 + $0x8c] sm:$0xf]
    %v1602 = vld [vmem:[%s14 + $0x90] sm:$0xf]
    %v1603 = vld [vmem:[%s14 + $0x94] sm:$0xf]
    %v1604 = vld [vmem:[%s14 + $0x98] sm:$0xf]
    %v1605 = vld [vmem:[%s14 + $0x9c] sm:$0xf]
    %v1606 = vld [vmem:[%s14 + $0xa0] sm:$0xf]
    %v1607 = vld [vmem:[%s14 + $0xa4] sm:$0xf]
    %v1608 = vld [vmem:[%s14 + $0xa8] sm:$0xf]
    %v1609 = vld [vmem:[%s14 + $0xac] sm:$0xf]
    %v1610 = vld [vmem:[%s14 + $0xb0] sm:$0xf]
    %v1611 = vld [vmem:[%s14 + $0xb4] sm:$0xf]
    %v1612 = vld [vmem:[%s14 + $0xb8] sm:$0xf]
    %v1613 = vld [vmem:[%s14 + $0xbc] sm:$0xf]
    %v1614 = vld [vmem:[%s14 + $0xc0] sm:$0xf]
    %v1615 = vld [vmem:[%s14 + $0xc4] sm:$0xf]
    %v1616 = vld [vmem:[%s14 + $0xc8] sm:$0xf]
    %v1617 = vld [vmem:[%s14 + $0xcc] sm:$0xf]
    %v1618 = vld [vmem:[%s14 + $0xd0] sm:$0xf]
    %v1619 = vld [vmem:[%s14 + $0xd4] sm:$0xf]
    %v1620 = vld [vmem:[%s14 + $0xd8] sm:$0xf]
    %v1621 = vld [vmem:[%s14 + $0xdc] sm:$0xf]
    %v1622 = vld [vmem:[%s14 + $0xe0] sm:$0xf]
    %v1623 = vld [vmem:[%s14 + $0xe4] sm:$0xf]
    %v1624 = vld [vmem:[%s14 + $0xe8] sm:$0xf]
    %v1625 = vld [vmem:[%s14 + $0xec] sm:$0xf]
    %v1626 = vld [vmem:[%s14 + $0xf0] sm:$0xf]
    %v1627 = vld [vmem:[%s14 + $0xf4] sm:$0xf]
    %v1628 = vld [vmem:[%s14 + $0xf8] sm:$0xf]
    %v1629 = vld [vmem:[%s14 + $0xfc] sm:$0xf]
    %v1630 = vld [vmem:[%s15] sm:$0x1]
    %v1632 = vlaneseq
    %v1633 = vshrl.u32 %v1632, 7
    %v1634 = vsub.s32 0, %v1633
    %v1635 = vrot.slane %v1630, %v1634
    %v1701 = vunpack.c.l.b16 %v1566
    %v1702 = vunpack.c.l.b16 %v1567
    %v1703 = vunpack.c.l.b16 %v1568
    %v1704 = vunpack.c.l.b16 %v1569
    %v1705 = vunpack.c.l.b16 %v1570
    %v1706 = vunpack.c.l.b16 %v1571
    %v1707 = vunpack.c.l.b16 %v1572
    %v1708 = vunpack.c.l.b16 %v1573
    %v1709 = vunpack.c.l.b16 %v1574
    %v1710 = vunpack.c.l.b16 %v1575
    %v1711 = vunpack.c.l.b16 %v1576
    %v1712 = vunpack.c.l.b16 %v1577
    %v1713 = vunpack.c.l.b16 %v1578
    %v1714 = vunpack.c.l.b16 %v1579
    %v1715 = vunpack.c.l.b16 %v1580
    %v1716 = vunpack.c.l.b16 %v1581
    %v1717 = vunpack.c.l.b16 %v1582
    %v1718 = vunpack.c.l.b16 %v1583
    %v1719 = vunpack.c.l.b16 %v1584
    %v1720 = vunpack.c.l.b16 %v1585
    %v1721 = vunpack.c.l.b16 %v1586
    %v1722 = vunpack.c.l.b16 %v1587
    %v1723 = vunpack.c.l.b16 %v1588
    %v1724 = vunpack.c.l.b16 %v1589
    %v1725 = vunpack.c.l.b16 %v1590
    %v1726 = vunpack.c.l.b16 %v1591
    %v1727 = vunpack.c.l.b16 %v1592
    %v1728 = vunpack.c.l.b16 %v1593
    %v1729 = vunpack.c.l.b16 %v1594
    %v1730 = vunpack.c.l.b16 %v1595
    %v1731 = vunpack.c.l.b16 %v1596
    %v1732 = vunpack.c.l.b16 %v1597
    %v1733 = vunpack.c.l.b16 %v1598
    %v1734 = vunpack.c.l.b16 %v1599
    %v1735 = vunpack.c.l.b16 %v1600
    %v1736 = vunpack.c.l.b16 %v1601
    %v1737 = vunpack.c.l.b16 %v1602
    %v1738 = vunpack.c.l.b16 %v1603
    %v1739 = vunpack.c.l.b16 %v1604
    %v1740 = vunpack.c.l.b16 %v1605
    %v1741 = vunpack.c.l.b16 %v1606
    %v1742 = vunpack.c.l.b16 %v1607
    %v1743 = vunpack.c.l.b16 %v1608
    %v1744 = vunpack.c.l.b16 %v1609
    %v1745 = vunpack.c.l.b16 %v1610
    %v1746 = vunpack.c.l.b16 %v1611
    %v1747 = vunpack.c.l.b16 %v1612
    %v1748 = vunpack.c.l.b16 %v1613
    %v1749 = vunpack.c.l.b16 %v1614
    %v1750 = vunpack.c.l.b16 %v1615
    %v1751 = vunpack.c.l.b16 %v1616
    %v1752 = vunpack.c.l.b16 %v1617
    %v1753 = vunpack.c.l.b16 %v1618
    %v1754 = vunpack.c.l.b16 %v1619
    %v1755 = vunpack.c.l.b16 %v1620
    %v1756 = vunpack.c.l.b16 %v1621
    %v1757 = vunpack.c.l.b16 %v1622
    %v1758 = vunpack.c.l.b16 %v1623
    %v1759 = vunpack.c.l.b16 %v1624
    %v1760 = vunpack.c.l.b16 %v1625
    %v1761 = vunpack.c.l.b16 %v1626
    %v1762 = vunpack.c.l.b16 %v1627
    %v1763 = vunpack.c.l.b16 %v1628
    %v1764 = vunpack.c.l.b16 %v1629
    %v1765 = vpack.c.b16 %v1702, %v1701
    %v1766 = vpack.c.b16 %v1704, %v1703
    %v1767 = vpack.c.b16 %v1706, %v1705
    %v1768 = vpack.c.b16 %v1708, %v1707
    %v1769 = vpack.c.b16 %v1710, %v1709
    %v1770 = vpack.c.b16 %v1712, %v1711
    %v1771 = vpack.c.b16 %v1714, %v1713
    %v1772 = vpack.c.b16 %v1716, %v1715
    %v1773 = vpack.c.b16 %v1718, %v1717
    %v1774 = vpack.c.b16 %v1720, %v1719
    %v1775 = vpack.c.b16 %v1722, %v1721
    %v1776 = vpack.c.b16 %v1724, %v1723
    %v1777 = vpack.c.b16 %v1726, %v1725
    %v1778 = vpack.c.b16 %v1728, %v1727
    %v1779 = vpack.c.b16 %v1730, %v1729
    %v1780 = vpack.c.b16 %v1732, %v1731
    %v1781 = vpack.c.b16 %v1734, %v1733
    %v1782 = vpack.c.b16 %v1736, %v1735
    %v1783 = vpack.c.b16 %v1738, %v1737
    %v1784 = vpack.c.b16 %v1740, %v1739
    %v1785 = vpack.c.b16 %v1742, %v1741
    %v1786 = vpack.c.b16 %v1744, %v1743
    %v1787 = vpack.c.b16 %v1746, %v1745
    %v1788 = vpack.c.b16 %v1748, %v1747
    %v1789 = vpack.c.b16 %v1750, %v1749
    %v1790 = vpack.c.b16 %v1752, %v1751
    %v1791 = vpack.c.b16 %v1754, %v1753
    %v1792 = vpack.c.b16 %v1756, %v1755
    %v1793 = vpack.c.b16 %v1758, %v1757
    %v1794 = vpack.c.b16 %v1760, %v1759
    %v1795 = vpack.c.b16 %v1762, %v1761
    %v1796 = vpack.c.b16 %v1764, %v1763
    %1829 = vmatprep.subr.bf16.mxu0 0
    %1830 = vmatpush1.bf16.msra.mxu0 %v1765
    %1831 = vmatprep.subr.bf16.mxu0 0
    %1832 = vmatpush1.bf16.msra.mxu0 %v1766
    %1833 = vmatprep.subr.bf16.mxu0 0
    %1834 = vmatpush1.bf16.msra.mxu0 %v1767
    %1835 = vmatprep.subr.bf16.mxu0 0
    %1836 = vmatpush1.bf16.msra.mxu0 %v1768
    %1837 = vmatprep.subr.bf16.mxu0 0
    %1838 = vmatpush1.bf16.msra.mxu0 %v1769
    %1839 = vmatprep.subr.bf16.mxu0 0
    %1840 = vmatpush1.bf16.msra.mxu0 %v1770
    %1841 = vmatprep.subr.bf16.mxu0 0
    %1842 = vmatpush1.bf16.msra.mxu0 %v1771
    %1843 = vmatprep.subr.bf16.mxu0 0
    %1844 = vmatpush1.bf16.msra.mxu0 %v1772
    %1845 = vmatprep.subr.bf16.mxu0 0
    %1846 = vmatpush1.bf16.msra.mxu0 %v1773
    %1847 = vmatprep.subr.bf16.mxu0 0
    %1848 = vmatpush1.bf16.msra.mxu0 %v1774
    %1849 = vmatprep.subr.bf16.mxu0 0
    %1850 = vmatpush1.bf16.msra.mxu0 %v1775
    %1851 = vmatprep.subr.bf16.mxu0 0
    %1852 = vmatpush1.bf16.msra.mxu0 %v1776
    %1853 = vmatprep.subr.bf16.mxu0 0
    %1854 = vmatpush1.bf16.msra.mxu0 %v1777
    %1855 = vmatprep.subr.bf16.mxu0 0
    %1856 = vmatpush1.bf16.msra.mxu0 %v1778
    %1857 = vmatprep.subr.bf16.mxu0 0
    %1858 = vmatpush1.bf16.msra.mxu0 %v1779
    %1859 = vmatprep.subr.bf16.mxu0 0
    %1860 = vmatpush1.bf16.msra.mxu0 %v1780
    %1861 = vmatprep.mubr.bf16.mxu0 %v1563
    %1862 = vmatmul.mubr.bf16.gmra.mrb[0].mxu0 %v1562
    %v1863 = vpop.f32.mrb[0].mxu0
    %v1864 = vadd.f32 %v1635, %v1863
    %v1865 = vpop.f32.mrb[0].mxu0
    %v1866 = vpop.f32.mrb[0].mxu0
    %v1867 = vadd.f32 %v1635, %v1866
    %v1868 = vpop.f32.mrb[0].mxu0
    %1869 = vdwg.mxu0
    %1870 = vmatprep.subr.bf16.mxu0 0
    %1871 = vmatpush1.bf16.msra.mxu0 %v1781
    %1872 = vmatprep.subr.bf16.mxu0 0
    %1873 = vmatpush1.bf16.msra.mxu0 %v1782
    %1874 = vmatprep.subr.bf16.mxu0 0
    %1875 = vmatpush1.bf16.msra.mxu0 %v1783
    %1876 = vmatprep.subr.bf16.mxu0 0
    %1877 = vmatpush1.bf16.msra.mxu0 %v1784
    %1878 = vmatprep.subr.bf16.mxu0 0
    %1879 = vmatpush1.bf16.msra.mxu0 %v1785
    %1880 = vmatprep.subr.bf16.mxu0 0
    %1881 = vmatpush1.bf16.msra.mxu0 %v1786
    %1882 = vmatprep.subr.bf16.mxu0 0
    %1883 = vmatpush1.bf16.msra.mxu0 %v1787
    %1884 = vmatprep.subr.bf16.mxu0 0
    %1885 = vmatpush1.bf16.msra.mxu0 %v1788
    %1886 = vmatprep.subr.bf16.mxu0 0
    %1887 = vmatpush1.bf16.msra.mxu0 %v1789
    %1888 = vmatprep.subr.bf16.mxu0 0
    %1889 = vmatpush1.bf16.msra.mxu0 %v1790
    %1890 = vmatprep.subr.bf16.mxu0 0
    %1891 = vmatpush1.bf16.msra.mxu0 %v1791
    %1892 = vmatprep.subr.bf16.mxu0 0
    %1893 = vmatpush1.bf16.msra.mxu0 %v1792
    %1894 = vmatprep.subr.bf16.mxu0 0
    %1895 = vmatpush1.bf16.msra.mxu0 %v1793
    %1896 = vmatprep.subr.bf16.mxu0 0
    %1897 = vmatpush1.bf16.msra.mxu0 %v1794
    %1898 = vmatprep.subr.bf16.mxu0 0
    %1899 = vmatpush1.bf16.msra.mxu0 %v1795
    %1900 = vmatprep.subr.bf16.mxu0 0
    %1901 = vmatpush1.bf16.msra.mxu0 %v1796
    %1902 = vmatprep.mubr.bf16.mxu0 %v1565
    %1903 = vmatmul.mubr.bf16.gmra.mrb[0].mxu0 %v1564
    %v1904 = vpop.f32.mrb[0].mxu0
    %v1905 = vadd.f32 %v1864, %v1904
    %v1906 = vpop.f32.mrb[0].mxu0
    %v1907 = vpop.f32.mrb[0].mxu0
    %v1908 = vadd.f32 %v1867, %v1907
    %v1909 = vpop.f32.mrb[0].mxu0
    %1910 = vdwg.mxu0
    %v1911 = vadd.f32 %v1905, %v1187
    %v1912 = vadd.f32 %v1908, %v1188
    %1913 = vadd.xlane.f32.xlu0 %v1911
    %v1914 = vpop.xlane.xlu0 %1913
    %1915 = vadd.xlane.f32.xlu0 %v1912
    %v1916 = vpop.xlane.xlu0 %1915
    %v1917 = vmul.f32 %v1914, %v1154
    %v1918 = vmul.f32 %v1916, %v1154
    %v1919 = vsub.f32 %v1911, %v1917
    %v1920 = vsub.f32 %v1912, %v1918
    %v1921 = vmul.f32 %v1919, %v1919
    %v1922 = vmul.f32 %v1920, %v1920
    %1923 = vadd.xlane.f32.xlu0 %v1921
    %v1924 = vpop.xlane.xlu0 %1923
    %1925 = vadd.xlane.f32.xlu0 %v1922
    %v1926 = vpop.xlane.xlu0 %1925
    %v1927 = vmul.f32 %v1924, %v1154
    %v1928 = vmul.f32 %v1926, %v1154
    %v1929 = vadd.f32 %v1927, 1e-05
    %v1930 = vadd.f32 %v1928, 1e-05
    %v1931 = vrsqrt.pop %v1929
    %v1932 = vrsqrt.pop %v1930
    %v1933 = vmul.f32 %v1919, %v1931
    %v1934 = vmul.f32 %v1920, %v1932
    %v1935 = vmul.f32 %v1933, %v1177
    %v1936 = vmul.f32 %v1934, %v1177
    %v1937 = vadd.f32 %v1935, %v1185
    %v1938 = vadd.f32 %v1936, %v1185
    %v1939 = vadd.f32 %v1937, %v55
    %v1940 = vadd.f32 %v1938, %v56
    %1941 = vst [vmem:[#allocation4] sm:$0xff] %v1939
    %1942 = vst [vmem:[#allocation4 + $0x8] sm:$0xff] %v1940
    // Predicated region
    $region66: #{transformer_forward.3} parent=1 // pred_check
      _
    $region67: #{transformer_forward.3} parent=1 // pred_check_branch
      %1944 = sbr.rel (0) target = $region69
    $region68: #{transformer_forward.3} parent=1 // pred_region
      %s1946 = ssub.s32 256, 256
      %1947 = vsyncadd [#allocation5], %s1946
      %s1948 = sshll.u32 [#allocation4], 4
      %s1949 = int_to_ptr.vmem [resolvable:$true] %s1948
      %1954 = dma.vmem_to_hbm [thread:$0]  %s1949, 256, %s16, [#allocation5], 128, 128, 8
    $region69: #{transformer_forward.3} parent=1 // pred_fallthru
      _
    // Predicated region
    $region70: #{transformer_forward.3} parent=1 // pred_check
      _
    $region71: #{transformer_forward.3} parent=1 // pred_check_branch
      %1956 = sbr.rel (0) target = $region73
    $region72: #{transformer_forward.3} parent=1 // pred_region
      %1957 = dma.done [#allocation5], 256
    $region73: #{transformer_forward.3} parent=1 // pred_fallthru
      _
    %1958 = vsyncpa [#allocation5], 1

</llo_original>
